<compile_context>
chip_gen: v7x
topology: tpu7x:2x2x1
jax: 0.10.0
libtpu: 0.0.40
codegen_flags: <defaults>
</compile_context>

<pallas_src>
import functools

import jax
import jax.numpy as jnp
from jax.experimental import pallas as pl
from jax.experimental.pallas import tpu as pltpu

LEAKY_SLOPE = 0.1
LANE = 128
_TILE_M_TARGET = 1024


def _round_up(x, m):
    return ((x + m - 1) // m) * m


def _cdiv(a, b):
    return -(-a // b)


# -------------------------- VMEM budget (per chip) ---------------------------

@functools.lru_cache(maxsize=None)
def _vmem_budget():
    """(working-set budget, scoped vmem limit) derived from the chip's VMEM."""
    cap = 64 * 1024 * 1024                      # conservative default (v7x)
    try:
        cap = int(pltpu.get_tpu_info().vmem_capacity_bytes)
    except Exception:
        pass
    budget = (cap * 3) // 8                     # ~24 MiB v7x, ~48 MiB v5e/v6e
    limit = (cap * 5) // 8                      # ~40 MiB v7x, ~80 MiB v5e/v6e
    return budget, limit


def _compiler_params(vmem_limit):
    return pltpu.CompilerParams(dimension_semantics=("parallel",),
                                vmem_limit_bytes=int(vmem_limit))


def _choose_tiling(M, per_row_bytes, fixed_bytes, budget):
    """tile_m (multiple of 16) + padded M; >=2 (preferably even) grid steps."""
    avail = max(budget - fixed_bytes, 1 << 20)
    tm = (avail // (2 * max(per_row_bytes, 1)) // 16) * 16   # 2x: double buffer
    tm = max(16, min(_TILE_M_TARGET, tm))
    if M > 16:                                  # give v7x's 2nd TC some work
        tm = min(tm, _round_up(_cdiv(M, 2), 16))
    steps = _cdiv(M, tm)
    if steps > 2 and steps % 2 == 1:            # prefer an even step count
        steps += 1
        tm = max(16, _round_up(_cdiv(M, steps), 16))
    m_pad = _round_up(M, tm)
    return tm, m_pad


# ------------------------------ Pallas kernels -------------------------------

def _gemm_kernel(*refs, n_pairs, leaky, has_residual):
    """o = act( sum_i A_i @ W_i ) [+ residual]; f32 accumulate, f32 epilogue."""
    a_refs = refs[:n_pairs]
    w_refs = refs[n_pairs:2 * n_pairs]
    o_ref = refs[-1]
    acc = jnp.dot(a_refs[0][...], w_refs[0][...],
                  preferred_element_type=jnp.float32)
    for i in range(1, n_pairs):
        acc = acc + jnp.dot(a_refs[i][...], w_refs[i][...],
                            preferred_element_type=jnp.float32)
    if leaky is not None:
        acc = jnp.where(acc >= 0, acc, acc * leaky)
    if has_residual:
        acc = acc + refs[2 * n_pairs][...].astype(jnp.float32)
    o_ref[...] = acc.astype(o_ref.dtype)


def _gemm_chain_kernel(a_ref, w1_ref, w2_ref, o_ref, *, leaky):
    """o = leaky( leaky(A @ W1) @ W2 ); intermediate stays in VMEM/vregs."""
    h = jnp.dot(a_ref[...], w1_ref[...], preferred_element_type=jnp.float32)
    h = jnp.where(h >= 0, h, h * leaky).astype(jnp.bfloat16)
    acc = jnp.dot(h, w2_ref[...], preferred_element_type=jnp.float32)
    acc = jnp.where(acc >= 0, acc, acc * leaky)
    o_ref[...] = acc.astype(o_ref.dtype)


# ------------------------------ GEMM wrappers --------------------------------

def pallas_gemm(a_list, w_list, *, leaky=None, residual=None,
                out_dtype=jnp.bfloat16):
    """sum_i A_i @ W_i with fused LeakyReLU / residual.  A_i:(M,K_i), W_i:(K_i,N)."""
    M = a_list[0].shape[0]
    N = w_list[0].shape[1]
    a_list = [a.astype(jnp.bfloat16) for a in a_list]
    w_list = [w.astype(jnp.bfloat16) for w in w_list]

    budget, limit = _vmem_budget()
    ktot = sum(a.shape[1] for a in a_list)
    per_row = ktot * 2 + N * jnp.dtype(out_dtype).itemsize + N * 4  # A + out + f32 acc
    if residual is not None:
        per_row += N * residual.dtype.itemsize
    fixed = 2 * sum(w.shape[0] * w.shape[1] * 2 for w in w_list)    # weights, 2 bufs
    tm, m_pad = _choose_tiling(M, per_row, fixed, budget)

    if m_pad != M:
        a_list = [jnp.pad(a, ((0, m_pad - M), (0, 0))) for a in a_list]
        if residual is not None:
            residual = jnp.pad(residual, ((0, m_pad - M), (0, 0)))

    in_specs = [pl.BlockSpec((tm, a.shape[1]), lambda i: (i, 0)) for a in a_list]
    in_specs += [pl.BlockSpec((w.shape[0], N), lambda i: (0, 0)) for w in w_list]
    args = list(a_list) + list(w_list)
    has_res = residual is not None
    if has_res:
        in_specs.append(pl.BlockSpec((tm, N), lambda i: (i, 0)))
        args.append(residual)

    kernel = functools.partial(_gemm_kernel, n_pairs=len(a_list),
                               leaky=leaky, has_residual=has_res)
    out = pl.pallas_call(
        kernel,
        out_shape=jax.ShapeDtypeStruct((m_pad, N), out_dtype),
        grid=(m_pad // tm,),
        in_specs=in_specs,
        out_specs=pl.BlockSpec((tm, N), lambda i: (i, 0)),
        compiler_params=_compiler_params(limit),
    )(*args)
    return out if m_pad == M else out[:M]


def pallas_gemm_chain(a, w1, w2, *, leaky, out_dtype=jnp.bfloat16):
    """leaky(leaky(A @ W1) @ W2) in one kernel (1x1 conv fused onto its producer)."""
    M, K = a.shape
    Nh, N = w1.shape[1], w2.shape[1]
    a = a.astype(jnp.bfloat16)
    w1 = w1.astype(jnp.bfloat16)
    w2 = w2.astype(jnp.bfloat16)

    budget, limit = _vmem_budget()
    per_row = K * 2 + Nh * (2 + 4) + N * (4 + jnp.dtype(out_dtype).itemsize)
    fixed = 2 * (K * Nh + Nh * N) * 2
    tm, m_pad = _choose_tiling(M, per_row, fixed, budget)
    if m_pad != M:
        a = jnp.pad(a, ((0, m_pad - M), (0, 0)))

    out = pl.pallas_call(
        functools.partial(_gemm_chain_kernel, leaky=leaky),
        out_shape=jax.ShapeDtypeStruct((m_pad, N), out_dtype),
        grid=(m_pad // tm,),
        in_specs=[pl.BlockSpec((tm, K), lambda i: (i, 0)),
                  pl.BlockSpec((K, Nh), lambda i: (0, 0)),
                  pl.BlockSpec((Nh, N), lambda i: (0, 0))],
        out_specs=pl.BlockSpec((tm, N), lambda i: (i, 0)),
        compiler_params=_compiler_params(limit),
    )(a, w1, w2)
    return out if m_pad == M else out[:M]


# --------------------- conv-as-GEMM (NHWC, true-channel K) -------------------

def _pad_k(a, k_true):
    return jnp.pad(a, ((0, 0), (0, _round_up(k_true, LANE) - k_true)))


def conv3x3_gemm(x, wmat, d, c_in, *, leaky=None, residual=None):
    """Conv2d(k=3, stride=1, dilation=d, padding=d), optional fused +residual."""
    B, H, W, _ = x.shape
    xs = x[..., :c_in]                                   # true channels only
    xp = jnp.pad(xs, ((0, 0), (d, d), (d, d), (0, 0)))
    taps = [xp[:, ky * d:ky * d + H, kx * d:kx * d + W, :]
            for ky in range(3) for kx in range(3)]
    a = jnp.concatenate(taps, axis=-1).reshape(B * H * W, 9 * c_in)
    a = _pad_k(a, 9 * c_in)                              # pad total K once
    res = None if residual is None else residual.reshape(B * H * W,
                                                         residual.shape[-1])
    y = pallas_gemm([a], [wmat], leaky=leaky, residual=res)
    return y.reshape(B, H, W, wmat.shape[1])


def ang_branch(x, w1, w2, r, C):
    """Conv(k=r,s=r) -> LReLU -> 1x1 -> LReLU -> PixelShuffle(r); convs fused."""
    AngC = C // 4
    AngP = _round_up(AngC, LANE)
    B, H, W, _ = x.shape
    h, w = H // r, W // r
    xs = x[..., :C]
    a = (xs.reshape(B, h, r, w, r, C)
           .transpose(0, 1, 3, 2, 4, 5)
           .reshape(B * h * w, r * r * C))
    a = _pad_k(a, r * r * C)
    y = pallas_gemm_chain(a, w1, w2, leaky=LEAKY_SLOPE)
    y = y.reshape(B, h, w, -1)[..., :r * r * AngC]
    # PixelShuffle: out[b, hh*r+i, ww*r+j, c] = y[b, hh, ww, c*r*r + i*r + j]
    t = y.reshape(B, h, w, AngC, r, r).transpose(0, 1, 4, 2, 5, 3)
    out = t.reshape(B, h * r, w * r, AngC)
    return jnp.pad(out, ((0, 0), (0, 0), (0, 0), (0, AngP - AngC)))


def epi_branches(x, w1, w2, r, C):
    """Both EPI branches (horizontal + vertical) in ONE fused GEMM-chain call.

    Horizontal: Conv(k=[1,r*r], s=[1,r], p=[0,r(r-1)/2]) -> LReLU -> 1x1 ->
    LReLU -> PixelShuffle1D(r).  The vertical branch is the same op applied to
    the H<->W permuted input; its A matrix is built directly from x with
    H-strided taps (no full-tensor transposes).
    """
    EpiC = C // 2
    EpiP = _round_up(EpiC, LANE)
    B, H, W, _ = x.shape
    pad = r * (r - 1) // 2
    xs = x[..., :C]

    # Horizontal taps (along W).
    xph = jnp.pad(xs, ((0, 0), (0, 0), (pad, pad), (0, 0)))
    wout = (W + 2 * pad - r * r) // r + 1
    taps_h = [xph[:, :, k:k + r * (wout - 1) + 1:r, :] for k in range(r * r)]
    a_h = jnp.concatenate(taps_h, axis=-1).reshape(B * H * wout, r * r * C)

    # Vertical taps (along H) -- replaces the two full-tensor transposes.
    xpv = jnp.pad(xs, ((0, 0), (pad, pad), (0, 0), (0, 0)))
    hout = (H + 2 * pad - r * r) // r + 1
    taps_v = [xpv[:, k:k + r * (hout - 1) + 1:r, :, :] for k in range(r * r)]
    a_v = jnp.concatenate(taps_v, axis=-1).reshape(B * hout * W, r * r * C)

    mh = a_h.shape[0]
    a = _pad_k(jnp.concatenate([a_h, a_v], axis=0), r * r * C)
    y = pallas_gemm_chain(a, w1, w2, leaky=LEAKY_SLOPE)

    y_h = y[:mh].reshape(B, H, wout, -1)[..., :r * EpiC]
    y_v = y[mh:].reshape(B, hout, W, -1)[..., :r * EpiC]

    # PixelShuffle1D along W: out[b, h, ww*r+f, c] = y_h[b, h, ww, f*EpiC + c]
    fea_h = y_h.reshape(B, H, wout, r, EpiC).reshape(B, H, wout * r, EpiC)
    # Vertical branch: out[b, hh*r+f, w, c] = y_v[b, hh, w, f*EpiC + c]
    fea_v = (y_v.reshape(B, hout, W, r, EpiC)
                .transpose(0, 1, 3, 2, 4)
                .reshape(B, hout * r, W, EpiC))

    pad_c = ((0, 0), (0, 0), (0, 0), (0, EpiP - EpiC))
    return jnp.pad(fea_h, pad_c), jnp.pad(fea_v, pad_c)


# ------------------------------ model forward --------------------------------

def disentg_block(x, p, *, r, C):
    B, H, W, _ = x.shape

    feaSpa = conv3x3_gemm(x, p["spa1"], r, C, leaky=LEAKY_SLOPE)
    feaSpa = conv3x3_gemm(feaSpa, p["spa2"], r, C, leaky=LEAKY_SLOPE)
    feaAng = ang_branch(x, p["ang1"], p["ang2"], r, C)
    feaEpiH, feaEpiV = epi_branches(x, p["epi1"], p["epi2"], r, C)

    # fuse1 (1x1 over the concat) as a 4-way accumulated GEMM: no concat in HBM.
    M = B * H * W
    a_list = [feaSpa.reshape(M, -1), feaAng.reshape(M, -1),
              feaEpiH.reshape(M, -1), feaEpiV.reshape(M, -1)]
    y = pallas_gemm(a_list, p["fuse1"], leaky=LEAKY_SLOPE)
    y = y.reshape(B, H, W, -1)

    # fuse2 (dilated 3x3) with the residual (+x) fused into the epilogue.
    return conv3x3_gemm(y, p["fuse2"], r, C, leaky=None, residual=x)


def disentg_group(x_nchw, params, *, r, C):
    Cp = _round_up(C, LANE)
    x = jnp.transpose(x_nchw, (0, 2, 3, 1)).astype(jnp.bfloat16)
    x = jnp.pad(x, ((0, 0), (0, 0), (0, 0), (0, Cp - C)))

    buf = x
    for p in params["blocks"]:
        buf = disentg_block(buf, p, r=r, C=C)

    out = conv3x3_gemm(buf, params["conv"], r, C, leaky=None, residual=x)
    out = out[..., :C]
    return jnp.transpose(out, (0, 3, 1, 2)).astype(x_nchw.dtype)


# ------------------------- parameter preparation -----------------------------

def _to_gemm_weight(w, cout_pad, cin_pad=None):
    """(Cout, Cin, kh, kw) torch weight -> (round_up(kh*kw*Cin', 128), cout_pad).

    cin_pad=None packs the TRUE Cin per tap and pads the total K once (matches
    the true-channel im2col A matrices).  cin_pad=<p> pads Cin per tap first
    (used for weights whose GEMM input is a lane-padded activation).
    """
    Cout, Cin, kh, kw = w.shape
    wt = jnp.transpose(w, (2, 3, 1, 0))                     # (kh, kw, Cin, Cout)
    if cin_pad is not None:
        wt = jnp.pad(wt, ((0, 0), (0, 0), (0, cin_pad - Cin), (0, 0)))
        Cin = cin_pad
    wt = wt.reshape(kh * kw * Cin, Cout)
    K = kh * kw * Cin
    Kp = _round_up(K, LANE)
    wt = jnp.pad(wt, ((0, Kp - K), (0, cout_pad - Cout)))
    return wt.astype(jnp.bfloat16)


def init_params(key, n_block, r, C):
    """Raw weights in PyTorch (Cout, Cin, kh, kw) layout."""
    SpaC, AngC, EpiC = C, C // 4, C // 2

    def nrm(k, shape):
        return jax.random.normal(k, shape, dtype=jnp.float32) * 0.05

    blocks = []
    for i in range(n_block):
        ks = jax.random.split(jax.random.fold_in(key, i), 8)
        blocks.append({
            "spa1":  nrm(ks[0], (SpaC, C, 3, 3)),
            "spa2":  nrm(ks[1], (SpaC, SpaC, 3, 3)),
            "ang1":  nrm(ks[2], (AngC, C, r, r)),
            "ang2":  nrm(ks[3], (r * r * AngC, AngC, 1, 1)),
            "epi1":  nrm(ks[4], (EpiC, C, 1, r * r)),
            "epi2":  nrm(ks[5], (r * EpiC, EpiC, 1, 1)),
            "fuse1": nrm(ks[6], (C, SpaC + AngC + 2 * EpiC, 1, 1)),
            "fuse2": nrm(ks[7], (C, C, 3, 3)),
        })
    conv = nrm(jax.random.fold_in(key, n_block), (C, C, 3, 3))
    return {"blocks": blocks, "conv": conv}


def prepare_params(raw, r, C):
    """One-time conversion to lane-dense (K_pad, N_pad) bf16 GEMM layouts."""
    SpaC, AngC, EpiC = C, C // 4, C // 2
    Cp = _round_up(C, LANE)
    SpaP = _round_up(SpaC, LANE)
    AngP = _round_up(AngC, LANE)
    Ang2P = _round_up(r * r * AngC, LANE)
    EpiP = _round_up(EpiC, LANE)
    Epi2P = _round_up(r * EpiC, LANE)

    blocks = []
    for b in raw["blocks"]:
        fuse1_blocks = []
        off = 0
        for cin, cpad in [(SpaC, SpaP), (AngC, AngP), (EpiC, EpiP), (EpiC, EpiP)]:
            fuse1_blocks.append(
                _to_gemm_weight(b["fuse1"][:, off:off + cin], Cp, cin_pad=cpad))
            off += cin
        blocks.append({
            "spa1":  _to_gemm_weight(b["spa1"], SpaP),                 # K=9*C
            "spa2":  _to_gemm_weight(b["spa2"], SpaP),                 # K=9*SpaC
            "ang1":  _to_gemm_weight(b["ang1"], AngP),                 # K=r*r*C
            "ang2":  _to_gemm_weight(b["ang2"], Ang2P, cin_pad=AngP),
            "epi1":  _to_gemm_weight(b["epi1"], EpiP),                 # K=r*r*C
            "epi2":  _to_gemm_weight(b["epi2"], Epi2P, cin_pad=EpiP),
            "fuse1": fuse1_blocks,
            "fuse2": _to_gemm_weight(b["fuse2"], Cp),                  # K=9*C
        })
    return {"blocks": blocks, "conv": _to_gemm_weight(raw["conv"], Cp)}


# ----------------------------------- main -------------------------------------

if __name__ == "__main__":
    key = jax.random.PRNGKey(0)
    n_block, angRes, channels = 2, 2, 8
    B, H, W = 2, 8, 8                        # H, W divisible by angRes

    pkey, xkey = jax.random.split(key)
    raw = init_params(pkey, n_block, angRes, channels)
    params = prepare_params(raw, angRes, channels)
    x = jax.random.normal(xkey, (B, channels, H, W), dtype=jnp.float32)

    fwd = jax.jit(functools.partial(disentg_group, r=angRes, C=channels))
    y = fwd(x, params)
    jax.block_until_ready(y)

    assert y.shape == x.shape and y.dtype == x.dtype
    print("KERNEL_OK")
</pallas_src>

<mosaic_0001>
module attributes {stable_mosaic.version = 11 : i64} {
  func.func @_gemm_kernel(%arg0: i32, %arg1: memref<64x128xbf16, #tpu.memory_space<vmem>>, %arg2: memref<128x128xbf16, #tpu.memory_space<vmem>>, %arg3: memref<64x128xbf16, #tpu.memory_space<vmem>>) attributes {dimension_semantics = [#tpu.dimension_semantics<parallel>], iteration_bounds = array<i64: 2>, scalar_prefetch = 0 : i64, scratch_operands = 0 : i64, tpu.core_type = #tpu.core_type<tc>, window_params = [{transform_indices = @transform_0, window_bounds = array<i64: 64, 128>}, {pipeline_mode = #tpu.pipeline_mode<synchronous>, transform_indices = @transform_1, window_bounds = array<i64: 128, 128>}, {transform_indices = @transform_2, window_bounds = array<i64: 64, 128>}]} {
    %c0 = arith.constant 0 : index
    %c0_0 = arith.constant 0 : index
    %0 = vector.load %arg1[%c0, %c0_0] : memref<64x128xbf16, #tpu.memory_space<vmem>>, vector<64x128xbf16>
    %c0_1 = arith.constant 0 : index
    %c0_2 = arith.constant 0 : index
    %1 = vector.load %arg2[%c0_1, %c0_2] : memref<128x128xbf16, #tpu.memory_space<vmem>>, vector<128x128xbf16>
    %cst = arith.constant dense<0.000000e+00> : vector<64x128xf32>
    %2 = tpu.matmul %0, %1, %cst {dimension_numbers = #tpu.dot_dimension_numbers<[1], [0], [0], [1], [0, 0, 1, 1], [], []>} : vector<64x128xbf16>, vector<128x128xbf16>, vector<64x128xf32> -> vector<64x128xf32>
    %cst_3 = arith.constant 0.000000e+00 : f32
    %3 = vector.broadcast %cst_3 : f32 to vector<64x128xf32>
    %4 = arith.cmpf oge, %2, %3 : vector<64x128xf32>
    %cst_4 = arith.constant 1.000000e-01 : f32
    %5 = vector.broadcast %cst_4 : f32 to vector<64x128xf32>
    %6 = arith.mulf %2, %5 : vector<64x128xf32>
    %7 = arith.select %4, %2, %6 : vector<64x128xi1>, vector<64x128xf32>
    %8 = arith.truncf %7 : vector<64x128xf32> to vector<64x128xbf16>
    %c0_5 = arith.constant 0 : index
    %c0_6 = arith.constant 0 : index
    %9 = vector.load %arg3[%c0_5, %c0_6] : memref<64x128xbf16, #tpu.memory_space<vmem>>, vector<64x128xbf16>
    tpu.vector_store %arg3[%c0_5, %c0_6], %8 {strides = array<i32>} : memref<64x128xbf16, #tpu.memory_space<vmem>>, vector<64x128xbf16>,
    return
  }
  func.func @transform_0(%arg0: i32) -> (i32, i32) {
    %c0_i32 = arith.constant 0 : i32
    %c0_i32_0 = arith.constant 0 : i32
    return %arg0, %c0_i32 : i32, i32
  }
  func.func @transform_1(%arg0: i32) -> (i32, i32) {
    %c0_i32 = arith.constant 0 : i32
    %c0_i32_0 = arith.constant 0 : i32
    %c0_i32_1 = arith.constant 0 : i32
    return %c0_i32, %c0_i32_0 : i32, i32
  }
  func.func @transform_2(%arg0: i32) -> (i32, i32) {
    %c0_i32 = arith.constant 0 : i32
    %c0_i32_0 = arith.constant 0 : i32
    return %arg0, %c0_i32 : i32, i32
  }
}

module attributes {stable_mosaic.version = 11 : i64} {
  func.func @_gemm_chain_kernel(%arg0: i32, %arg1: memref<16x128xbf16, #tpu.memory_space<vmem>>, %arg2: memref<128x128xbf16, #tpu.memory_space<vmem>>, %arg3: memref<128x128xbf16, #tpu.memory_space<vmem>>, %arg4: memref<16x128xbf16, #tpu.memory_space<vmem>>) attributes {dimension_semantics = [#tpu.dimension_semantics<parallel>], iteration_bounds = array<i64: 2>, scalar_prefetch = 0 : i64, scratch_operands = 0 : i64, tpu.core_type = #tpu.core_type<tc>, window_params = [{transform_indices = @transform_0, window_bounds = array<i64: 16, 128>}, {pipeline_mode = #tpu.pipeline_mode<synchronous>, transform_indices = @transform_1, window_bounds = array<i64: 128, 128>}, {pipeline_mode = #tpu.pipeline_mode<synchronous>, transform_indices = @transform_2, window_bounds = array<i64: 128, 128>}, {transform_indices = @transform_3, window_bounds = array<i64: 16, 128>}]} {
    %c0 = arith.constant 0 : index
    %c0_0 = arith.constant 0 : index
    %0 = vector.load %arg1[%c0, %c0_0] : memref<16x128xbf16, #tpu.memory_space<vmem>>, vector<16x128xbf16>
    %c0_1 = arith.constant 0 : index
    %c0_2 = arith.constant 0 : index
    %1 = vector.load %arg2[%c0_1, %c0_2] : memref<128x128xbf16, #tpu.memory_space<vmem>>, vector<128x128xbf16>
    %cst = arith.constant dense<0.000000e+00> : vector<16x128xf32>
    %2 = tpu.matmul %0, %1, %cst {dimension_numbers = #tpu.dot_dimension_numbers<[1], [0], [0], [1], [0, 0, 1, 1], [], []>} : vector<16x128xbf16>, vector<128x128xbf16>, vector<16x128xf32> -> vector<16x128xf32>
    %cst_3 = arith.constant 0.000000e+00 : f32
    %3 = vector.broadcast %cst_3 : f32 to vector<16x128xf32>
    %4 = arith.cmpf oge, %2, %3 : vector<16x128xf32>
    %cst_4 = arith.constant 1.000000e-01 : f32
    %5 = vector.broadcast %cst_4 : f32 to vector<16x128xf32>
    %6 = arith.mulf %2, %5 : vector<16x128xf32>
    %7 = arith.select %4, %2, %6 : vector<16x128xi1>, vector<16x128xf32>
    %8 = arith.truncf %7 : vector<16x128xf32> to vector<16x128xbf16>
    %c0_5 = arith.constant 0 : index
    %c0_6 = arith.constant 0 : index
    %9 = vector.load %arg3[%c0_5, %c0_6] : memref<128x128xbf16, #tpu.memory_space<vmem>>, vector<128x128xbf16>
    %cst_7 = arith.constant dense<0.000000e+00> : vector<16x128xf32>
    %10 = tpu.matmul %8, %9, %cst_7 {dimension_numbers = #tpu.dot_dimension_numbers<[1], [0], [0], [1], [0, 0, 1, 1], [], []>} : vector<16x128xbf16>, vector<128x128xbf16>, vector<16x128xf32> -> vector<16x128xf32>
    %cst_8 = arith.constant 0.000000e+00 : f32
    %11 = vector.broadcast %cst_8 : f32 to vector<16x128xf32>
    %12 = arith.cmpf oge, %10, %11 : vector<16x128xf32>
    %cst_9 = arith.constant 1.000000e-01 : f32
    %13 = vector.broadcast %cst_9 : f32 to vector<16x128xf32>
    %14 = arith.mulf %10, %13 : vector<16x128xf32>
    %15 = arith.select %12, %10, %14 : vector<16x128xi1>, vector<16x128xf32>
    %16 = arith.truncf %15 : vector<16x128xf32> to vector<16x128xbf16>
    %c0_10 = arith.constant 0 : index
    %c0_11 = arith.constant 0 : index
    %17 = vector.load %arg4[%c0_10, %c0_11] : memref<16x128xbf16, #tpu.memory_space<vmem>>, vector<16x128xbf16>
    tpu.vector_store %arg4[%c0_10, %c0_11], %16 {strides = array<i32>} : memref<16x128xbf16, #tpu.memory_space<vmem>>, vector<16x128xbf16>,
    return
  }
  func.func @transform_0(%arg0: i32) -> (i32, i32) {
    %c0_i32 = arith.constant 0 : i32
    %c0_i32_0 = arith.constant 0 : i32
    return %arg0, %c0_i32 : i32, i32
  }
  func.func @transform_1(%arg0: i32) -> (i32, i32) {
    %c0_i32 = arith.constant 0 : i32
    %c0_i32_0 = arith.constant 0 : i32
    %c0_i32_1 = arith.constant 0 : i32
    return %c0_i32, %c0_i32_0 : i32, i32
  }
  func.func @transform_2(%arg0: i32) -> (i32, i32) {
    %c0_i32 = arith.constant 0 : i32
    %c0_i32_0 = arith.constant 0 : i32
    %c0_i32_1 = arith.constant 0 : i32
    return %c0_i32, %c0_i32_0 : i32, i32
  }
  func.func @transform_3(%arg0: i32) -> (i32, i32) {
    %c0_i32 = arith.constant 0 : i32
    %c0_i32_0 = arith.constant 0 : i32
    return %arg0, %c0_i32 : i32, i32
  }
}

module attributes {stable_mosaic.version = 11 : i64} {
  func.func @_gemm_chain_kernel(%arg0: i32, %arg1: memref<64x128xbf16, #tpu.memory_space<vmem>>, %arg2: memref<128x128xbf16, #tpu.memory_space<vmem>>, %arg3: memref<128x128xbf16, #tpu.memory_space<vmem>>, %arg4: memref<64x128xbf16, #tpu.memory_space<vmem>>) attributes {dimension_semantics = [#tpu.dimension_semantics<parallel>], iteration_bounds = array<i64: 2>, scalar_prefetch = 0 : i64, scratch_operands = 0 : i64, tpu.core_type = #tpu.core_type<tc>, window_params = [{transform_indices = @transform_0, window_bounds = array<i64: 64, 128>}, {pipeline_mode = #tpu.pipeline_mode<synchronous>, transform_indices = @transform_1, window_bounds = array<i64: 128, 128>}, {pipeline_mode = #tpu.pipeline_mode<synchronous>, transform_indices = @transform_2, window_bounds = array<i64: 128, 128>}, {transform_indices = @transform_3, window_bounds = array<i64: 64, 128>}]} {
    %c0 = arith.constant 0 : index
    %c0_0 = arith.constant 0 : index
    %0 = vector.load %arg1[%c0, %c0_0] : memref<64x128xbf16, #tpu.memory_space<vmem>>, vector<64x128xbf16>
    %c0_1 = arith.constant 0 : index
    %c0_2 = arith.constant 0 : index
    %1 = vector.load %arg2[%c0_1, %c0_2] : memref<128x128xbf16, #tpu.memory_space<vmem>>, vector<128x128xbf16>
    %cst = arith.constant dense<0.000000e+00> : vector<64x128xf32>
    %2 = tpu.matmul %0, %1, %cst {dimension_numbers = #tpu.dot_dimension_numbers<[1], [0], [0], [1], [0, 0, 1, 1], [], []>} : vector<64x128xbf16>, vector<128x128xbf16>, vector<64x128xf32> -> vector<64x128xf32>
    %cst_3 = arith.constant 0.000000e+00 : f32
    %3 = vector.broadcast %cst_3 : f32 to vector<64x128xf32>
    %4 = arith.cmpf oge, %2, %3 : vector<64x128xf32>
    %cst_4 = arith.constant 1.000000e-01 : f32
    %5 = vector.broadcast %cst_4 : f32 to vector<64x128xf32>
    %6 = arith.mulf %2, %5 : vector<64x128xf32>
    %7 = arith.select %4, %2, %6 : vector<64x128xi1>, vector<64x128xf32>
    %8 = arith.truncf %7 : vector<64x128xf32> to vector<64x128xbf16>
    %c0_5 = arith.constant 0 : index
    %c0_6 = arith.constant 0 : index
    %9 = vector.load %arg3[%c0_5, %c0_6] : memref<128x128xbf16, #tpu.memory_space<vmem>>, vector<128x128xbf16>
    %cst_7 = arith.constant dense<0.000000e+00> : vector<64x128xf32>
    %10 = tpu.matmul %8, %9, %cst_7 {dimension_numbers = #tpu.dot_dimension_numbers<[1], [0], [0], [1], [0, 0, 1, 1], [], []>} : vector<64x128xbf16>, vector<128x128xbf16>, vector<64x128xf32> -> vector<64x128xf32>
    %cst_8 = arith.constant 0.000000e+00 : f32
    %11 = vector.broadcast %cst_8 : f32 to vector<64x128xf32>
    %12 = arith.cmpf oge, %10, %11 : vector<64x128xf32>
    %cst_9 = arith.constant 1.000000e-01 : f32
    %13 = vector.broadcast %cst_9 : f32 to vector<64x128xf32>
    %14 = arith.mulf %10, %13 : vector<64x128xf32>
    %15 = arith.select %12, %10, %14 : vector<64x128xi1>, vector<64x128xf32>
    %16 = arith.truncf %15 : vector<64x128xf32> to vector<64x128xbf16>
    %c0_10 = arith.constant 0 : index
    %c0_11 = arith.constant 0 : index
    %17 = vector.load %arg4[%c0_10, %c0_11] : memref<64x128xbf16, #tpu.memory_space<vmem>>, vector<64x128xbf16>
    tpu.vector_store %arg4[%c0_10, %c0_11], %16 {strides = array<i32>} : memref<64x128xbf16, #tpu.memory_space<vmem>>, vector<64x128xbf16>,
    return
  }
  func.func @transform_0(%arg0: i32) -> (i32, i32) {
    %c0_i32 = arith.constant 0 : i32
    %c0_i32_0 = arith.constant 0 : i32
    return %arg0, %c0_i32 : i32, i32
  }
  func.func @transform_1(%arg0: i32) -> (i32, i32) {
    %c0_i32 = arith.constant 0 : i32
    %c0_i32_0 = arith.constant 0 : i32
    %c0_i32_1 = arith.constant 0 : i32
    return %c0_i32, %c0_i32_0 : i32, i32
  }
  func.func @transform_2(%arg0: i32) -> (i32, i32) {
    %c0_i32 = arith.constant 0 : i32
    %c0_i32_0 = arith.constant 0 : i32
    %c0_i32_1 = arith.constant 0 : i32
    return %c0_i32, %c0_i32_0 : i32, i32
  }
  func.func @transform_3(%arg0: i32) -> (i32, i32) {
    %c0_i32 = arith.constant 0 : i32
    %c0_i32_0 = arith.constant 0 : i32
    return %arg0, %c0_i32 : i32, i32
  }
}

module attributes {stable_mosaic.version = 11 : i64} {
  func.func @_gemm_kernel(%arg0: i32, %arg1: memref<64x128xbf16, #tpu.memory_space<vmem>>, %arg2: memref<64x128xbf16, #tpu.memory_space<vmem>>, %arg3: memref<64x128xbf16, #tpu.memory_space<vmem>>, %arg4: memref<64x128xbf16, #tpu.memory_space<vmem>>, %arg5: memref<128x128xbf16, #tpu.memory_space<vmem>>, %arg6: memref<128x128xbf16, #tpu.memory_space<vmem>>, %arg7: memref<128x128xbf16, #tpu.memory_space<vmem>>, %arg8: memref<128x128xbf16, #tpu.memory_space<vmem>>, %arg9: memref<64x128xbf16, #tpu.memory_space<vmem>>) attributes {dimension_semantics = [#tpu.dimension_semantics<parallel>], iteration_bounds = array<i64: 2>, scalar_prefetch = 0 : i64, scratch_operands = 0 : i64, tpu.core_type = #tpu.core_type<tc>, window_params = [{transform_indices = @transform_0, window_bounds = array<i64: 64, 128>}, {transform_indices = @transform_1, window_bounds = array<i64: 64, 128>}, {transform_indices = @transform_2, window_bounds = array<i64: 64, 128>}, {transform_indices = @transform_3, window_bounds = array<i64: 64, 128>}, {pipeline_mode = #tpu.pipeline_mode<synchronous>, transform_indices = @transform_4, window_bounds = array<i64: 128, 128>}, {pipeline_mode = #tpu.pipeline_mode<synchronous>, transform_indices = @transform_5, window_bounds = array<i64: 128, 128>}, {pipeline_mode = #tpu.pipeline_mode<synchronous>, transform_indices = @transform_6, window_bounds = array<i64: 128, 128>}, {pipeline_mode = #tpu.pipeline_mode<synchronous>, transform_indices = @transform_7, window_bounds = array<i64: 128, 128>}, {transform_indices = @transform_8, window_bounds = array<i64: 64, 128>}]} {
    %c0 = arith.constant 0 : index
    %c0_0 = arith.constant 0 : index
    %0 = vector.load %arg1[%c0, %c0_0] : memref<64x128xbf16, #tpu.memory_space<vmem>>, vector<64x128xbf16>
    %c0_1 = arith.constant 0 : index
    %c0_2 = arith.constant 0 : index
    %1 = vector.load %arg5[%c0_1, %c0_2] : memref<128x128xbf16, #tpu.memory_space<vmem>>, vector<128x128xbf16>
    %cst = arith.constant dense<0.000000e+00> : vector<64x128xf32>
    %2 = tpu.matmul %0, %1, %cst {dimension_numbers = #tpu.dot_dimension_numbers<[1], [0], [0], [1], [0, 0, 1, 1], [], []>} : vector<64x128xbf16>, vector<128x128xbf16>, vector<64x128xf32> -> vector<64x128xf32>
    %c0_3 = arith.constant 0 : index
    %c0_4 = arith.constant 0 : index
    %3 = vector.load %arg2[%c0_3, %c0_4] : memref<64x128xbf16, #tpu.memory_space<vmem>>, vector<64x128xbf16>
    %c0_5 = arith.constant 0 : index
    %c0_6 = arith.constant 0 : index
    %4 = vector.load %arg6[%c0_5, %c0_6] : memref<128x128xbf16, #tpu.memory_space<vmem>>, vector<128x128xbf16>
    %cst_7 = arith.constant dense<0.000000e+00> : vector<64x128xf32>
    %5 = tpu.matmul %3, %4, %cst_7 {dimension_numbers = #tpu.dot_dimension_numbers<[1], [0], [0], [1], [0, 0, 1, 1], [], []>} : vector<64x128xbf16>, vector<128x128xbf16>, vector<64x128xf32> -> vector<64x128xf32>
    %6 = arith.addf %2, %5 : vector<64x128xf32>
    %c0_8 = arith.constant 0 : index
    %c0_9 = arith.constant 0 : index
    %7 = vector.load %arg3[%c0_8, %c0_9] : memref<64x128xbf16, #tpu.memory_space<vmem>>, vector<64x128xbf16>
    %c0_10 = arith.constant 0 : index
    %c0_11 = arith.constant 0 : index
    %8 = vector.load %arg7[%c0_10, %c0_11] : memref<128x128xbf16, #tpu.memory_space<vmem>>, vector<128x128xbf16>
    %cst_12 = arith.constant dense<0.000000e+00> : vector<64x128xf32>
    %9 = tpu.matmul %7, %8, %cst_12 {dimension_numbers = #tpu.dot_dimension_numbers<[1], [0], [0], [1], [0, 0, 1, 1], [], []>} : vector<64x128xbf16>, vector<128x128xbf16>, vector<64x128xf32> -> vector<64x128xf32>
    %10 = arith.addf %6, %9 : vector<64x128xf32>
    %c0_13 = arith.constant 0 : index
    %c0_14 = arith.constant 0 : index
    %11 = vector.load %arg4[%c0_13, %c0_14] : memref<64x128xbf16, #tpu.memory_space<vmem>>, vector<64x128xbf16>
    %c0_15 = arith.constant 0 : index
    %c0_16 = arith.constant 0 : index
    %12 = vector.load %arg8[%c0_15, %c0_16] : memref<128x128xbf16, #tpu.memory_space<vmem>>, vector<128x128xbf16>
    %cst_17 = arith.constant dense<0.000000e+00> : vector<64x128xf32>
    %13 = tpu.matmul %11, %12, %cst_17 {dimension_numbers = #tpu.dot_dimension_numbers<[1], [0], [0], [1], [0, 0, 1, 1], [], []>} : vector<64x128xbf16>, vector<128x128xbf16>, vector<64x128xf32> -> vector<64x128xf32>
    %14 = arith.addf %10, %13 : vector<64x128xf32>
    %cst_18 = arith.constant 0.000000e+00 : f32
    %15 = vector.broadcast %cst_18 : f32 to vector<64x128xf32>
    %16 = arith.cmpf oge, %14, %15 : vector<64x128xf32>
    %cst_19 = arith.constant 1.000000e-01 : f32
    %17 = vector.broadcast %cst_19 : f32 to vector<64x128xf32>
    %18 = arith.mulf %14, %17 : vector<64x128xf32>
    %19 = arith.select %16, %14, %18 : vector<64x128xi1>, vector<64x128xf32>
    %20 = arith.truncf %19 : vector<64x128xf32> to vector<64x128xbf16>
    %c0_20 = arith.constant 0 : index
    %c0_21 = arith.constant 0 : index
    %21 = vector.load %arg9[%c0_20, %c0_21] : memref<64x128xbf16, #tpu.memory_space<vmem>>, vector<64x128xbf16>
    tpu.vector_store %arg9[%c0_20, %c0_21], %20 {strides = array<i32>} : memref<64x128xbf16, #tpu.memory_space<vmem>>, vector<64x128xbf16>,
    return
  }
  func.func @transform_0(%arg0: i32) -> (i32, i32) {
    %c0_i32 = arith.constant 0 : i32
    %c0_i32_0 = arith.constant 0 : i32
    return %arg0, %c0_i32 : i32, i32
  }
  func.func @transform_1(%arg0: i32) -> (i32, i32) {
    %c0_i32 = arith.constant 0 : i32
    %c0_i32_0 = arith.constant 0 : i32
    return %arg0, %c0_i32 : i32, i32
  }
  func.func @transform_2(%arg0: i32) -> (i32, i32) {
    %c0_i32 = arith.constant 0 : i32
    %c0_i32_0 = arith.constant 0 : i32
    return %arg0, %c0_i32 : i32, i32
  }
  func.func @transform_3(%arg0: i32) -> (i32, i32) {
    %c0_i32 = arith.constant 0 : i32
    %c0_i32_0 = arith.constant 0 : i32
    return %arg0, %c0_i32 : i32, i32
  }
  func.func @transform_4(%arg0: i32) -> (i32, i32) {
    %c0_i32 = arith.constant 0 : i32
    %c0_i32_0 = arith.constant 0 : i32
    %c0_i32_1 = arith.constant 0 : i32
    return %c0_i32, %c0_i32_0 : i32, i32
  }
  func.func @transform_5(%arg0: i32) -> (i32, i32) {
    %c0_i32 = arith.constant 0 : i32
    %c0_i32_0 = arith.constant 0 : i32
    %c0_i32_1 = arith.constant 0 : i32
    return %c0_i32, %c0_i32_0 : i32, i32
  }
  func.func @transform_6(%arg0: i32) -> (i32, i32) {
    %c0_i32 = arith.constant 0 : i32
    %c0_i32_0 = arith.constant 0 : i32
    %c0_i32_1 = arith.constant 0 : i32
    return %c0_i32, %c0_i32_0 : i32, i32
  }
  func.func @transform_7(%arg0: i32) -> (i32, i32) {
    %c0_i32 = arith.constant 0 : i32
    %c0_i32_0 = arith.constant 0 : i32
    %c0_i32_1 = arith.constant 0 : i32
    return %c0_i32, %c0_i32_0 : i32, i32
  }
  func.func @transform_8(%arg0: i32) -> (i32, i32) {
    %c0_i32 = arith.constant 0 : i32
    %c0_i32_0 = arith.constant 0 : i32
    return %arg0, %c0_i32 : i32, i32
  }
}

module attributes {stable_mosaic.version = 11 : i64} {
  func.func @_gemm_kernel(%arg0: i32, %arg1: memref<64x128xbf16, #tpu.memory_space<vmem>>, %arg2: memref<128x128xbf16, #tpu.memory_space<vmem>>, %arg3: memref<64x128xbf16, #tpu.memory_space<vmem>>, %arg4: memref<64x128xbf16, #tpu.memory_space<vmem>>) attributes {dimension_semantics = [#tpu.dimension_semantics<parallel>], iteration_bounds = array<i64: 2>, scalar_prefetch = 0 : i64, scratch_operands = 0 : i64, tpu.core_type = #tpu.core_type<tc>, window_params = [{transform_indices = @transform_0, window_bounds = array<i64: 64, 128>}, {pipeline_mode = #tpu.pipeline_mode<synchronous>, transform_indices = @transform_1, window_bounds = array<i64: 128, 128>}, {transform_indices = @transform_2, window_bounds = array<i64: 64, 128>}, {transform_indices = @transform_3, window_bounds = array<i64: 64, 128>}]} {
    %c0 = arith.constant 0 : index
    %c0_0 = arith.constant 0 : index
    %0 = vector.load %arg1[%c0, %c0_0] : memref<64x128xbf16, #tpu.memory_space<vmem>>, vector<64x128xbf16>
    %c0_1 = arith.constant 0 : index
    %c0_2 = arith.constant 0 : index
    %1 = vector.load %arg2[%c0_1, %c0_2] : memref<128x128xbf16, #tpu.memory_space<vmem>>, vector<128x128xbf16>
    %cst = arith.constant dense<0.000000e+00> : vector<64x128xf32>
    %2 = tpu.matmul %0, %1, %cst {dimension_numbers = #tpu.dot_dimension_numbers<[1], [0], [0], [1], [0, 0, 1, 1], [], []>} : vector<64x128xbf16>, vector<128x128xbf16>, vector<64x128xf32> -> vector<64x128xf32>
    %c0_3 = arith.constant 0 : index
    %c0_4 = arith.constant 0 : index
    %3 = vector.load %arg3[%c0_3, %c0_4] : memref<64x128xbf16, #tpu.memory_space<vmem>>, vector<64x128xbf16>
    %4 = arith.extf %3 : vector<64x128xbf16> to vector<64x128xf32>
    %5 = arith.addf %2, %4 : vector<64x128xf32>
    %6 = arith.truncf %5 : vector<64x128xf32> to vector<64x128xbf16>
    %c0_5 = arith.constant 0 : index
    %c0_6 = arith.constant 0 : index
    %7 = vector.load %arg4[%c0_5, %c0_6] : memref<64x128xbf16, #tpu.memory_space<vmem>>, vector<64x128xbf16>
    tpu.vector_store %arg4[%c0_5, %c0_6], %6 {strides = array<i32>} : memref<64x128xbf16, #tpu.memory_space<vmem>>, vector<64x128xbf16>,
    return
  }
  func.func @transform_0(%arg0: i32) -> (i32, i32) {
    %c0_i32 = arith.constant 0 : i32
    %c0_i32_0 = arith.constant 0 : i32
    return %arg0, %c0_i32 : i32, i32
  }
  func.func @transform_1(%arg0: i32) -> (i32, i32) {
    %c0_i32 = arith.constant 0 : i32
    %c0_i32_0 = arith.constant 0 : i32
    %c0_i32_1 = arith.constant 0 : i32
    return %c0_i32, %c0_i32_0 : i32, i32
  }
  func.func @transform_2(%arg0: i32) -> (i32, i32) {
    %c0_i32 = arith.constant 0 : i32
    %c0_i32_0 = arith.constant 0 : i32
    return %arg0, %c0_i32 : i32, i32
  }
  func.func @transform_3(%arg0: i32) -> (i32, i32) {
    %c0_i32 = arith.constant 0 : i32
    %c0_i32_0 = arith.constant 0 : i32
    return %arg0, %c0_i32 : i32, i32
  }
}

</mosaic_0001>

<llo_original>
// kernel: disentg_group.13
$region0: #{disentg_group.13}
  #allocation0 [shape = 'u32[]', space=smem, size = 0x4, offset = 0x4, fixed_abs, tag = 'smem constant byte address 0x4 - core index']
  #allocation1 [shape = 'u32[144,128]{1,0:T(1,128)}', space=vmem, size = 0x12000, scoped, tag = 'internal scratch']
  %s0 = inlined_call_operand.vmem [shape: bf16[128,128], index: 0, kind: input, shape index: {}]
  %s1 = inlined_call_operand.vmem [shape: bf16[128,128], index: 1, kind: input, shape index: {}]
  %s2 = inlined_call_operand.vmem [shape: bf16[128,128], index: 2, kind: output, shape index: {}]
  %s3 = sld [smem:[#allocation0]]
  $region41: #{disentg_group.13} parent=0
    _
  %s5 = ssub.s32 1, %s3
  %s6 = scalar_select 0, %s5, %s3
  loop: start=0, step=1, limit=4
  $region2: #{disentg_group.13} parent=0 // loop_pre_header
    _
  $region3: #{disentg_group.13} parent=0 // loop_header
    %s8 = sphi 0, %s12
    %p9 = scmp.ge.s32.totalorder %s8, 4
    %s18 = sphi 0, %s20
    %s21 = sphi 0, %s18
    %s22 = sphi 0, %s21
    %s38 = sphi 0, %s22
    %s42 = sphi 0, %s42
    %s44 = sphi 0, %s42
    %s45 = sphi 0, %s44
    %s59 = sphi 0, %s45
    %s65 = sphi 0, %s67
    %s68 = sphi 0, %s65
    %s69 = sphi 0, %s68
    %s85 = sphi 0, %s69
  $region4: #{disentg_group.13} parent=0 // loop_header_branch
    %11 = sbr.rel (%p9) target = $region8
  $region5: #{disentg_group.13} parent=0 // loop_body
    %s13 = ssub.s32 %s8, 1
    %s14 = ssub.s32 %s8, 2
    %s15 = sadd.s32 %s8, 1
    %s16 = ssub.s32 %s8, %s15
    %p17 = scmp.eq.s32.totalorder %s16, 0
    %s19 = sadd.s32 %s18, 1
    %s20 = scalar_select %p17, %s18, %s19
    %p23 = pneg %p17
    %p24 = scmp.eq.s32.totalorder %s8, 1
    %p25 = por %p23, %p24
    %p26 = scmp.ne.s32.totalorder %s18, %s21
    %p27 = scmp.eq.s32.totalorder %s8, 0
    %p28 = por %p26, %p27
    %p29 = scmp.ne.s32.totalorder %s18, %s21
    %p30 = scmp.eq.s32.totalorder %s13, 1
    %p31 = por %p29, %p30
    %p32 = scmp.ne.s32.totalorder %s21, %s22
    %p33 = scmp.eq.s32.totalorder %s13, 0
    %p34 = por %p32, %p33
    %p35 = scmp.ne.s32.totalorder %s21, %s22
    %p36 = scmp.eq.s32.totalorder %s14, 1
    %p37 = por %p35, %p36
    %p39 = scmp.ne.s32.totalorder %s22, %s38
    %p40 = scmp.eq.s32.totalorder %s14, 0
    %p41 = por %p39, %p40
    %s43 = sadd.s32 %s42, 1
    %p46 = scmp.eq.s32.totalorder %s8, 1
    %p47 = scmp.ne.s32.totalorder %s42, %s44
    %p48 = scmp.eq.s32.totalorder %s8, 0
    %p49 = por %p47, %p48
    %p50 = scmp.ne.s32.totalorder %s42, %s44
    %p51 = scmp.eq.s32.totalorder %s13, 1
    %p52 = por %p50, %p51
    %p53 = scmp.ne.s32.totalorder %s44, %s45
    %p54 = scmp.eq.s32.totalorder %s13, 0
    %p55 = por %p53, %p54
    %p56 = scmp.ne.s32.totalorder %s44, %s45
    %p57 = scmp.eq.s32.totalorder %s14, 1
    %p58 = por %p56, %p57
    %p60 = scmp.ne.s32.totalorder %s45, %s59
    %p61 = scmp.eq.s32.totalorder %s14, 0
    %p62 = por %p60, %p61
    %s63 = ssub.s32 %s8, %s15
    %p64 = scmp.eq.s32.totalorder %s63, 0
    %s66 = sadd.s32 %s65, 1
    %s67 = scalar_select %p64, %s65, %s66
    %p70 = pneg %p64
    %p71 = scmp.eq.s32.totalorder %s8, 1
    %p72 = por %p70, %p71
    %p73 = scmp.ne.s32.totalorder %s65, %s68
    %p74 = scmp.eq.s32.totalorder %s8, 0
    %p75 = por %p73, %p74
    %p76 = scmp.ne.s32.totalorder %s65, %s68
    %p77 = scmp.eq.s32.totalorder %s13, 1
    %p78 = por %p76, %p77
    %p79 = scmp.ne.s32.totalorder %s68, %s69
    %p80 = scmp.eq.s32.totalorder %s13, 0
    %p81 = por %p79, %p80
    %p82 = scmp.ne.s32.totalorder %s68, %s69
    %p83 = scmp.eq.s32.totalorder %s14, 1
    %p84 = por %p82, %p83
    %p86 = scmp.ne.s32.totalorder %s69, %s85
    %p87 = scmp.eq.s32.totalorder %s14, 0
    %p88 = por %p86, %p87
    %p89 = scmp.le.s32.totalorder 1, %s8
    %p90 = scmp.lt.s32.totalorder %s8, 3
    %p91 = pnand %p89, %p90
    %p92 = pneg %p91
    // Predicated region
    $region9: #{disentg_group.13} parent=5 // pred_check
      _
    $region10: #{disentg_group.13} parent=5 // pred_check_branch
      %94 = sbr.rel (%p91) target = $region12
    $region11: #{disentg_group.13} parent=5 // pred_region
      %s95 = ssub.s32 %s8, 1
      // Predicated region
      $region13: #{disentg_group.13} parent=11 // pred_check
        %p96 = pneg %p55
      $region14: #{disentg_group.13} parent=11 // pred_check_branch
        %98 = sbr.rel (%p96) target = $region16
      $region15: #{disentg_group.13} parent=11 // pred_region
        _
      $region16: #{disentg_group.13} parent=11 // pred_fallthru
        _
    $region12: #{disentg_group.13} parent=5 // pred_fallthru
      _
    %p99 = scmp.lt.s32.totalorder %s8, 2
    // Predicated region
    $region17: #{disentg_group.13} parent=5 // pred_check
      %p100 = pneg %p99
    $region18: #{disentg_group.13} parent=5 // pred_check_branch
      %102 = sbr.rel (%p100) target = $region20
    $region19: #{disentg_group.13} parent=5 // pred_region
      // Predicated region
      $region21: #{disentg_group.13} parent=19 // pred_check
        %p103 = pneg %p28
      $region22: #{disentg_group.13} parent=19 // pred_check_branch
        %105 = sbr.rel (%p103) target = $region24
      $region23: #{disentg_group.13} parent=19 // pred_region
        %s106 = smul.u32 8, %s8
        %p107 = scmp.lt.s32.totalorder %s106, 15
        %s108 = scalar_select %p107, %s106, 15
        %s109 = smul.addr %s108, 4
        %s110 = scalar_lea.vmem %s0, %s109
        %s111 = smul.u32 8, %s8
      $region24: #{disentg_group.13} parent=19 // pred_fallthru
        _
    $region20: #{disentg_group.13} parent=5 // pred_fallthru
      _
    %p112 = scmp.le.s32.totalorder 1, %s8
    %p113 = scmp.lt.s32.totalorder %s8, 3
    %p114 = pnand %p112, %p113
    %p115 = pneg %p114
    // Predicated region
    $region25: #{disentg_group.13} parent=5 // pred_check
      _
    $region26: #{disentg_group.13} parent=5 // pred_check_branch
      %117 = sbr.rel (%p114) target = $region28
    $region27: #{disentg_group.13} parent=5 // pred_region
      %s118 = ssub.s32 %s8, 1
      %s119 = smul.u32 8, %s13
      %p120 = scmp.lt.s32.totalorder %s119, 15
      %s121 = scalar_select %p120, %s119, 15
      %s122 = smul.addr %s121, 4
      %s123 = scalar_lea.vmem %s0, %s122
      %p124 = pneg %p34
      %p125 = pneg %p31
      %p126 = pneg %p55
      %p127 = pneg %p52
      %p128 = pneg %p81
      %p129 = pneg %p78
      %s130 = smul.u32 8, %s13
      %p131 = scmp.lt.s32.totalorder %s130, 15
      %s132 = scalar_select %p131, %s130, 15
      %s133 = smul.addr %s132, 4
      %s134 = scalar_lea.vmem %s2, %s133
      %s135 = smul.u32 8, %s13
      %p136 = scmp.lt.s32.totalorder %s135, 15
      %s137 = scalar_select %p136, %s135, 15
      %s138 = smul.addr %s137, 4
      %s139 = scalar_lea.vmem %s0, %s138
      %s140 = smul.u32 8, %s13
      %s141 = smul.u32 8, %s13
      %p142 = scmp.lt.s32.totalorder %s141, 15
      %s143 = scalar_select %p142, %s141, 15
      %s144 = smul.addr %s143, 4
      %s145 = scalar_lea.vmem %s2, %s144
      %s146 = smul.u32 8, %s13
      %v148 = vld [vmem:[%s139] sm:$0xf]
      %v149 = vld [vmem:[%s139 + $0x4] sm:$0xf]
      %v150 = vld [vmem:[%s139 + $0x8] sm:$0xf]
      %v151 = vld [vmem:[%s139 + $0xc] sm:$0xf]
      %v152 = vld [vmem:[%s139 + $0x10] sm:$0xf]
      %v153 = vld [vmem:[%s139 + $0x14] sm:$0xf]
      %v154 = vld [vmem:[%s139 + $0x18] sm:$0xf]
      %v155 = vld [vmem:[%s139 + $0x1c] sm:$0xf]
      %v156 = vld [vmem:[%s1] sm:$0xf]
      %v157 = vld [vmem:[%s1 + $0x4] sm:$0xf]
      %v158 = vld [vmem:[%s1 + $0x8] sm:$0xf]
      %v159 = vld [vmem:[%s1 + $0xc] sm:$0xf]
      %v160 = vld [vmem:[%s1 + $0x10] sm:$0xf]
      %v161 = vld [vmem:[%s1 + $0x14] sm:$0xf]
      %v162 = vld [vmem:[%s1 + $0x18] sm:$0xf]
      %v163 = vld [vmem:[%s1 + $0x1c] sm:$0xf]
      %v164 = vld [vmem:[%s1 + $0x20] sm:$0xf]
      %v165 = vld [vmem:[%s1 + $0x24] sm:$0xf]
      %v166 = vld [vmem:[%s1 + $0x28] sm:$0xf]
      %v167 = vld [vmem:[%s1 + $0x2c] sm:$0xf]
      %v168 = vld [vmem:[%s1 + $0x30] sm:$0xf]
      %v169 = vld [vmem:[%s1 + $0x34] sm:$0xf]
      %v170 = vld [vmem:[%s1 + $0x38] sm:$0xf]
      %v171 = vld [vmem:[%s1 + $0x3c] sm:$0xf]
      %v180 = vunpack.c.l.b16 %v148
      %v181 = vunpack.c.l.b16 %v149
      %v182 = vunpack.c.l.b16 %v150
      %v183 = vunpack.c.l.b16 %v151
      %v184 = vunpack.c.l.b16 %v152
      %v185 = vunpack.c.l.b16 %v153
      %v186 = vunpack.c.l.b16 %v154
      %v187 = vunpack.c.l.b16 %v155
      %v188 = vpack.c.b16 %v181, %v180
      %v189 = vpack.c.b16 %v183, %v182
      %v190 = vpack.c.b16 %v185, %v184
      %v191 = vpack.c.b16 %v187, %v186
      %v212 = vunpack.c.l.b16 %v156
      %v213 = vunpack.c.l.b16 %v157
      %v214 = vunpack.c.l.b16 %v158
      %v215 = vunpack.c.l.b16 %v159
      %v216 = vunpack.c.l.b16 %v160
      %v217 = vunpack.c.l.b16 %v161
      %v218 = vunpack.c.l.b16 %v162
      %v219 = vunpack.c.l.b16 %v163
      %v220 = vunpack.c.l.b16 %v164
      %v221 = vunpack.c.l.b16 %v165
      %v222 = vunpack.c.l.b16 %v166
      %v223 = vunpack.c.l.b16 %v167
      %v224 = vunpack.c.l.b16 %v168
      %v225 = vunpack.c.l.b16 %v169
      %v226 = vunpack.c.l.b16 %v170
      %v227 = vunpack.c.l.b16 %v171
      %v228 = vpack.c.b16 %v213, %v212
      %v229 = vpack.c.b16 %v215, %v214
      %v230 = vpack.c.b16 %v217, %v216
      %v231 = vpack.c.b16 %v219, %v218
      %v232 = vpack.c.b16 %v221, %v220
      %v233 = vpack.c.b16 %v223, %v222
      %v234 = vpack.c.b16 %v225, %v224
      %v235 = vpack.c.b16 %v227, %v226
      %244 = vmatprep.subr.bf16.mxu0 0
      %245 = vmatpush1.bf16.msra.mxu0 %v228
      %246 = vmatprep.subr.bf16.mxu0 0
      %247 = vmatpush1.bf16.msra.mxu0 %v229
      %248 = vmatprep.subr.bf16.mxu0 0
      %249 = vmatpush1.bf16.msra.mxu0 %v230
      %250 = vmatprep.subr.bf16.mxu0 0
      %251 = vmatpush1.bf16.msra.mxu0 %v231
      %252 = vmatprep.subr.bf16.mxu0 0
      %253 = vmatpush1.bf16.msra.mxu0 %v232
      %254 = vmatprep.subr.bf16.mxu0 0
      %255 = vmatpush1.bf16.msra.mxu0 %v233
      %256 = vmatprep.subr.bf16.mxu0 0
      %257 = vmatpush1.bf16.msra.mxu0 %v234
      %258 = vmatprep.subr.bf16.mxu0 0
      %259 = vmatpush1.bf16.msra.mxu0 %v235
      %260 = vmatprep.subr.bf16.mxu0 0
      %261 = vmatpush1.bf16.msra.mxu0 0
      %262 = vmatprep.subr.bf16.mxu0 0
      %263 = vmatpush1.bf16.msra.mxu0 0
      %264 = vmatprep.subr.bf16.mxu0 0
      %265 = vmatpush1.bf16.msra.mxu0 0
      %266 = vmatprep.subr.bf16.mxu0 0
      %267 = vmatpush1.bf16.msra.mxu0 0
      %268 = vmatprep.subr.bf16.mxu0 0
      %269 = vmatpush1.bf16.msra.mxu0 0
      %270 = vmatprep.subr.bf16.mxu0 0
      %271 = vmatpush1.bf16.msra.mxu0 0
      %272 = vmatprep.subr.bf16.mxu0 0
      %273 = vmatpush1.bf16.msra.mxu0 0
      %274 = vmatprep.subr.bf16.mxu0 0
      %275 = vmatpush1.bf16.msra.mxu0 0
      %276 = vmatprep.mubr.bf16.mxu0 0
      %277 = vmatmul.mubr.bf16.gmra.mrb[0].mxu0 %v188
      %v278 = vpop.f32.mrb[0].mxu0
      %v279 = vadd.f32 0.0, %v278
      %v280 = vpop.f32.mrb[0].mxu0
      %v281 = vpop.f32.mrb[0].mxu0
      %v282 = vadd.f32 0.0, %v281
      %v283 = vpop.f32.mrb[0].mxu0
      %284 = vmatprep.mubr.bf16.mxu0 0
      %285 = vmatmul.mubr.bf16.gmra.mrb[0].mxu0 %v189
      %v286 = vpop.f32.mrb[0].mxu0
      %v287 = vadd.f32 0.0, %v286
      %v288 = vpop.f32.mrb[0].mxu0
      %v289 = vpop.f32.mrb[0].mxu0
      %v290 = vadd.f32 0.0, %v289
      %v291 = vpop.f32.mrb[0].mxu0
      %292 = vmatprep.mubr.bf16.mxu0 0
      %293 = vmatmul.mubr.bf16.gmra.mrb[0].mxu0 %v190
      %v294 = vpop.f32.mrb[0].mxu0
      %v295 = vadd.f32 0.0, %v294
      %v296 = vpop.f32.mrb[0].mxu0
      %v297 = vpop.f32.mrb[0].mxu0
      %v298 = vadd.f32 0.0, %v297
      %v299 = vpop.f32.mrb[0].mxu0
      %300 = vmatprep.mubr.bf16.mxu0 0
      %301 = vmatmul.mubr.bf16.gmra.mrb[0].mxu0 %v191
      %v302 = vpop.f32.mrb[0].mxu0
      %v303 = vadd.f32 0.0, %v302
      %v304 = vpop.f32.mrb[0].mxu0
      %v305 = vpop.f32.mrb[0].mxu0
      %v306 = vadd.f32 0.0, %v305
      %v307 = vpop.f32.mrb[0].mxu0
      %308 = vdwg.mxu0
      %vm309 = vcmp.ge.f32.partialorder %v279, 0.0
      %vm310 = vcmp.ge.f32.partialorder %v282, 0.0
      %vm311 = vcmp.ge.f32.partialorder %v287, 0.0
      %vm312 = vcmp.ge.f32.partialorder %v290, 0.0
      %vm313 = vcmp.ge.f32.partialorder %v295, 0.0
      %vm314 = vcmp.ge.f32.partialorder %v298, 0.0
      %vm315 = vcmp.ge.f32.partialorder %v303, 0.0
      %vm316 = vcmp.ge.f32.partialorder %v306, 0.0
      %v317 = vmul.f32 %v279, 0.1
      %v318 = vmul.f32 %v282, 0.1
      %v319 = vmul.f32 %v287, 0.1
      %v320 = vmul.f32 %v290, 0.1
      %v321 = vmul.f32 %v295, 0.1
      %v322 = vmul.f32 %v298, 0.1
      %v323 = vmul.f32 %v303, 0.1
      %v324 = vmul.f32 %v306, 0.1
      %v325 = vsel %vm309, %v279, %v317
      %v326 = vsel %vm310, %v282, %v318
      %v327 = vsel %vm311, %v287, %v319
      %v328 = vsel %vm312, %v290, %v320
      %v329 = vsel %vm313, %v295, %v321
      %v330 = vsel %vm314, %v298, %v322
      %v331 = vsel %vm315, %v303, %v323
      %v332 = vsel %vm316, %v306, %v324
      %v333 = vpack.c.bf16 %v326, %v325
      %v334 = vpack.c.bf16 %v328, %v327
      %v335 = vpack.c.bf16 %v330, %v329
      %v336 = vpack.c.bf16 %v332, %v331
      %v341 = vunpack.c.l.b16 %v333
      %v342 = vunpack.c.h.b16 %v333
      %v343 = vunpack.c.l.b16 %v334
      %v344 = vunpack.c.h.b16 %v334
      %v345 = vunpack.c.l.b16 %v335
      %v346 = vunpack.c.h.b16 %v335
      %v347 = vunpack.c.l.b16 %v336
      %v348 = vunpack.c.h.b16 %v336
      %v349 = vpack.c.b16 %v341, %v341
      %v350 = vpack.c.b16 %v342, %v342
      %v351 = vpack.c.b16 %v343, %v343
      %v352 = vpack.c.b16 %v344, %v344
      %v353 = vpack.c.b16 %v345, %v345
      %v354 = vpack.c.b16 %v346, %v346
      %v355 = vpack.c.b16 %v347, %v347
      %v356 = vpack.c.b16 %v348, %v348
      %365 = vst [vmem:[%s145] sm:$0xf] %v349
      %366 = vst [vmem:[%s145 + $0x4] sm:$0xf] %v350
      %367 = vst [vmem:[%s145 + $0x8] sm:$0xf] %v351
      %368 = vst [vmem:[%s145 + $0xc] sm:$0xf] %v352
      %369 = vst [vmem:[%s145 + $0x10] sm:$0xf] %v353
      %370 = vst [vmem:[%s145 + $0x14] sm:$0xf] %v354
      %371 = vst [vmem:[%s145 + $0x18] sm:$0xf] %v355
      %372 = vst [vmem:[%s145 + $0x1c] sm:$0xf] %v356
      %s373 = smul.u32 8, %s13
      %p374 = scmp.lt.s32.totalorder %s373, 15
      %s375 = scalar_select %p374, %s373, 15
      %s376 = smul.addr %s375, 4
      %s377 = scalar_lea.vmem %s2, %s376
      // Predicated region
      $region29: #{disentg_group.13} parent=27 // pred_check
        %p378 = pneg %p78
      $region30: #{disentg_group.13} parent=27 // pred_check_branch
        %380 = sbr.rel (%p378) target = $region32
      $region31: #{disentg_group.13} parent=27 // pred_region
        %s381 = smul.u32 8, %s13
      $region32: #{disentg_group.13} parent=27 // pred_fallthru
        _
    $region28: #{disentg_group.13} parent=5 // pred_fallthru
      _
    %p382 = scmp.le.s32.totalorder 2, %s8
    // Predicated region
    $region33: #{disentg_group.13} parent=5 // pred_check
      %p383 = pneg %p382
    $region34: #{disentg_group.13} parent=5 // pred_check_branch
      %385 = sbr.rel (%p383) target = $region36
    $region35: #{disentg_group.13} parent=5 // pred_region
      %s386 = ssub.s32 %s8, 2
      // Predicated region
      $region37: #{disentg_group.13} parent=35 // pred_check
        %p387 = pneg %p84
      $region38: #{disentg_group.13} parent=35 // pred_check_branch
        %389 = sbr.rel (%p387) target = $region40
      $region39: #{disentg_group.13} parent=35 // pred_region
        %s390 = smul.u32 8, %s14
        %p391 = scmp.lt.s32.totalorder %s390, 15
        %s392 = scalar_select %p391, %s390, 15
        %s393 = smul.addr %s392, 4
        %s394 = scalar_lea.vmem %s2, %s393
      $region40: #{disentg_group.13} parent=35 // pred_fallthru
        _
    $region36: #{disentg_group.13} parent=5 // pred_fallthru
      _
  $region6: #{disentg_group.13} parent=0 // loop_footer
    %s12 = sadd.s32 1, %s8
  $region7: #{disentg_group.13} parent=0 // loop_footer_branch
    %7 = sbr.rel target = $region3
  $region8: #{disentg_group.13} parent=0 // loop_exit
    _

// kernel: disentg_group.15
$region0: #{disentg_group.15}
  #allocation0 [shape = 'u32[]', space=smem, size = 0x4, offset = 0x4, fixed_abs, tag = 'smem constant byte address 0x4 - core index']
  #allocation1 [shape = 'u32[144,128]{1,0:T(1,128)}', space=vmem, size = 0x12000, scoped, tag = 'internal scratch']
  %s0 = inlined_call_operand.vmem [shape: bf16[32,128], index: 0, kind: input, shape index: {}]
  %s1 = inlined_call_operand.vmem [shape: bf16[128,128], index: 1, kind: input, shape index: {}]
  %s2 = inlined_call_operand.vmem [shape: bf16[128,128], index: 2, kind: input, shape index: {}]
  %s3 = inlined_call_operand.vmem [shape: bf16[32,128], index: 3, kind: output, shape index: {}]
  %s4 = sld [smem:[#allocation0]]
  $region45: #{disentg_group.15} parent=0
    _
  %s6 = ssub.s32 1, %s4
  %s7 = scalar_select 0, %s6, %s4
  loop: start=0, step=1, limit=4
  $region2: #{disentg_group.15} parent=0 // loop_pre_header
    _
  $region3: #{disentg_group.15} parent=0 // loop_header
    %s9 = sphi 0, %s13
    %p10 = scmp.ge.s32.totalorder %s9, 4
    %s19 = sphi 0, %s21
    %s22 = sphi 0, %s19
    %s23 = sphi 0, %s22
    %s39 = sphi 0, %s23
    %s43 = sphi 0, %s43
    %s45 = sphi 0, %s43
    %s46 = sphi 0, %s45
    %s60 = sphi 0, %s46
    %s64 = sphi 0, %s64
    %s66 = sphi 0, %s64
    %s67 = sphi 0, %s66
    %s81 = sphi 0, %s67
    %s87 = sphi 0, %s89
    %s90 = sphi 0, %s87
    %s91 = sphi 0, %s90
    %s107 = sphi 0, %s91
  $region4: #{disentg_group.15} parent=0 // loop_header_branch
    %12 = sbr.rel (%p10) target = $region8
  $region5: #{disentg_group.15} parent=0 // loop_body
    %s14 = ssub.s32 %s9, 1
    %s15 = ssub.s32 %s9, 2
    %s16 = sadd.s32 %s9, 1
    %s17 = ssub.s32 %s9, %s16
    %p18 = scmp.eq.s32.totalorder %s17, 0
    %s20 = sadd.s32 %s19, 1
    %s21 = scalar_select %p18, %s19, %s20
    %p24 = pneg %p18
    %p25 = scmp.eq.s32.totalorder %s9, 1
    %p26 = por %p24, %p25
    %p27 = scmp.ne.s32.totalorder %s19, %s22
    %p28 = scmp.eq.s32.totalorder %s9, 0
    %p29 = por %p27, %p28
    %p30 = scmp.ne.s32.totalorder %s19, %s22
    %p31 = scmp.eq.s32.totalorder %s14, 1
    %p32 = por %p30, %p31
    %p33 = scmp.ne.s32.totalorder %s22, %s23
    %p34 = scmp.eq.s32.totalorder %s14, 0
    %p35 = por %p33, %p34
    %p36 = scmp.ne.s32.totalorder %s22, %s23
    %p37 = scmp.eq.s32.totalorder %s15, 1
    %p38 = por %p36, %p37
    %p40 = scmp.ne.s32.totalorder %s23, %s39
    %p41 = scmp.eq.s32.totalorder %s15, 0
    %p42 = por %p40, %p41
    %s44 = sadd.s32 %s43, 1
    %p47 = scmp.eq.s32.totalorder %s9, 1
    %p48 = scmp.ne.s32.totalorder %s43, %s45
    %p49 = scmp.eq.s32.totalorder %s9, 0
    %p50 = por %p48, %p49
    %p51 = scmp.ne.s32.totalorder %s43, %s45
    %p52 = scmp.eq.s32.totalorder %s14, 1
    %p53 = por %p51, %p52
    %p54 = scmp.ne.s32.totalorder %s45, %s46
    %p55 = scmp.eq.s32.totalorder %s14, 0
    %p56 = por %p54, %p55
    %p57 = scmp.ne.s32.totalorder %s45, %s46
    %p58 = scmp.eq.s32.totalorder %s15, 1
    %p59 = por %p57, %p58
    %p61 = scmp.ne.s32.totalorder %s46, %s60
    %p62 = scmp.eq.s32.totalorder %s15, 0
    %p63 = por %p61, %p62
    %s65 = sadd.s32 %s64, 1
    %p68 = scmp.eq.s32.totalorder %s9, 1
    %p69 = scmp.ne.s32.totalorder %s64, %s66
    %p70 = scmp.eq.s32.totalorder %s9, 0
    %p71 = por %p69, %p70
    %p72 = scmp.ne.s32.totalorder %s64, %s66
    %p73 = scmp.eq.s32.totalorder %s14, 1
    %p74 = por %p72, %p73
    %p75 = scmp.ne.s32.totalorder %s66, %s67
    %p76 = scmp.eq.s32.totalorder %s14, 0
    %p77 = por %p75, %p76
    %p78 = scmp.ne.s32.totalorder %s66, %s67
    %p79 = scmp.eq.s32.totalorder %s15, 1
    %p80 = por %p78, %p79
    %p82 = scmp.ne.s32.totalorder %s67, %s81
    %p83 = scmp.eq.s32.totalorder %s15, 0
    %p84 = por %p82, %p83
    %s85 = ssub.s32 %s9, %s16
    %p86 = scmp.eq.s32.totalorder %s85, 0
    %s88 = sadd.s32 %s87, 1
    %s89 = scalar_select %p86, %s87, %s88
    %p92 = pneg %p86
    %p93 = scmp.eq.s32.totalorder %s9, 1
    %p94 = por %p92, %p93
    %p95 = scmp.ne.s32.totalorder %s87, %s90
    %p96 = scmp.eq.s32.totalorder %s9, 0
    %p97 = por %p95, %p96
    %p98 = scmp.ne.s32.totalorder %s87, %s90
    %p99 = scmp.eq.s32.totalorder %s14, 1
    %p100 = por %p98, %p99
    %p101 = scmp.ne.s32.totalorder %s90, %s91
    %p102 = scmp.eq.s32.totalorder %s14, 0
    %p103 = por %p101, %p102
    %p104 = scmp.ne.s32.totalorder %s90, %s91
    %p105 = scmp.eq.s32.totalorder %s15, 1
    %p106 = por %p104, %p105
    %p108 = scmp.ne.s32.totalorder %s91, %s107
    %p109 = scmp.eq.s32.totalorder %s15, 0
    %p110 = por %p108, %p109
    %p111 = scmp.le.s32.totalorder 1, %s9
    %p112 = scmp.lt.s32.totalorder %s9, 3
    %p113 = pnand %p111, %p112
    %p114 = pneg %p113
    // Predicated region
    $region9: #{disentg_group.15} parent=5 // pred_check
      _
    $region10: #{disentg_group.15} parent=5 // pred_check_branch
      %116 = sbr.rel (%p113) target = $region12
    $region11: #{disentg_group.15} parent=5 // pred_region
      %s117 = ssub.s32 %s9, 1
      // Predicated region
      $region13: #{disentg_group.15} parent=11 // pred_check
        %p118 = pneg %p56
      $region14: #{disentg_group.15} parent=11 // pred_check_branch
        %120 = sbr.rel (%p118) target = $region16
      $region15: #{disentg_group.15} parent=11 // pred_region
        _
      $region16: #{disentg_group.15} parent=11 // pred_fallthru
        _
      // Predicated region
      $region17: #{disentg_group.15} parent=11 // pred_check
        %p121 = pneg %p77
      $region18: #{disentg_group.15} parent=11 // pred_check_branch
        %123 = sbr.rel (%p121) target = $region20
      $region19: #{disentg_group.15} parent=11 // pred_region
        _
      $region20: #{disentg_group.15} parent=11 // pred_fallthru
        _
    $region12: #{disentg_group.15} parent=5 // pred_fallthru
      _
    %p124 = scmp.lt.s32.totalorder %s9, 2
    // Predicated region
    $region21: #{disentg_group.15} parent=5 // pred_check
      %p125 = pneg %p124
    $region22: #{disentg_group.15} parent=5 // pred_check_branch
      %127 = sbr.rel (%p125) target = $region24
    $region23: #{disentg_group.15} parent=5 // pred_region
      // Predicated region
      $region25: #{disentg_group.15} parent=23 // pred_check
        %p128 = pneg %p29
      $region26: #{disentg_group.15} parent=23 // pred_check_branch
        %130 = sbr.rel (%p128) target = $region28
      $region27: #{disentg_group.15} parent=23 // pred_region
        %s131 = smul.u32 2, %s9
        %p132 = scmp.lt.s32.totalorder %s131, 3
        %s133 = scalar_select %p132, %s131, 3
        %s134 = smul.addr %s133, 4
        %s135 = scalar_lea.vmem %s0, %s134
        %s136 = smul.u32 2, %s9
      $region28: #{disentg_group.15} parent=23 // pred_fallthru
        _
    $region24: #{disentg_group.15} parent=5 // pred_fallthru
      _
    %p137 = scmp.le.s32.totalorder 1, %s9
    %p138 = scmp.lt.s32.totalorder %s9, 3
    %p139 = pnand %p137, %p138
    %p140 = pneg %p139
    // Predicated region
    $region29: #{disentg_group.15} parent=5 // pred_check
      _
    $region30: #{disentg_group.15} parent=5 // pred_check_branch
      %142 = sbr.rel (%p139) target = $region32
    $region31: #{disentg_group.15} parent=5 // pred_region
      %s143 = ssub.s32 %s9, 1
      %s144 = smul.u32 2, %s14
      %p145 = scmp.lt.s32.totalorder %s144, 3
      %s146 = scalar_select %p145, %s144, 3
      %s147 = smul.addr %s146, 4
      %s148 = scalar_lea.vmem %s0, %s147
      %p149 = pneg %p35
      %p150 = pneg %p32
      %p151 = pneg %p56
      %p152 = pneg %p53
      %p153 = pneg %p77
      %p154 = pneg %p74
      %p155 = pneg %p103
      %p156 = pneg %p100
      %s157 = smul.u32 2, %s14
      %p158 = scmp.lt.s32.totalorder %s157, 3
      %s159 = scalar_select %p158, %s157, 3
      %s160 = smul.addr %s159, 4
      %s161 = scalar_lea.vmem %s3, %s160
      %s162 = smul.u32 2, %s14
      %p163 = scmp.lt.s32.totalorder %s162, 3
      %s164 = scalar_select %p163, %s162, 3
      %s165 = smul.addr %s164, 4
      %s166 = scalar_lea.vmem %s0, %s165
      %s167 = smul.u32 2, %s14
      %s168 = smul.u32 2, %s14
      %p169 = scmp.lt.s32.totalorder %s168, 3
      %s170 = scalar_select %p169, %s168, 3
      %s171 = smul.addr %s170, 4
      %s172 = scalar_lea.vmem %s3, %s171
      %s173 = smul.u32 2, %s14
      %v175 = vld [vmem:[%s166] sm:$0xf]
      %v176 = vld [vmem:[%s166 + $0x4] sm:$0xf]
      %v177 = vld [vmem:[%s1] sm:$0xf]
      %v178 = vld [vmem:[%s1 + $0x4] sm:$0xf]
      %v179 = vld [vmem:[%s1 + $0x8] sm:$0xf]
      %v180 = vld [vmem:[%s1 + $0xc] sm:$0xf]
      %v181 = vld [vmem:[%s1 + $0x10] sm:$0xf]
      %v182 = vld [vmem:[%s1 + $0x14] sm:$0xf]
      %v183 = vld [vmem:[%s1 + $0x18] sm:$0xf]
      %v184 = vld [vmem:[%s1 + $0x1c] sm:$0xf]
      %v185 = vld [vmem:[%s1 + $0x20] sm:$0xf]
      %v186 = vld [vmem:[%s1 + $0x24] sm:$0xf]
      %v187 = vld [vmem:[%s1 + $0x28] sm:$0xf]
      %v188 = vld [vmem:[%s1 + $0x2c] sm:$0xf]
      %v189 = vld [vmem:[%s1 + $0x30] sm:$0xf]
      %v190 = vld [vmem:[%s1 + $0x34] sm:$0xf]
      %v191 = vld [vmem:[%s1 + $0x38] sm:$0xf]
      %v192 = vld [vmem:[%s1 + $0x3c] sm:$0xf]
      %v195 = vunpack.c.l.b16 %v175
      %v196 = vunpack.c.l.b16 %v176
      %v197 = vpack.c.b16 %v196, %v195
      %v215 = vunpack.c.l.b16 %v177
      %v216 = vunpack.c.l.b16 %v178
      %v217 = vunpack.c.l.b16 %v179
      %v218 = vunpack.c.l.b16 %v180
      %v219 = vunpack.c.l.b16 %v181
      %v220 = vunpack.c.l.b16 %v182
      %v221 = vunpack.c.l.b16 %v183
      %v222 = vunpack.c.l.b16 %v184
      %v223 = vunpack.c.l.b16 %v185
      %v224 = vunpack.c.l.b16 %v186
      %v225 = vunpack.c.l.b16 %v187
      %v226 = vunpack.c.l.b16 %v188
      %v227 = vunpack.c.l.b16 %v189
      %v228 = vunpack.c.l.b16 %v190
      %v229 = vunpack.c.l.b16 %v191
      %v230 = vunpack.c.l.b16 %v192
      %v231 = vpack.c.b16 %v216, %v215
      %v232 = vpack.c.b16 %v218, %v217
      %v233 = vpack.c.b16 %v220, %v219
      %v234 = vpack.c.b16 %v222, %v221
      %v235 = vpack.c.b16 %v224, %v223
      %v236 = vpack.c.b16 %v226, %v225
      %v237 = vpack.c.b16 %v228, %v227
      %v238 = vpack.c.b16 %v230, %v229
      %247 = vmatprep.subr.bf16.mxu0 0
      %248 = vmatpush1.bf16.msra.mxu0 %v231
      %249 = vmatprep.subr.bf16.mxu0 0
      %250 = vmatpush1.bf16.msra.mxu0 %v232
      %251 = vmatprep.subr.bf16.mxu0 0
      %252 = vmatpush1.bf16.msra.mxu0 %v233
      %253 = vmatprep.subr.bf16.mxu0 0
      %254 = vmatpush1.bf16.msra.mxu0 %v234
      %255 = vmatprep.subr.bf16.mxu0 0
      %256 = vmatpush1.bf16.msra.mxu0 %v235
      %257 = vmatprep.subr.bf16.mxu0 0
      %258 = vmatpush1.bf16.msra.mxu0 %v236
      %259 = vmatprep.subr.bf16.mxu0 0
      %260 = vmatpush1.bf16.msra.mxu0 %v237
      %261 = vmatprep.subr.bf16.mxu0 0
      %262 = vmatpush1.bf16.msra.mxu0 %v238
      %263 = vmatprep.subr.bf16.mxu0 0
      %264 = vmatpush1.bf16.msra.mxu0 0
      %265 = vmatprep.subr.bf16.mxu0 0
      %266 = vmatpush1.bf16.msra.mxu0 0
      %267 = vmatprep.subr.bf16.mxu0 0
      %268 = vmatpush1.bf16.msra.mxu0 0
      %269 = vmatprep.subr.bf16.mxu0 0
      %270 = vmatpush1.bf16.msra.mxu0 0
      %271 = vmatprep.subr.bf16.mxu0 0
      %272 = vmatpush1.bf16.msra.mxu0 0
      %273 = vmatprep.subr.bf16.mxu0 0
      %274 = vmatpush1.bf16.msra.mxu0 0
      %275 = vmatprep.subr.bf16.mxu0 0
      %276 = vmatpush1.bf16.msra.mxu0 0
      %277 = vmatprep.subr.bf16.mxu0 0
      %278 = vmatpush1.bf16.msra.mxu0 0
      %279 = vmatprep.mubr.bf16.mxu0 0
      %280 = vmatmul.mubr.bf16.gmra.mrb[0].mxu0 %v197
      %v281 = vpop.f32.mrb[0].mxu0
      %v282 = vadd.f32 0.0, %v281
      %v283 = vpop.f32.mrb[0].mxu0
      %v284 = vpop.f32.mrb[0].mxu0
      %v285 = vadd.f32 0.0, %v284
      %v286 = vpop.f32.mrb[0].mxu0
      %287 = vdwg.mxu0
      %vm288 = vcmp.ge.f32.partialorder %v282, 0.0
      %vm289 = vcmp.ge.f32.partialorder %v285, 0.0
      %v290 = vmul.f32 %v282, 0.1
      %v291 = vmul.f32 %v285, 0.1
      %v292 = vsel %vm288, %v282, %v290
      %v293 = vsel %vm289, %v285, %v291
      %v294 = vpack.c.bf16 %v293, %v292
      %v295 = vld [vmem:[%s2] sm:$0xf]
      %v296 = vld [vmem:[%s2 + $0x4] sm:$0xf]
      %v297 = vld [vmem:[%s2 + $0x8] sm:$0xf]
      %v298 = vld [vmem:[%s2 + $0xc] sm:$0xf]
      %v299 = vld [vmem:[%s2 + $0x10] sm:$0xf]
      %v300 = vld [vmem:[%s2 + $0x14] sm:$0xf]
      %v301 = vld [vmem:[%s2 + $0x18] sm:$0xf]
      %v302 = vld [vmem:[%s2 + $0x1c] sm:$0xf]
      %v303 = vld [vmem:[%s2 + $0x20] sm:$0xf]
      %v304 = vld [vmem:[%s2 + $0x24] sm:$0xf]
      %v305 = vld [vmem:[%s2 + $0x28] sm:$0xf]
      %v306 = vld [vmem:[%s2 + $0x2c] sm:$0xf]
      %v307 = vld [vmem:[%s2 + $0x30] sm:$0xf]
      %v308 = vld [vmem:[%s2 + $0x34] sm:$0xf]
      %v309 = vld [vmem:[%s2 + $0x38] sm:$0xf]
      %v310 = vld [vmem:[%s2 + $0x3c] sm:$0xf]
      %v327 = vunpack.c.l.b16 %v295
      %v328 = vunpack.c.l.b16 %v296
      %v329 = vunpack.c.l.b16 %v297
      %v330 = vunpack.c.l.b16 %v298
      %v331 = vunpack.c.l.b16 %v299
      %v332 = vunpack.c.l.b16 %v300
      %v333 = vunpack.c.l.b16 %v301
      %v334 = vunpack.c.l.b16 %v302
      %v335 = vunpack.c.l.b16 %v303
      %v336 = vunpack.c.l.b16 %v304
      %v337 = vunpack.c.l.b16 %v305
      %v338 = vunpack.c.l.b16 %v306
      %v339 = vunpack.c.l.b16 %v307
      %v340 = vunpack.c.l.b16 %v308
      %v341 = vunpack.c.l.b16 %v309
      %v342 = vunpack.c.l.b16 %v310
      %v343 = vpack.c.b16 %v328, %v327
      %v344 = vpack.c.b16 %v330, %v329
      %v345 = vpack.c.b16 %v332, %v331
      %v346 = vpack.c.b16 %v334, %v333
      %v347 = vpack.c.b16 %v336, %v335
      %v348 = vpack.c.b16 %v338, %v337
      %v349 = vpack.c.b16 %v340, %v339
      %v350 = vpack.c.b16 %v342, %v341
      %359 = vmatprep.subr.bf16.mxu0 0
      %360 = vmatpush1.bf16.msra.mxu0 %v343
      %361 = vmatprep.subr.bf16.mxu0 0
      %362 = vmatpush1.bf16.msra.mxu0 %v344
      %363 = vmatprep.subr.bf16.mxu0 0
      %364 = vmatpush1.bf16.msra.mxu0 %v345
      %365 = vmatprep.subr.bf16.mxu0 0
      %366 = vmatpush1.bf16.msra.mxu0 %v346
      %367 = vmatprep.subr.bf16.mxu0 0
      %368 = vmatpush1.bf16.msra.mxu0 %v347
      %369 = vmatprep.subr.bf16.mxu0 0
      %370 = vmatpush1.bf16.msra.mxu0 %v348
      %371 = vmatprep.subr.bf16.mxu0 0
      %372 = vmatpush1.bf16.msra.mxu0 %v349
      %373 = vmatprep.subr.bf16.mxu0 0
      %374 = vmatpush1.bf16.msra.mxu0 %v350
      %375 = vmatprep.subr.bf16.mxu0 0
      %376 = vmatpush1.bf16.msra.mxu0 0
      %377 = vmatprep.subr.bf16.mxu0 0
      %378 = vmatpush1.bf16.msra.mxu0 0
      %379 = vmatprep.subr.bf16.mxu0 0
      %380 = vmatpush1.bf16.msra.mxu0 0
      %381 = vmatprep.subr.bf16.mxu0 0
      %382 = vmatpush1.bf16.msra.mxu0 0
      %383 = vmatprep.subr.bf16.mxu0 0
      %384 = vmatpush1.bf16.msra.mxu0 0
      %385 = vmatprep.subr.bf16.mxu0 0
      %386 = vmatpush1.bf16.msra.mxu0 0
      %387 = vmatprep.subr.bf16.mxu0 0
      %388 = vmatpush1.bf16.msra.mxu0 0
      %389 = vmatprep.subr.bf16.mxu0 0
      %390 = vmatpush1.bf16.msra.mxu0 0
      %391 = vmatprep.mubr.bf16.mxu0 0
      %392 = vmatmul.mubr.bf16.gmra.mrb[0].mxu0 %v294
      %v393 = vpop.f32.mrb[0].mxu0
      %v394 = vadd.f32 0.0, %v393
      %v395 = vpop.f32.mrb[0].mxu0
      %v396 = vpop.f32.mrb[0].mxu0
      %v397 = vadd.f32 0.0, %v396
      %v398 = vpop.f32.mrb[0].mxu0
      %399 = vdwg.mxu0
      %vm400 = vcmp.ge.f32.partialorder %v394, 0.0
      %vm401 = vcmp.ge.f32.partialorder %v397, 0.0
      %v402 = vmul.f32 %v394, 0.1
      %v403 = vmul.f32 %v397, 0.1
      %v404 = vsel %vm400, %v394, %v402
      %v405 = vsel %vm401, %v397, %v403
      %v406 = vpack.c.bf16 %v405, %v404
      %v408 = vunpack.c.l.b16 %v406
      %v409 = vunpack.c.h.b16 %v406
      %v410 = vpack.c.b16 %v408, %v408
      %v411 = vpack.c.b16 %v409, %v409
      %414 = vst [vmem:[%s172] sm:$0xf] %v410
      %415 = vst [vmem:[%s172 + $0x4] sm:$0xf] %v411
      %s416 = smul.u32 2, %s14
      %p417 = scmp.lt.s32.totalorder %s416, 3
      %s418 = scalar_select %p417, %s416, 3
      %s419 = smul.addr %s418, 4
      %s420 = scalar_lea.vmem %s3, %s419
      // Predicated region
      $region33: #{disentg_group.15} parent=31 // pred_check
        %p421 = pneg %p100
      $region34: #{disentg_group.15} parent=31 // pred_check_branch
        %423 = sbr.rel (%p421) target = $region36
      $region35: #{disentg_group.15} parent=31 // pred_region
        %s424 = smul.u32 2, %s14
      $region36: #{disentg_group.15} parent=31 // pred_fallthru
        _
    $region32: #{disentg_group.15} parent=5 // pred_fallthru
      _
    %p425 = scmp.le.s32.totalorder 2, %s9
    // Predicated region
    $region37: #{disentg_group.15} parent=5 // pred_check
      %p426 = pneg %p425
    $region38: #{disentg_group.15} parent=5 // pred_check_branch
      %428 = sbr.rel (%p426) target = $region40
    $region39: #{disentg_group.15} parent=5 // pred_region
      %s429 = ssub.s32 %s9, 2
      // Predicated region
      $region41: #{disentg_group.15} parent=39 // pred_check
        %p430 = pneg %p106
      $region42: #{disentg_group.15} parent=39 // pred_check_branch
        %432 = sbr.rel (%p430) target = $region44
      $region43: #{disentg_group.15} parent=39 // pred_region
        %s433 = smul.u32 2, %s15
        %p434 = scmp.lt.s32.totalorder %s433, 3
        %s435 = scalar_select %p434, %s433, 3
        %s436 = smul.addr %s435, 4
        %s437 = scalar_lea.vmem %s3, %s436
      $region44: #{disentg_group.15} parent=39 // pred_fallthru
        _
    $region40: #{disentg_group.15} parent=5 // pred_fallthru
      _
  $region6: #{disentg_group.15} parent=0 // loop_footer
    %s13 = sadd.s32 1, %s9
  $region7: #{disentg_group.15} parent=0 // loop_footer_branch
    %8 = sbr.rel target = $region3
  $region8: #{disentg_group.15} parent=0 // loop_exit
    _

// kernel: disentg_group.16
$region0: #{disentg_group.16}
  #allocation0 [shape = 'u32[]', space=smem, size = 0x4, offset = 0x4, fixed_abs, tag = 'smem constant byte address 0x4 - core index']
  #allocation1 [shape = 'u32[144,128]{1,0:T(1,128)}', space=vmem, size = 0x12000, scoped, tag = 'internal scratch']
  %s0 = inlined_call_operand.vmem [shape: bf16[128,128], index: 0, kind: input, shape index: {}]
  %s1 = inlined_call_operand.vmem [shape: bf16[128,128], index: 1, kind: input, shape index: {}]
  %s2 = inlined_call_operand.vmem [shape: bf16[128,128], index: 2, kind: input, shape index: {}]
  %s3 = inlined_call_operand.vmem [shape: bf16[128,128], index: 3, kind: output, shape index: {}]
  %s4 = sld [smem:[#allocation0]]
  $region45: #{disentg_group.16} parent=0
    _
  %s6 = ssub.s32 1, %s4
  %s7 = scalar_select 0, %s6, %s4
  loop: start=0, step=1, limit=4
  $region2: #{disentg_group.16} parent=0 // loop_pre_header
    _
  $region3: #{disentg_group.16} parent=0 // loop_header
    %s9 = sphi 0, %s13
    %p10 = scmp.ge.s32.totalorder %s9, 4
    %s19 = sphi 0, %s21
    %s22 = sphi 0, %s19
    %s23 = sphi 0, %s22
    %s39 = sphi 0, %s23
    %s43 = sphi 0, %s43
    %s45 = sphi 0, %s43
    %s46 = sphi 0, %s45
    %s60 = sphi 0, %s46
    %s64 = sphi 0, %s64
    %s66 = sphi 0, %s64
    %s67 = sphi 0, %s66
    %s81 = sphi 0, %s67
    %s87 = sphi 0, %s89
    %s90 = sphi 0, %s87
    %s91 = sphi 0, %s90
    %s107 = sphi 0, %s91
  $region4: #{disentg_group.16} parent=0 // loop_header_branch
    %12 = sbr.rel (%p10) target = $region8
  $region5: #{disentg_group.16} parent=0 // loop_body
    %s14 = ssub.s32 %s9, 1
    %s15 = ssub.s32 %s9, 2
    %s16 = sadd.s32 %s9, 1
    %s17 = ssub.s32 %s9, %s16
    %p18 = scmp.eq.s32.totalorder %s17, 0
    %s20 = sadd.s32 %s19, 1
    %s21 = scalar_select %p18, %s19, %s20
    %p24 = pneg %p18
    %p25 = scmp.eq.s32.totalorder %s9, 1
    %p26 = por %p24, %p25
    %p27 = scmp.ne.s32.totalorder %s19, %s22
    %p28 = scmp.eq.s32.totalorder %s9, 0
    %p29 = por %p27, %p28
    %p30 = scmp.ne.s32.totalorder %s19, %s22
    %p31 = scmp.eq.s32.totalorder %s14, 1
    %p32 = por %p30, %p31
    %p33 = scmp.ne.s32.totalorder %s22, %s23
    %p34 = scmp.eq.s32.totalorder %s14, 0
    %p35 = por %p33, %p34
    %p36 = scmp.ne.s32.totalorder %s22, %s23
    %p37 = scmp.eq.s32.totalorder %s15, 1
    %p38 = por %p36, %p37
    %p40 = scmp.ne.s32.totalorder %s23, %s39
    %p41 = scmp.eq.s32.totalorder %s15, 0
    %p42 = por %p40, %p41
    %s44 = sadd.s32 %s43, 1
    %p47 = scmp.eq.s32.totalorder %s9, 1
    %p48 = scmp.ne.s32.totalorder %s43, %s45
    %p49 = scmp.eq.s32.totalorder %s9, 0
    %p50 = por %p48, %p49
    %p51 = scmp.ne.s32.totalorder %s43, %s45
    %p52 = scmp.eq.s32.totalorder %s14, 1
    %p53 = por %p51, %p52
    %p54 = scmp.ne.s32.totalorder %s45, %s46
    %p55 = scmp.eq.s32.totalorder %s14, 0
    %p56 = por %p54, %p55
    %p57 = scmp.ne.s32.totalorder %s45, %s46
    %p58 = scmp.eq.s32.totalorder %s15, 1
    %p59 = por %p57, %p58
    %p61 = scmp.ne.s32.totalorder %s46, %s60
    %p62 = scmp.eq.s32.totalorder %s15, 0
    %p63 = por %p61, %p62
    %s65 = sadd.s32 %s64, 1
    %p68 = scmp.eq.s32.totalorder %s9, 1
    %p69 = scmp.ne.s32.totalorder %s64, %s66
    %p70 = scmp.eq.s32.totalorder %s9, 0
    %p71 = por %p69, %p70
    %p72 = scmp.ne.s32.totalorder %s64, %s66
    %p73 = scmp.eq.s32.totalorder %s14, 1
    %p74 = por %p72, %p73
    %p75 = scmp.ne.s32.totalorder %s66, %s67
    %p76 = scmp.eq.s32.totalorder %s14, 0
    %p77 = por %p75, %p76
    %p78 = scmp.ne.s32.totalorder %s66, %s67
    %p79 = scmp.eq.s32.totalorder %s15, 1
    %p80 = por %p78, %p79
    %p82 = scmp.ne.s32.totalorder %s67, %s81
    %p83 = scmp.eq.s32.totalorder %s15, 0
    %p84 = por %p82, %p83
    %s85 = ssub.s32 %s9, %s16
    %p86 = scmp.eq.s32.totalorder %s85, 0
    %s88 = sadd.s32 %s87, 1
    %s89 = scalar_select %p86, %s87, %s88
    %p92 = pneg %p86
    %p93 = scmp.eq.s32.totalorder %s9, 1
    %p94 = por %p92, %p93
    %p95 = scmp.ne.s32.totalorder %s87, %s90
    %p96 = scmp.eq.s32.totalorder %s9, 0
    %p97 = por %p95, %p96
    %p98 = scmp.ne.s32.totalorder %s87, %s90
    %p99 = scmp.eq.s32.totalorder %s14, 1
    %p100 = por %p98, %p99
    %p101 = scmp.ne.s32.totalorder %s90, %s91
    %p102 = scmp.eq.s32.totalorder %s14, 0
    %p103 = por %p101, %p102
    %p104 = scmp.ne.s32.totalorder %s90, %s91
    %p105 = scmp.eq.s32.totalorder %s15, 1
    %p106 = por %p104, %p105
    %p108 = scmp.ne.s32.totalorder %s91, %s107
    %p109 = scmp.eq.s32.totalorder %s15, 0
    %p110 = por %p108, %p109
    %p111 = scmp.le.s32.totalorder 1, %s9
    %p112 = scmp.lt.s32.totalorder %s9, 3
    %p113 = pnand %p111, %p112
    %p114 = pneg %p113
    // Predicated region
    $region9: #{disentg_group.16} parent=5 // pred_check
      _
    $region10: #{disentg_group.16} parent=5 // pred_check_branch
      %116 = sbr.rel (%p113) target = $region12
    $region11: #{disentg_group.16} parent=5 // pred_region
      %s117 = ssub.s32 %s9, 1
      // Predicated region
      $region13: #{disentg_group.16} parent=11 // pred_check
        %p118 = pneg %p56
      $region14: #{disentg_group.16} parent=11 // pred_check_branch
        %120 = sbr.rel (%p118) target = $region16
      $region15: #{disentg_group.16} parent=11 // pred_region
        _
      $region16: #{disentg_group.16} parent=11 // pred_fallthru
        _
      // Predicated region
      $region17: #{disentg_group.16} parent=11 // pred_check
        %p121 = pneg %p77
      $region18: #{disentg_group.16} parent=11 // pred_check_branch
        %123 = sbr.rel (%p121) target = $region20
      $region19: #{disentg_group.16} parent=11 // pred_region
        _
      $region20: #{disentg_group.16} parent=11 // pred_fallthru
        _
    $region12: #{disentg_group.16} parent=5 // pred_fallthru
      _
    %p124 = scmp.lt.s32.totalorder %s9, 2
    // Predicated region
    $region21: #{disentg_group.16} parent=5 // pred_check
      %p125 = pneg %p124
    $region22: #{disentg_group.16} parent=5 // pred_check_branch
      %127 = sbr.rel (%p125) target = $region24
    $region23: #{disentg_group.16} parent=5 // pred_region
      // Predicated region
      $region25: #{disentg_group.16} parent=23 // pred_check
        %p128 = pneg %p29
      $region26: #{disentg_group.16} parent=23 // pred_check_branch
        %130 = sbr.rel (%p128) target = $region28
      $region27: #{disentg_group.16} parent=23 // pred_region
        %s131 = smul.u32 8, %s9
        %p132 = scmp.lt.s32.totalorder %s131, 15
        %s133 = scalar_select %p132, %s131, 15
        %s134 = smul.addr %s133, 4
        %s135 = scalar_lea.vmem %s0, %s134
        %s136 = smul.u32 8, %s9
      $region28: #{disentg_group.16} parent=23 // pred_fallthru
        _
    $region24: #{disentg_group.16} parent=5 // pred_fallthru
      _
    %p137 = scmp.le.s32.totalorder 1, %s9
    %p138 = scmp.lt.s32.totalorder %s9, 3
    %p139 = pnand %p137, %p138
    %p140 = pneg %p139
    // Predicated region
    $region29: #{disentg_group.16} parent=5 // pred_check
      _
    $region30: #{disentg_group.16} parent=5 // pred_check_branch
      %142 = sbr.rel (%p139) target = $region32
    $region31: #{disentg_group.16} parent=5 // pred_region
      %s143 = ssub.s32 %s9, 1
      %s144 = smul.u32 8, %s14
      %p145 = scmp.lt.s32.totalorder %s144, 15
      %s146 = scalar_select %p145, %s144, 15
      %s147 = smul.addr %s146, 4
      %s148 = scalar_lea.vmem %s0, %s147
      %p149 = pneg %p35
      %p150 = pneg %p32
      %p151 = pneg %p56
      %p152 = pneg %p53
      %p153 = pneg %p77
      %p154 = pneg %p74
      %p155 = pneg %p103
      %p156 = pneg %p100
      %s157 = smul.u32 8, %s14
      %p158 = scmp.lt.s32.totalorder %s157, 15
      %s159 = scalar_select %p158, %s157, 15
      %s160 = smul.addr %s159, 4
      %s161 = scalar_lea.vmem %s3, %s160
      %s162 = smul.u32 8, %s14
      %p163 = scmp.lt.s32.totalorder %s162, 15
      %s164 = scalar_select %p163, %s162, 15
      %s165 = smul.addr %s164, 4
      %s166 = scalar_lea.vmem %s0, %s165
      %s167 = smul.u32 8, %s14
      %s168 = smul.u32 8, %s14
      %p169 = scmp.lt.s32.totalorder %s168, 15
      %s170 = scalar_select %p169, %s168, 15
      %s171 = smul.addr %s170, 4
      %s172 = scalar_lea.vmem %s3, %s171
      %s173 = smul.u32 8, %s14
      %v175 = vld [vmem:[%s166] sm:$0xf]
      %v176 = vld [vmem:[%s166 + $0x4] sm:$0xf]
      %v177 = vld [vmem:[%s166 + $0x8] sm:$0xf]
      %v178 = vld [vmem:[%s166 + $0xc] sm:$0xf]
      %v179 = vld [vmem:[%s166 + $0x10] sm:$0xf]
      %v180 = vld [vmem:[%s166 + $0x14] sm:$0xf]
      %v181 = vld [vmem:[%s166 + $0x18] sm:$0xf]
      %v182 = vld [vmem:[%s166 + $0x1c] sm:$0xf]
      %v183 = vld [vmem:[%s1] sm:$0xf]
      %v184 = vld [vmem:[%s1 + $0x4] sm:$0xf]
      %v185 = vld [vmem:[%s1 + $0x8] sm:$0xf]
      %v186 = vld [vmem:[%s1 + $0xc] sm:$0xf]
      %v187 = vld [vmem:[%s1 + $0x10] sm:$0xf]
      %v188 = vld [vmem:[%s1 + $0x14] sm:$0xf]
      %v189 = vld [vmem:[%s1 + $0x18] sm:$0xf]
      %v190 = vld [vmem:[%s1 + $0x1c] sm:$0xf]
      %v191 = vld [vmem:[%s1 + $0x20] sm:$0xf]
      %v192 = vld [vmem:[%s1 + $0x24] sm:$0xf]
      %v193 = vld [vmem:[%s1 + $0x28] sm:$0xf]
      %v194 = vld [vmem:[%s1 + $0x2c] sm:$0xf]
      %v195 = vld [vmem:[%s1 + $0x30] sm:$0xf]
      %v196 = vld [vmem:[%s1 + $0x34] sm:$0xf]
      %v197 = vld [vmem:[%s1 + $0x38] sm:$0xf]
      %v198 = vld [vmem:[%s1 + $0x3c] sm:$0xf]
      %v207 = vunpack.c.l.b16 %v175
      %v208 = vunpack.c.l.b16 %v176
      %v209 = vunpack.c.l.b16 %v177
      %v210 = vunpack.c.l.b16 %v178
      %v211 = vunpack.c.l.b16 %v179
      %v212 = vunpack.c.l.b16 %v180
      %v213 = vunpack.c.l.b16 %v181
      %v214 = vunpack.c.l.b16 %v182
      %v215 = vpack.c.b16 %v208, %v207
      %v216 = vpack.c.b16 %v210, %v209
      %v217 = vpack.c.b16 %v212, %v211
      %v218 = vpack.c.b16 %v214, %v213
      %v239 = vunpack.c.l.b16 %v183
      %v240 = vunpack.c.l.b16 %v184
      %v241 = vunpack.c.l.b16 %v185
      %v242 = vunpack.c.l.b16 %v186
      %v243 = vunpack.c.l.b16 %v187
      %v244 = vunpack.c.l.b16 %v188
      %v245 = vunpack.c.l.b16 %v189
      %v246 = vunpack.c.l.b16 %v190
      %v247 = vunpack.c.l.b16 %v191
      %v248 = vunpack.c.l.b16 %v192
      %v249 = vunpack.c.l.b16 %v193
      %v250 = vunpack.c.l.b16 %v194
      %v251 = vunpack.c.l.b16 %v195
      %v252 = vunpack.c.l.b16 %v196
      %v253 = vunpack.c.l.b16 %v197
      %v254 = vunpack.c.l.b16 %v198
      %v255 = vpack.c.b16 %v240, %v239
      %v256 = vpack.c.b16 %v242, %v241
      %v257 = vpack.c.b16 %v244, %v243
      %v258 = vpack.c.b16 %v246, %v245
      %v259 = vpack.c.b16 %v248, %v247
      %v260 = vpack.c.b16 %v250, %v249
      %v261 = vpack.c.b16 %v252, %v251
      %v262 = vpack.c.b16 %v254, %v253
      %271 = vmatprep.subr.bf16.mxu0 0
      %272 = vmatpush1.bf16.msra.mxu0 %v255
      %273 = vmatprep.subr.bf16.mxu0 0
      %274 = vmatpush1.bf16.msra.mxu0 %v256
      %275 = vmatprep.subr.bf16.mxu0 0
      %276 = vmatpush1.bf16.msra.mxu0 %v257
      %277 = vmatprep.subr.bf16.mxu0 0
      %278 = vmatpush1.bf16.msra.mxu0 %v258
      %279 = vmatprep.subr.bf16.mxu0 0
      %280 = vmatpush1.bf16.msra.mxu0 %v259
      %281 = vmatprep.subr.bf16.mxu0 0
      %282 = vmatpush1.bf16.msra.mxu0 %v260
      %283 = vmatprep.subr.bf16.mxu0 0
      %284 = vmatpush1.bf16.msra.mxu0 %v261
      %285 = vmatprep.subr.bf16.mxu0 0
      %286 = vmatpush1.bf16.msra.mxu0 %v262
      %287 = vmatprep.subr.bf16.mxu0 0
      %288 = vmatpush1.bf16.msra.mxu0 0
      %289 = vmatprep.subr.bf16.mxu0 0
      %290 = vmatpush1.bf16.msra.mxu0 0
      %291 = vmatprep.subr.bf16.mxu0 0
      %292 = vmatpush1.bf16.msra.mxu0 0
      %293 = vmatprep.subr.bf16.mxu0 0
      %294 = vmatpush1.bf16.msra.mxu0 0
      %295 = vmatprep.subr.bf16.mxu0 0
      %296 = vmatpush1.bf16.msra.mxu0 0
      %297 = vmatprep.subr.bf16.mxu0 0
      %298 = vmatpush1.bf16.msra.mxu0 0
      %299 = vmatprep.subr.bf16.mxu0 0
      %300 = vmatpush1.bf16.msra.mxu0 0
      %301 = vmatprep.subr.bf16.mxu0 0
      %302 = vmatpush1.bf16.msra.mxu0 0
      %303 = vmatprep.mubr.bf16.mxu0 0
      %304 = vmatmul.mubr.bf16.gmra.mrb[0].mxu0 %v215
      %v305 = vpop.f32.mrb[0].mxu0
      %v306 = vadd.f32 0.0, %v305
      %v307 = vpop.f32.mrb[0].mxu0
      %v308 = vpop.f32.mrb[0].mxu0
      %v309 = vadd.f32 0.0, %v308
      %v310 = vpop.f32.mrb[0].mxu0
      %311 = vmatprep.mubr.bf16.mxu0 0
      %312 = vmatmul.mubr.bf16.gmra.mrb[0].mxu0 %v216
      %v313 = vpop.f32.mrb[0].mxu0
      %v314 = vadd.f32 0.0, %v313
      %v315 = vpop.f32.mrb[0].mxu0
      %v316 = vpop.f32.mrb[0].mxu0
      %v317 = vadd.f32 0.0, %v316
      %v318 = vpop.f32.mrb[0].mxu0
      %319 = vmatprep.mubr.bf16.mxu0 0
      %320 = vmatmul.mubr.bf16.gmra.mrb[0].mxu0 %v217
      %v321 = vpop.f32.mrb[0].mxu0
      %v322 = vadd.f32 0.0, %v321
      %v323 = vpop.f32.mrb[0].mxu0
      %v324 = vpop.f32.mrb[0].mxu0
      %v325 = vadd.f32 0.0, %v324
      %v326 = vpop.f32.mrb[0].mxu0
      %327 = vmatprep.mubr.bf16.mxu0 0
      %328 = vmatmul.mubr.bf16.gmra.mrb[0].mxu0 %v218
      %v329 = vpop.f32.mrb[0].mxu0
      %v330 = vadd.f32 0.0, %v329
      %v331 = vpop.f32.mrb[0].mxu0
      %v332 = vpop.f32.mrb[0].mxu0
      %v333 = vadd.f32 0.0, %v332
      %v334 = vpop.f32.mrb[0].mxu0
      %335 = vdwg.mxu0
      %vm336 = vcmp.ge.f32.partialorder %v306, 0.0
      %vm337 = vcmp.ge.f32.partialorder %v309, 0.0
      %vm338 = vcmp.ge.f32.partialorder %v314, 0.0
      %vm339 = vcmp.ge.f32.partialorder %v317, 0.0
      %vm340 = vcmp.ge.f32.partialorder %v322, 0.0
      %vm341 = vcmp.ge.f32.partialorder %v325, 0.0
      %vm342 = vcmp.ge.f32.partialorder %v330, 0.0
      %vm343 = vcmp.ge.f32.partialorder %v333, 0.0
      %v344 = vmul.f32 %v306, 0.1
      %v345 = vmul.f32 %v309, 0.1
      %v346 = vmul.f32 %v314, 0.1
      %v347 = vmul.f32 %v317, 0.1
      %v348 = vmul.f32 %v322, 0.1
      %v349 = vmul.f32 %v325, 0.1
      %v350 = vmul.f32 %v330, 0.1
      %v351 = vmul.f32 %v333, 0.1
      %v352 = vsel %vm336, %v306, %v344
      %v353 = vsel %vm337, %v309, %v345
      %v354 = vsel %vm338, %v314, %v346
      %v355 = vsel %vm339, %v317, %v347
      %v356 = vsel %vm340, %v322, %v348
      %v357 = vsel %vm341, %v325, %v349
      %v358 = vsel %vm342, %v330, %v350
      %v359 = vsel %vm343, %v333, %v351
      %v360 = vpack.c.bf16 %v353, %v352
      %v361 = vpack.c.bf16 %v355, %v354
      %v362 = vpack.c.bf16 %v357, %v356
      %v363 = vpack.c.bf16 %v359, %v358
      %v364 = vld [vmem:[%s2] sm:$0xf]
      %v365 = vld [vmem:[%s2 + $0x4] sm:$0xf]
      %v366 = vld [vmem:[%s2 + $0x8] sm:$0xf]
      %v367 = vld [vmem:[%s2 + $0xc] sm:$0xf]
      %v368 = vld [vmem:[%s2 + $0x10] sm:$0xf]
      %v369 = vld [vmem:[%s2 + $0x14] sm:$0xf]
      %v370 = vld [vmem:[%s2 + $0x18] sm:$0xf]
      %v371 = vld [vmem:[%s2 + $0x1c] sm:$0xf]
      %v372 = vld [vmem:[%s2 + $0x20] sm:$0xf]
      %v373 = vld [vmem:[%s2 + $0x24] sm:$0xf]
      %v374 = vld [vmem:[%s2 + $0x28] sm:$0xf]
      %v375 = vld [vmem:[%s2 + $0x2c] sm:$0xf]
      %v376 = vld [vmem:[%s2 + $0x30] sm:$0xf]
      %v377 = vld [vmem:[%s2 + $0x34] sm:$0xf]
      %v378 = vld [vmem:[%s2 + $0x38] sm:$0xf]
      %v379 = vld [vmem:[%s2 + $0x3c] sm:$0xf]
      %v396 = vunpack.c.l.b16 %v364
      %v397 = vunpack.c.l.b16 %v365
      %v398 = vunpack.c.l.b16 %v366
      %v399 = vunpack.c.l.b16 %v367
      %v400 = vunpack.c.l.b16 %v368
      %v401 = vunpack.c.l.b16 %v369
      %v402 = vunpack.c.l.b16 %v370
      %v403 = vunpack.c.l.b16 %v371
      %v404 = vunpack.c.l.b16 %v372
      %v405 = vunpack.c.l.b16 %v373
      %v406 = vunpack.c.l.b16 %v374
      %v407 = vunpack.c.l.b16 %v375
      %v408 = vunpack.c.l.b16 %v376
      %v409 = vunpack.c.l.b16 %v377
      %v410 = vunpack.c.l.b16 %v378
      %v411 = vunpack.c.l.b16 %v379
      %v412 = vpack.c.b16 %v397, %v396
      %v413 = vpack.c.b16 %v399, %v398
      %v414 = vpack.c.b16 %v401, %v400
      %v415 = vpack.c.b16 %v403, %v402
      %v416 = vpack.c.b16 %v405, %v404
      %v417 = vpack.c.b16 %v407, %v406
      %v418 = vpack.c.b16 %v409, %v408
      %v419 = vpack.c.b16 %v411, %v410
      %428 = vmatprep.subr.bf16.mxu0 0
      %429 = vmatpush1.bf16.msra.mxu0 %v412
      %430 = vmatprep.subr.bf16.mxu0 0
      %431 = vmatpush1.bf16.msra.mxu0 %v413
      %432 = vmatprep.subr.bf16.mxu0 0
      %433 = vmatpush1.bf16.msra.mxu0 %v414
      %434 = vmatprep.subr.bf16.mxu0 0
      %435 = vmatpush1.bf16.msra.mxu0 %v415
      %436 = vmatprep.subr.bf16.mxu0 0
      %437 = vmatpush1.bf16.msra.mxu0 %v416
      %438 = vmatprep.subr.bf16.mxu0 0
      %439 = vmatpush1.bf16.msra.mxu0 %v417
      %440 = vmatprep.subr.bf16.mxu0 0
      %441 = vmatpush1.bf16.msra.mxu0 %v418
      %442 = vmatprep.subr.bf16.mxu0 0
      %443 = vmatpush1.bf16.msra.mxu0 %v419
      %444 = vmatprep.subr.bf16.mxu0 0
      %445 = vmatpush1.bf16.msra.mxu0 0
      %446 = vmatprep.subr.bf16.mxu0 0
      %447 = vmatpush1.bf16.msra.mxu0 0
      %448 = vmatprep.subr.bf16.mxu0 0
      %449 = vmatpush1.bf16.msra.mxu0 0
      %450 = vmatprep.subr.bf16.mxu0 0
      %451 = vmatpush1.bf16.msra.mxu0 0
      %452 = vmatprep.subr.bf16.mxu0 0
      %453 = vmatpush1.bf16.msra.mxu0 0
      %454 = vmatprep.subr.bf16.mxu0 0
      %455 = vmatpush1.bf16.msra.mxu0 0
      %456 = vmatprep.subr.bf16.mxu0 0
      %457 = vmatpush1.bf16.msra.mxu0 0
      %458 = vmatprep.subr.bf16.mxu0 0
      %459 = vmatpush1.bf16.msra.mxu0 0
      %460 = vmatprep.mubr.bf16.mxu0 0
      %461 = vmatmul.mubr.bf16.gmra.mrb[0].mxu0 %v360
      %v462 = vpop.f32.mrb[0].mxu0
      %v463 = vadd.f32 0.0, %v462
      %v464 = vpop.f32.mrb[0].mxu0
      %v465 = vpop.f32.mrb[0].mxu0
      %v466 = vadd.f32 0.0, %v465
      %v467 = vpop.f32.mrb[0].mxu0
      %468 = vmatprep.mubr.bf16.mxu0 0
      %469 = vmatmul.mubr.bf16.gmra.mrb[0].mxu0 %v361
      %v470 = vpop.f32.mrb[0].mxu0
      %v471 = vadd.f32 0.0, %v470
      %v472 = vpop.f32.mrb[0].mxu0
      %v473 = vpop.f32.mrb[0].mxu0
      %v474 = vadd.f32 0.0, %v473
      %v475 = vpop.f32.mrb[0].mxu0
      %476 = vmatprep.mubr.bf16.mxu0 0
      %477 = vmatmul.mubr.bf16.gmra.mrb[0].mxu0 %v362
      %v478 = vpop.f32.mrb[0].mxu0
      %v479 = vadd.f32 0.0, %v478
      %v480 = vpop.f32.mrb[0].mxu0
      %v481 = vpop.f32.mrb[0].mxu0
      %v482 = vadd.f32 0.0, %v481
      %v483 = vpop.f32.mrb[0].mxu0
      %484 = vmatprep.mubr.bf16.mxu0 0
      %485 = vmatmul.mubr.bf16.gmra.mrb[0].mxu0 %v363
      %v486 = vpop.f32.mrb[0].mxu0
      %v487 = vadd.f32 0.0, %v486
      %v488 = vpop.f32.mrb[0].mxu0
      %v489 = vpop.f32.mrb[0].mxu0
      %v490 = vadd.f32 0.0, %v489
      %v491 = vpop.f32.mrb[0].mxu0
      %492 = vdwg.mxu0
      %vm493 = vcmp.ge.f32.partialorder %v463, 0.0
      %vm494 = vcmp.ge.f32.partialorder %v466, 0.0
      %vm495 = vcmp.ge.f32.partialorder %v471, 0.0
      %vm496 = vcmp.ge.f32.partialorder %v474, 0.0
      %vm497 = vcmp.ge.f32.partialorder %v479, 0.0
      %vm498 = vcmp.ge.f32.partialorder %v482, 0.0
      %vm499 = vcmp.ge.f32.partialorder %v487, 0.0
      %vm500 = vcmp.ge.f32.partialorder %v490, 0.0
      %v501 = vmul.f32 %v463, 0.1
      %v502 = vmul.f32 %v466, 0.1
      %v503 = vmul.f32 %v471, 0.1
      %v504 = vmul.f32 %v474, 0.1
      %v505 = vmul.f32 %v479, 0.1
      %v506 = vmul.f32 %v482, 0.1
      %v507 = vmul.f32 %v487, 0.1
      %v508 = vmul.f32 %v490, 0.1
      %v509 = vsel %vm493, %v463, %v501
      %v510 = vsel %vm494, %v466, %v502
      %v511 = vsel %vm495, %v471, %v503
      %v512 = vsel %vm496, %v474, %v504
      %v513 = vsel %vm497, %v479, %v505
      %v514 = vsel %vm498, %v482, %v506
      %v515 = vsel %vm499, %v487, %v507
      %v516 = vsel %vm500, %v490, %v508
      %v517 = vpack.c.bf16 %v510, %v509
      %v518 = vpack.c.bf16 %v512, %v511
      %v519 = vpack.c.bf16 %v514, %v513
      %v520 = vpack.c.bf16 %v516, %v515
      %v525 = vunpack.c.l.b16 %v517
      %v526 = vunpack.c.h.b16 %v517
      %v527 = vunpack.c.l.b16 %v518
      %v528 = vunpack.c.h.b16 %v518
      %v529 = vunpack.c.l.b16 %v519
      %v530 = vunpack.c.h.b16 %v519
      %v531 = vunpack.c.l.b16 %v520
      %v532 = vunpack.c.h.b16 %v520
      %v533 = vpack.c.b16 %v525, %v525
      %v534 = vpack.c.b16 %v526, %v526
      %v535 = vpack.c.b16 %v527, %v527
      %v536 = vpack.c.b16 %v528, %v528
      %v537 = vpack.c.b16 %v529, %v529
      %v538 = vpack.c.b16 %v530, %v530
      %v539 = vpack.c.b16 %v531, %v531
      %v540 = vpack.c.b16 %v532, %v532
      %549 = vst [vmem:[%s172] sm:$0xf] %v533
      %550 = vst [vmem:[%s172 + $0x4] sm:$0xf] %v534
      %551 = vst [vmem:[%s172 + $0x8] sm:$0xf] %v535
      %552 = vst [vmem:[%s172 + $0xc] sm:$0xf] %v536
      %553 = vst [vmem:[%s172 + $0x10] sm:$0xf] %v537
      %554 = vst [vmem:[%s172 + $0x14] sm:$0xf] %v538
      %555 = vst [vmem:[%s172 + $0x18] sm:$0xf] %v539
      %556 = vst [vmem:[%s172 + $0x1c] sm:$0xf] %v540
      %s557 = smul.u32 8, %s14
      %p558 = scmp.lt.s32.totalorder %s557, 15
      %s559 = scalar_select %p558, %s557, 15
      %s560 = smul.addr %s559, 4
      %s561 = scalar_lea.vmem %s3, %s560
      // Predicated region
      $region33: #{disentg_group.16} parent=31 // pred_check
        %p562 = pneg %p100
      $region34: #{disentg_group.16} parent=31 // pred_check_branch
        %564 = sbr.rel (%p562) target = $region36
      $region35: #{disentg_group.16} parent=31 // pred_region
        %s565 = smul.u32 8, %s14
      $region36: #{disentg_group.16} parent=31 // pred_fallthru
        _
    $region32: #{disentg_group.16} parent=5 // pred_fallthru
      _
    %p566 = scmp.le.s32.totalorder 2, %s9
    // Predicated region
    $region37: #{disentg_group.16} parent=5 // pred_check
      %p567 = pneg %p566
    $region38: #{disentg_group.16} parent=5 // pred_check_branch
      %569 = sbr.rel (%p567) target = $region40
    $region39: #{disentg_group.16} parent=5 // pred_region
      %s570 = ssub.s32 %s9, 2
      // Predicated region
      $region41: #{disentg_group.16} parent=39 // pred_check
        %p571 = pneg %p106
      $region42: #{disentg_group.16} parent=39 // pred_check_branch
        %573 = sbr.rel (%p571) target = $region44
      $region43: #{disentg_group.16} parent=39 // pred_region
        %s574 = smul.u32 8, %s15
        %p575 = scmp.lt.s32.totalorder %s574, 15
        %s576 = scalar_select %p575, %s574, 15
        %s577 = smul.addr %s576, 4
        %s578 = scalar_lea.vmem %s3, %s577
      $region44: #{disentg_group.16} parent=39 // pred_fallthru
        _
    $region40: #{disentg_group.16} parent=5 // pred_fallthru
      _
  $region6: #{disentg_group.16} parent=0 // loop_footer
    %s13 = sadd.s32 1, %s9
  $region7: #{disentg_group.16} parent=0 // loop_footer_branch
    %8 = sbr.rel target = $region3
  $region8: #{disentg_group.16} parent=0 // loop_exit
    _

// kernel: disentg_group.18
$region0: #{disentg_group.18}
  #allocation0 [shape = 'u32[]', space=smem, size = 0x4, offset = 0x4, fixed_abs, tag = 'smem constant byte address 0x4 - core index']
  #allocation1 [shape = 'u32[144,128]{1,0:T(1,128)}', space=vmem, size = 0x12000, scoped, tag = 'internal scratch']
  %s0 = inlined_call_operand.vmem [shape: bf16[128,128], index: 0, kind: input, shape index: {}]
  %s1 = inlined_call_operand.vmem [shape: bf16[128,128], index: 1, kind: input, shape index: {}]
  %s2 = inlined_call_operand.vmem [shape: bf16[128,128], index: 2, kind: input, shape index: {}]
  %s3 = inlined_call_operand.vmem [shape: bf16[128,128], index: 3, kind: output, shape index: {}]
  %s4 = sld [smem:[#allocation0]]
  $region45: #{disentg_group.18} parent=0
    _
  %s6 = ssub.s32 1, %s4
  %s7 = scalar_select 0, %s6, %s4
  loop: start=0, step=1, limit=4
  $region2: #{disentg_group.18} parent=0 // loop_pre_header
    _
  $region3: #{disentg_group.18} parent=0 // loop_header
    %s9 = sphi 0, %s13
    %p10 = scmp.ge.s32.totalorder %s9, 4
    %s19 = sphi 0, %s21
    %s22 = sphi 0, %s19
    %s23 = sphi 0, %s22
    %s39 = sphi 0, %s23
    %s43 = sphi 0, %s43
    %s45 = sphi 0, %s43
    %s46 = sphi 0, %s45
    %s60 = sphi 0, %s46
    %s66 = sphi 0, %s68
    %s69 = sphi 0, %s66
    %s70 = sphi 0, %s69
    %s86 = sphi 0, %s70
    %s92 = sphi 0, %s94
    %s95 = sphi 0, %s92
    %s96 = sphi 0, %s95
    %s112 = sphi 0, %s96
  $region4: #{disentg_group.18} parent=0 // loop_header_branch
    %12 = sbr.rel (%p10) target = $region8
  $region5: #{disentg_group.18} parent=0 // loop_body
    %s14 = ssub.s32 %s9, 1
    %s15 = ssub.s32 %s9, 2
    %s16 = sadd.s32 %s9, 1
    %s17 = ssub.s32 %s9, %s16
    %p18 = scmp.eq.s32.totalorder %s17, 0
    %s20 = sadd.s32 %s19, 1
    %s21 = scalar_select %p18, %s19, %s20
    %p24 = pneg %p18
    %p25 = scmp.eq.s32.totalorder %s9, 1
    %p26 = por %p24, %p25
    %p27 = scmp.ne.s32.totalorder %s19, %s22
    %p28 = scmp.eq.s32.totalorder %s9, 0
    %p29 = por %p27, %p28
    %p30 = scmp.ne.s32.totalorder %s19, %s22
    %p31 = scmp.eq.s32.totalorder %s14, 1
    %p32 = por %p30, %p31
    %p33 = scmp.ne.s32.totalorder %s22, %s23
    %p34 = scmp.eq.s32.totalorder %s14, 0
    %p35 = por %p33, %p34
    %p36 = scmp.ne.s32.totalorder %s22, %s23
    %p37 = scmp.eq.s32.totalorder %s15, 1
    %p38 = por %p36, %p37
    %p40 = scmp.ne.s32.totalorder %s23, %s39
    %p41 = scmp.eq.s32.totalorder %s15, 0
    %p42 = por %p40, %p41
    %s44 = sadd.s32 %s43, 1
    %p47 = scmp.eq.s32.totalorder %s9, 1
    %p48 = scmp.ne.s32.totalorder %s43, %s45
    %p49 = scmp.eq.s32.totalorder %s9, 0
    %p50 = por %p48, %p49
    %p51 = scmp.ne.s32.totalorder %s43, %s45
    %p52 = scmp.eq.s32.totalorder %s14, 1
    %p53 = por %p51, %p52
    %p54 = scmp.ne.s32.totalorder %s45, %s46
    %p55 = scmp.eq.s32.totalorder %s14, 0
    %p56 = por %p54, %p55
    %p57 = scmp.ne.s32.totalorder %s45, %s46
    %p58 = scmp.eq.s32.totalorder %s15, 1
    %p59 = por %p57, %p58
    %p61 = scmp.ne.s32.totalorder %s46, %s60
    %p62 = scmp.eq.s32.totalorder %s15, 0
    %p63 = por %p61, %p62
    %s64 = ssub.s32 %s9, %s16
    %p65 = scmp.eq.s32.totalorder %s64, 0
    %s67 = sadd.s32 %s66, 1
    %s68 = scalar_select %p65, %s66, %s67
    %p71 = pneg %p65
    %p72 = scmp.eq.s32.totalorder %s9, 1
    %p73 = por %p71, %p72
    %p74 = scmp.ne.s32.totalorder %s66, %s69
    %p75 = scmp.eq.s32.totalorder %s9, 0
    %p76 = por %p74, %p75
    %p77 = scmp.ne.s32.totalorder %s66, %s69
    %p78 = scmp.eq.s32.totalorder %s14, 1
    %p79 = por %p77, %p78
    %p80 = scmp.ne.s32.totalorder %s69, %s70
    %p81 = scmp.eq.s32.totalorder %s14, 0
    %p82 = por %p80, %p81
    %p83 = scmp.ne.s32.totalorder %s69, %s70
    %p84 = scmp.eq.s32.totalorder %s15, 1
    %p85 = por %p83, %p84
    %p87 = scmp.ne.s32.totalorder %s70, %s86
    %p88 = scmp.eq.s32.totalorder %s15, 0
    %p89 = por %p87, %p88
    %s90 = ssub.s32 %s9, %s16
    %p91 = scmp.eq.s32.totalorder %s90, 0
    %s93 = sadd.s32 %s92, 1
    %s94 = scalar_select %p91, %s92, %s93
    %p97 = pneg %p91
    %p98 = scmp.eq.s32.totalorder %s9, 1
    %p99 = por %p97, %p98
    %p100 = scmp.ne.s32.totalorder %s92, %s95
    %p101 = scmp.eq.s32.totalorder %s9, 0
    %p102 = por %p100, %p101
    %p103 = scmp.ne.s32.totalorder %s92, %s95
    %p104 = scmp.eq.s32.totalorder %s14, 1
    %p105 = por %p103, %p104
    %p106 = scmp.ne.s32.totalorder %s95, %s96
    %p107 = scmp.eq.s32.totalorder %s14, 0
    %p108 = por %p106, %p107
    %p109 = scmp.ne.s32.totalorder %s95, %s96
    %p110 = scmp.eq.s32.totalorder %s15, 1
    %p111 = por %p109, %p110
    %p113 = scmp.ne.s32.totalorder %s96, %s112
    %p114 = scmp.eq.s32.totalorder %s15, 0
    %p115 = por %p113, %p114
    %p116 = scmp.le.s32.totalorder 1, %s9
    %p117 = scmp.lt.s32.totalorder %s9, 3
    %p118 = pnand %p116, %p117
    %p119 = pneg %p118
    // Predicated region
    $region9: #{disentg_group.18} parent=5 // pred_check
      _
    $region10: #{disentg_group.18} parent=5 // pred_check_branch
      %121 = sbr.rel (%p118) target = $region12
    $region11: #{disentg_group.18} parent=5 // pred_region
      %s122 = ssub.s32 %s9, 1
      // Predicated region
      $region13: #{disentg_group.18} parent=11 // pred_check
        %p123 = pneg %p56
      $region14: #{disentg_group.18} parent=11 // pred_check_branch
        %125 = sbr.rel (%p123) target = $region16
      $region15: #{disentg_group.18} parent=11 // pred_region
        _
      $region16: #{disentg_group.18} parent=11 // pred_fallthru
        _
    $region12: #{disentg_group.18} parent=5 // pred_fallthru
      _
    %p126 = scmp.lt.s32.totalorder %s9, 2
    // Predicated region
    $region17: #{disentg_group.18} parent=5 // pred_check
      %p127 = pneg %p126
    $region18: #{disentg_group.18} parent=5 // pred_check_branch
      %129 = sbr.rel (%p127) target = $region20
    $region19: #{disentg_group.18} parent=5 // pred_region
      // Predicated region
      $region21: #{disentg_group.18} parent=19 // pred_check
        %p130 = pneg %p29
      $region22: #{disentg_group.18} parent=19 // pred_check_branch
        %132 = sbr.rel (%p130) target = $region24
      $region23: #{disentg_group.18} parent=19 // pred_region
        %s133 = smul.u32 8, %s9
        %p134 = scmp.lt.s32.totalorder %s133, 15
        %s135 = scalar_select %p134, %s133, 15
        %s136 = smul.addr %s135, 4
        %s137 = scalar_lea.vmem %s0, %s136
        %s138 = smul.u32 8, %s9
      $region24: #{disentg_group.18} parent=19 // pred_fallthru
        _
      // Predicated region
      $region25: #{disentg_group.18} parent=19 // pred_check
        %p139 = pneg %p76
      $region26: #{disentg_group.18} parent=19 // pred_check_branch
        %141 = sbr.rel (%p139) target = $region28
      $region27: #{disentg_group.18} parent=19 // pred_region
        %s142 = smul.u32 8, %s9
        %p143 = scmp.lt.s32.totalorder %s142, 15
        %s144 = scalar_select %p143, %s142, 15
        %s145 = smul.addr %s144, 4
        %s146 = scalar_lea.vmem %s2, %s145
        %s147 = smul.u32 8, %s9
      $region28: #{disentg_group.18} parent=19 // pred_fallthru
        _
    $region20: #{disentg_group.18} parent=5 // pred_fallthru
      _
    %p148 = scmp.le.s32.totalorder 1, %s9
    %p149 = scmp.lt.s32.totalorder %s9, 3
    %p150 = pnand %p148, %p149
    %p151 = pneg %p150
    // Predicated region
    $region29: #{disentg_group.18} parent=5 // pred_check
      _
    $region30: #{disentg_group.18} parent=5 // pred_check_branch
      %153 = sbr.rel (%p150) target = $region32
    $region31: #{disentg_group.18} parent=5 // pred_region
      %s154 = ssub.s32 %s9, 1
      %s155 = smul.u32 8, %s14
      %p156 = scmp.lt.s32.totalorder %s155, 15
      %s157 = scalar_select %p156, %s155, 15
      %s158 = smul.addr %s157, 4
      %s159 = scalar_lea.vmem %s0, %s158
      %p160 = pneg %p35
      %p161 = pneg %p32
      %p162 = pneg %p56
      %p163 = pneg %p53
      %s164 = smul.u32 8, %s14
      %p165 = scmp.lt.s32.totalorder %s164, 15
      %s166 = scalar_select %p165, %s164, 15
      %s167 = smul.addr %s166, 4
      %s168 = scalar_lea.vmem %s2, %s167
      %p169 = pneg %p82
      %p170 = pneg %p79
      %p171 = pneg %p108
      %p172 = pneg %p105
      %s173 = smul.u32 8, %s14
      %p174 = scmp.lt.s32.totalorder %s173, 15
      %s175 = scalar_select %p174, %s173, 15
      %s176 = smul.addr %s175, 4
      %s177 = scalar_lea.vmem %s3, %s176
      %s178 = smul.u32 8, %s14
      %p179 = scmp.lt.s32.totalorder %s178, 15
      %s180 = scalar_select %p179, %s178, 15
      %s181 = smul.addr %s180, 4
      %s182 = scalar_lea.vmem %s0, %s181
      %s183 = smul.u32 8, %s14
      %s184 = smul.u32 8, %s14
      %p185 = scmp.lt.s32.totalorder %s184, 15
      %s186 = scalar_select %p185, %s184, 15
      %s187 = smul.addr %s186, 4
      %s188 = scalar_lea.vmem %s2, %s187
      %s189 = smul.u32 8, %s14
      %s190 = smul.u32 8, %s14
      %p191 = scmp.lt.s32.totalorder %s190, 15
      %s192 = scalar_select %p191, %s190, 15
      %s193 = smul.addr %s192, 4
      %s194 = scalar_lea.vmem %s3, %s193
      %s195 = smul.u32 8, %s14
      %v197 = vld [vmem:[%s182] sm:$0xf]
      %v198 = vld [vmem:[%s182 + $0x4] sm:$0xf]
      %v199 = vld [vmem:[%s182 + $0x8] sm:$0xf]
      %v200 = vld [vmem:[%s182 + $0xc] sm:$0xf]
      %v201 = vld [vmem:[%s182 + $0x10] sm:$0xf]
      %v202 = vld [vmem:[%s182 + $0x14] sm:$0xf]
      %v203 = vld [vmem:[%s182 + $0x18] sm:$0xf]
      %v204 = vld [vmem:[%s182 + $0x1c] sm:$0xf]
      %v205 = vld [vmem:[%s1] sm:$0xf]
      %v206 = vld [vmem:[%s1 + $0x4] sm:$0xf]
      %v207 = vld [vmem:[%s1 + $0x8] sm:$0xf]
      %v208 = vld [vmem:[%s1 + $0xc] sm:$0xf]
      %v209 = vld [vmem:[%s1 + $0x10] sm:$0xf]
      %v210 = vld [vmem:[%s1 + $0x14] sm:$0xf]
      %v211 = vld [vmem:[%s1 + $0x18] sm:$0xf]
      %v212 = vld [vmem:[%s1 + $0x1c] sm:$0xf]
      %v213 = vld [vmem:[%s1 + $0x20] sm:$0xf]
      %v214 = vld [vmem:[%s1 + $0x24] sm:$0xf]
      %v215 = vld [vmem:[%s1 + $0x28] sm:$0xf]
      %v216 = vld [vmem:[%s1 + $0x2c] sm:$0xf]
      %v217 = vld [vmem:[%s1 + $0x30] sm:$0xf]
      %v218 = vld [vmem:[%s1 + $0x34] sm:$0xf]
      %v219 = vld [vmem:[%s1 + $0x38] sm:$0xf]
      %v220 = vld [vmem:[%s1 + $0x3c] sm:$0xf]
      %v221 = vld [vmem:[%s188] sm:$0xf]
      %v222 = vld [vmem:[%s188 + $0x4] sm:$0xf]
      %v223 = vld [vmem:[%s188 + $0x8] sm:$0xf]
      %v224 = vld [vmem:[%s188 + $0xc] sm:$0xf]
      %v225 = vld [vmem:[%s188 + $0x10] sm:$0xf]
      %v226 = vld [vmem:[%s188 + $0x14] sm:$0xf]
      %v227 = vld [vmem:[%s188 + $0x18] sm:$0xf]
      %v228 = vld [vmem:[%s188 + $0x1c] sm:$0xf]
      %v229 = vunpack.c.l.bf16 %v221
      %v230 = vunpack.c.l.bf16 %v222
      %v231 = vunpack.c.l.bf16 %v223
      %v232 = vunpack.c.l.bf16 %v224
      %v233 = vunpack.c.l.bf16 %v225
      %v234 = vunpack.c.l.bf16 %v226
      %v235 = vunpack.c.l.bf16 %v227
      %v236 = vunpack.c.l.bf16 %v228
      %v245 = vunpack.c.l.b16 %v197
      %v246 = vunpack.c.l.b16 %v198
      %v247 = vunpack.c.l.b16 %v199
      %v248 = vunpack.c.l.b16 %v200
      %v249 = vunpack.c.l.b16 %v201
      %v250 = vunpack.c.l.b16 %v202
      %v251 = vunpack.c.l.b16 %v203
      %v252 = vunpack.c.l.b16 %v204
      %v253 = vpack.c.b16 %v246, %v245
      %v254 = vpack.c.b16 %v248, %v247
      %v255 = vpack.c.b16 %v250, %v249
      %v256 = vpack.c.b16 %v252, %v251
      %v277 = vunpack.c.l.b16 %v205
      %v278 = vunpack.c.l.b16 %v206
      %v279 = vunpack.c.l.b16 %v207
      %v280 = vunpack.c.l.b16 %v208
      %v281 = vunpack.c.l.b16 %v209
      %v282 = vunpack.c.l.b16 %v210
      %v283 = vunpack.c.l.b16 %v211
      %v284 = vunpack.c.l.b16 %v212
      %v285 = vunpack.c.l.b16 %v213
      %v286 = vunpack.c.l.b16 %v214
      %v287 = vunpack.c.l.b16 %v215
      %v288 = vunpack.c.l.b16 %v216
      %v289 = vunpack.c.l.b16 %v217
      %v290 = vunpack.c.l.b16 %v218
      %v291 = vunpack.c.l.b16 %v219
      %v292 = vunpack.c.l.b16 %v220
      %v293 = vpack.c.b16 %v278, %v277
      %v294 = vpack.c.b16 %v280, %v279
      %v295 = vpack.c.b16 %v282, %v281
      %v296 = vpack.c.b16 %v284, %v283
      %v297 = vpack.c.b16 %v286, %v285
      %v298 = vpack.c.b16 %v288, %v287
      %v299 = vpack.c.b16 %v290, %v289
      %v300 = vpack.c.b16 %v292, %v291
      %309 = vmatprep.subr.bf16.mxu0 0
      %310 = vmatpush1.bf16.msra.mxu0 %v293
      %311 = vmatprep.subr.bf16.mxu0 0
      %312 = vmatpush1.bf16.msra.mxu0 %v294
      %313 = vmatprep.subr.bf16.mxu0 0
      %314 = vmatpush1.bf16.msra.mxu0 %v295
      %315 = vmatprep.subr.bf16.mxu0 0
      %316 = vmatpush1.bf16.msra.mxu0 %v296
      %317 = vmatprep.subr.bf16.mxu0 0
      %318 = vmatpush1.bf16.msra.mxu0 %v297
      %319 = vmatprep.subr.bf16.mxu0 0
      %320 = vmatpush1.bf16.msra.mxu0 %v298
      %321 = vmatprep.subr.bf16.mxu0 0
      %322 = vmatpush1.bf16.msra.mxu0 %v299
      %323 = vmatprep.subr.bf16.mxu0 0
      %324 = vmatpush1.bf16.msra.mxu0 %v300
      %325 = vmatprep.subr.bf16.mxu0 0
      %326 = vmatpush1.bf16.msra.mxu0 0
      %327 = vmatprep.subr.bf16.mxu0 0
      %328 = vmatpush1.bf16.msra.mxu0 0
      %329 = vmatprep.subr.bf16.mxu0 0
      %330 = vmatpush1.bf16.msra.mxu0 0
      %331 = vmatprep.subr.bf16.mxu0 0
      %332 = vmatpush1.bf16.msra.mxu0 0
      %333 = vmatprep.subr.bf16.mxu0 0
      %334 = vmatpush1.bf16.msra.mxu0 0
      %335 = vmatprep.subr.bf16.mxu0 0
      %336 = vmatpush1.bf16.msra.mxu0 0
      %337 = vmatprep.subr.bf16.mxu0 0
      %338 = vmatpush1.bf16.msra.mxu0 0
      %339 = vmatprep.subr.bf16.mxu0 0
      %340 = vmatpush1.bf16.msra.mxu0 0
      %341 = vmatprep.mubr.bf16.mxu0 0
      %342 = vmatmul.mubr.bf16.gmra.mrb[0].mxu0 %v253
      %v343 = vpop.f32.mrb[0].mxu0
      %v344 = vadd.f32 %v229, %v343
      %v345 = vpop.f32.mrb[0].mxu0
      %v346 = vpop.f32.mrb[0].mxu0
      %v347 = vadd.f32 %v230, %v346
      %v348 = vpop.f32.mrb[0].mxu0
      %349 = vmatprep.mubr.bf16.mxu0 0
      %350 = vmatmul.mubr.bf16.gmra.mrb[0].mxu0 %v254
      %v351 = vpop.f32.mrb[0].mxu0
      %v352 = vadd.f32 %v231, %v351
      %v353 = vpop.f32.mrb[0].mxu0
      %v354 = vpop.f32.mrb[0].mxu0
      %v355 = vadd.f32 %v232, %v354
      %v356 = vpop.f32.mrb[0].mxu0
      %357 = vmatprep.mubr.bf16.mxu0 0
      %358 = vmatmul.mubr.bf16.gmra.mrb[0].mxu0 %v255
      %v359 = vpop.f32.mrb[0].mxu0
      %v360 = vadd.f32 %v233, %v359
      %v361 = vpop.f32.mrb[0].mxu0
      %v362 = vpop.f32.mrb[0].mxu0
      %v363 = vadd.f32 %v234, %v362
      %v364 = vpop.f32.mrb[0].mxu0
      %365 = vmatprep.mubr.bf16.mxu0 0
      %366 = vmatmul.mubr.bf16.gmra.mrb[0].mxu0 %v256
      %v367 = vpop.f32.mrb[0].mxu0
      %v368 = vadd.f32 %v235, %v367
      %v369 = vpop.f32.mrb[0].mxu0
      %v370 = vpop.f32.mrb[0].mxu0
      %v371 = vadd.f32 %v236, %v370
      %v372 = vpop.f32.mrb[0].mxu0
      %373 = vdwg.mxu0
      %v374 = vpack.c.bf16 %v347, %v344
      %v375 = vpack.c.bf16 %v355, %v352
      %v376 = vpack.c.bf16 %v363, %v360
      %v377 = vpack.c.bf16 %v371, %v368
      %v382 = vunpack.c.l.b16 %v374
      %v383 = vunpack.c.h.b16 %v374
      %v384 = vunpack.c.l.b16 %v375
      %v385 = vunpack.c.h.b16 %v375
      %v386 = vunpack.c.l.b16 %v376
      %v387 = vunpack.c.h.b16 %v376
      %v388 = vunpack.c.l.b16 %v377
      %v389 = vunpack.c.h.b16 %v377
      %v390 = vpack.c.b16 %v382, %v382
      %v391 = vpack.c.b16 %v383, %v383
      %v392 = vpack.c.b16 %v384, %v384
      %v393 = vpack.c.b16 %v385, %v385
      %v394 = vpack.c.b16 %v386, %v386
      %v395 = vpack.c.b16 %v387, %v387
      %v396 = vpack.c.b16 %v388, %v388
      %v397 = vpack.c.b16 %v389, %v389
      %406 = vst [vmem:[%s194] sm:$0xf] %v390
      %407 = vst [vmem:[%s194 + $0x4] sm:$0xf] %v391
      %408 = vst [vmem:[%s194 + $0x8] sm:$0xf] %v392
      %409 = vst [vmem:[%s194 + $0xc] sm:$0xf] %v393
      %410 = vst [vmem:[%s194 + $0x10] sm:$0xf] %v394
      %411 = vst [vmem:[%s194 + $0x14] sm:$0xf] %v395
      %412 = vst [vmem:[%s194 + $0x18] sm:$0xf] %v396
      %413 = vst [vmem:[%s194 + $0x1c] sm:$0xf] %v397
      %s414 = smul.u32 8, %s14
      %p415 = scmp.lt.s32.totalorder %s414, 15
      %s416 = scalar_select %p415, %s414, 15
      %s417 = smul.addr %s416, 4
      %s418 = scalar_lea.vmem %s3, %s417
      // Predicated region
      $region33: #{disentg_group.18} parent=31 // pred_check
        %p419 = pneg %p105
      $region34: #{disentg_group.18} parent=31 // pred_check_branch
        %421 = sbr.rel (%p419) target = $region36
      $region35: #{disentg_group.18} parent=31 // pred_region
        %s422 = smul.u32 8, %s14
      $region36: #{disentg_group.18} parent=31 // pred_fallthru
        _
    $region32: #{disentg_group.18} parent=5 // pred_fallthru
      _
    %p423 = scmp.le.s32.totalorder 2, %s9
    // Predicated region
    $region37: #{disentg_group.18} parent=5 // pred_check
      %p424 = pneg %p423
    $region38: #{disentg_group.18} parent=5 // pred_check_branch
      %426 = sbr.rel (%p424) target = $region40
    $region39: #{disentg_group.18} parent=5 // pred_region
      %s427 = ssub.s32 %s9, 2
      // Predicated region
      $region41: #{disentg_group.18} parent=39 // pred_check
        %p428 = pneg %p111
      $region42: #{disentg_group.18} parent=39 // pred_check_branch
        %430 = sbr.rel (%p428) target = $region44
      $region43: #{disentg_group.18} parent=39 // pred_region
        %s431 = smul.u32 8, %s15
        %p432 = scmp.lt.s32.totalorder %s431, 15
        %s433 = scalar_select %p432, %s431, 15
        %s434 = smul.addr %s433, 4
        %s435 = scalar_lea.vmem %s3, %s434
      $region44: #{disentg_group.18} parent=39 // pred_fallthru
        _
    $region40: #{disentg_group.18} parent=5 // pred_fallthru
      _
  $region6: #{disentg_group.18} parent=0 // loop_footer
    %s13 = sadd.s32 1, %s9
  $region7: #{disentg_group.18} parent=0 // loop_footer_branch
    %8 = sbr.rel target = $region3
  $region8: #{disentg_group.18} parent=0 // loop_exit
    _

// kernel: disentg_group.17
$region0: #{disentg_group.17}
  #allocation0 [shape = 'u32[]', space=smem, size = 0x4, offset = 0x4, fixed_abs, tag = 'smem constant byte address 0x4 - core index']
  #allocation1 [shape = 'u32[144,128]{1,0:T(1,128)}', space=vmem, size = 0x12000, scoped, tag = 'internal scratch']
  %s0 = inlined_call_operand.vmem [shape: bf16[128,128], index: 0, kind: input, shape index: {}]
  %s1 = inlined_call_operand.vmem [shape: bf16[128,128], index: 1, kind: input, shape index: {}]
  %s2 = inlined_call_operand.vmem [shape: bf16[128,128], index: 2, kind: input, shape index: {}]
  %s3 = inlined_call_operand.vmem [shape: bf16[128,128], index: 3, kind: input, shape index: {}]
  %s4 = inlined_call_operand.vmem [shape: bf16[128,128], index: 4, kind: input, shape index: {}]
  %s5 = inlined_call_operand.vmem [shape: bf16[128,128], index: 5, kind: input, shape index: {}]
  %s6 = inlined_call_operand.vmem [shape: bf16[128,128], index: 6, kind: input, shape index: {}]
  %s7 = inlined_call_operand.vmem [shape: bf16[128,128], index: 7, kind: input, shape index: {}]
  %s8 = inlined_call_operand.vmem [shape: bf16[128,128], index: 8, kind: output, shape index: {}]
  %s9 = sld [smem:[#allocation0]]
  $region65: #{disentg_group.17} parent=0
    _
  %s11 = ssub.s32 1, %s9
  %s12 = scalar_select 0, %s11, %s9
  loop: start=0, step=1, limit=4
  $region2: #{disentg_group.17} parent=0 // loop_pre_header
    _
  $region3: #{disentg_group.17} parent=0 // loop_header
    %s14 = sphi 0, %s18
    %p15 = scmp.ge.s32.totalorder %s14, 4
    %s24 = sphi 0, %s26
    %s27 = sphi 0, %s24
    %s28 = sphi 0, %s27
    %s44 = sphi 0, %s28
    %s50 = sphi 0, %s52
    %s53 = sphi 0, %s50
    %s54 = sphi 0, %s53
    %s70 = sphi 0, %s54
    %s76 = sphi 0, %s78
    %s79 = sphi 0, %s76
    %s80 = sphi 0, %s79
    %s96 = sphi 0, %s80
    %s102 = sphi 0, %s104
    %s105 = sphi 0, %s102
    %s106 = sphi 0, %s105
    %s122 = sphi 0, %s106
    %s126 = sphi 0, %s126
    %s128 = sphi 0, %s126
    %s129 = sphi 0, %s128
    %s143 = sphi 0, %s129
    %s147 = sphi 0, %s147
    %s149 = sphi 0, %s147
    %s150 = sphi 0, %s149
    %s164 = sphi 0, %s150
    %s168 = sphi 0, %s168
    %s170 = sphi 0, %s168
    %s171 = sphi 0, %s170
    %s185 = sphi 0, %s171
    %s189 = sphi 0, %s189
    %s191 = sphi 0, %s189
    %s192 = sphi 0, %s191
    %s206 = sphi 0, %s192
    %s212 = sphi 0, %s214
    %s215 = sphi 0, %s212
    %s216 = sphi 0, %s215
    %s232 = sphi 0, %s216
  $region4: #{disentg_group.17} parent=0 // loop_header_branch
    %17 = sbr.rel (%p15) target = $region8
  $region5: #{disentg_group.17} parent=0 // loop_body
    %s19 = ssub.s32 %s14, 1
    %s20 = ssub.s32 %s14, 2
    %s21 = sadd.s32 %s14, 1
    %s22 = ssub.s32 %s14, %s21
    %p23 = scmp.eq.s32.totalorder %s22, 0
    %s25 = sadd.s32 %s24, 1
    %s26 = scalar_select %p23, %s24, %s25
    %p29 = pneg %p23
    %p30 = scmp.eq.s32.totalorder %s14, 1
    %p31 = por %p29, %p30
    %p32 = scmp.ne.s32.totalorder %s24, %s27
    %p33 = scmp.eq.s32.totalorder %s14, 0
    %p34 = por %p32, %p33
    %p35 = scmp.ne.s32.totalorder %s24, %s27
    %p36 = scmp.eq.s32.totalorder %s19, 1
    %p37 = por %p35, %p36
    %p38 = scmp.ne.s32.totalorder %s27, %s28
    %p39 = scmp.eq.s32.totalorder %s19, 0
    %p40 = por %p38, %p39
    %p41 = scmp.ne.s32.totalorder %s27, %s28
    %p42 = scmp.eq.s32.totalorder %s20, 1
    %p43 = por %p41, %p42
    %p45 = scmp.ne.s32.totalorder %s28, %s44
    %p46 = scmp.eq.s32.totalorder %s20, 0
    %p47 = por %p45, %p46
    %s48 = ssub.s32 %s14, %s21
    %p49 = scmp.eq.s32.totalorder %s48, 0
    %s51 = sadd.s32 %s50, 1
    %s52 = scalar_select %p49, %s50, %s51
    %p55 = pneg %p49
    %p56 = scmp.eq.s32.totalorder %s14, 1
    %p57 = por %p55, %p56
    %p58 = scmp.ne.s32.totalorder %s50, %s53
    %p59 = scmp.eq.s32.totalorder %s14, 0
    %p60 = por %p58, %p59
    %p61 = scmp.ne.s32.totalorder %s50, %s53
    %p62 = scmp.eq.s32.totalorder %s19, 1
    %p63 = por %p61, %p62
    %p64 = scmp.ne.s32.totalorder %s53, %s54
    %p65 = scmp.eq.s32.totalorder %s19, 0
    %p66 = por %p64, %p65
    %p67 = scmp.ne.s32.totalorder %s53, %s54
    %p68 = scmp.eq.s32.totalorder %s20, 1
    %p69 = por %p67, %p68
    %p71 = scmp.ne.s32.totalorder %s54, %s70
    %p72 = scmp.eq.s32.totalorder %s20, 0
    %p73 = por %p71, %p72
    %s74 = ssub.s32 %s14, %s21
    %p75 = scmp.eq.s32.totalorder %s74, 0
    %s77 = sadd.s32 %s76, 1
    %s78 = scalar_select %p75, %s76, %s77
    %p81 = pneg %p75
    %p82 = scmp.eq.s32.totalorder %s14, 1
    %p83 = por %p81, %p82
    %p84 = scmp.ne.s32.totalorder %s76, %s79
    %p85 = scmp.eq.s32.totalorder %s14, 0
    %p86 = por %p84, %p85
    %p87 = scmp.ne.s32.totalorder %s76, %s79
    %p88 = scmp.eq.s32.totalorder %s19, 1
    %p89 = por %p87, %p88
    %p90 = scmp.ne.s32.totalorder %s79, %s80
    %p91 = scmp.eq.s32.totalorder %s19, 0
    %p92 = por %p90, %p91
    %p93 = scmp.ne.s32.totalorder %s79, %s80
    %p94 = scmp.eq.s32.totalorder %s20, 1
    %p95 = por %p93, %p94
    %p97 = scmp.ne.s32.totalorder %s80, %s96
    %p98 = scmp.eq.s32.totalorder %s20, 0
    %p99 = por %p97, %p98
    %s100 = ssub.s32 %s14, %s21
    %p101 = scmp.eq.s32.totalorder %s100, 0
    %s103 = sadd.s32 %s102, 1
    %s104 = scalar_select %p101, %s102, %s103
    %p107 = pneg %p101
    %p108 = scmp.eq.s32.totalorder %s14, 1
    %p109 = por %p107, %p108
    %p110 = scmp.ne.s32.totalorder %s102, %s105
    %p111 = scmp.eq.s32.totalorder %s14, 0
    %p112 = por %p110, %p111
    %p113 = scmp.ne.s32.totalorder %s102, %s105
    %p114 = scmp.eq.s32.totalorder %s19, 1
    %p115 = por %p113, %p114
    %p116 = scmp.ne.s32.totalorder %s105, %s106
    %p117 = scmp.eq.s32.totalorder %s19, 0
    %p118 = por %p116, %p117
    %p119 = scmp.ne.s32.totalorder %s105, %s106
    %p120 = scmp.eq.s32.totalorder %s20, 1
    %p121 = por %p119, %p120
    %p123 = scmp.ne.s32.totalorder %s106, %s122
    %p124 = scmp.eq.s32.totalorder %s20, 0
    %p125 = por %p123, %p124
    %s127 = sadd.s32 %s126, 1
    %p130 = scmp.eq.s32.totalorder %s14, 1
    %p131 = scmp.ne.s32.totalorder %s126, %s128
    %p132 = scmp.eq.s32.totalorder %s14, 0
    %p133 = por %p131, %p132
    %p134 = scmp.ne.s32.totalorder %s126, %s128
    %p135 = scmp.eq.s32.totalorder %s19, 1
    %p136 = por %p134, %p135
    %p137 = scmp.ne.s32.totalorder %s128, %s129
    %p138 = scmp.eq.s32.totalorder %s19, 0
    %p139 = por %p137, %p138
    %p140 = scmp.ne.s32.totalorder %s128, %s129
    %p141 = scmp.eq.s32.totalorder %s20, 1
    %p142 = por %p140, %p141
    %p144 = scmp.ne.s32.totalorder %s129, %s143
    %p145 = scmp.eq.s32.totalorder %s20, 0
    %p146 = por %p144, %p145
    %s148 = sadd.s32 %s147, 1
    %p151 = scmp.eq.s32.totalorder %s14, 1
    %p152 = scmp.ne.s32.totalorder %s147, %s149
    %p153 = scmp.eq.s32.totalorder %s14, 0
    %p154 = por %p152, %p153
    %p155 = scmp.ne.s32.totalorder %s147, %s149
    %p156 = scmp.eq.s32.totalorder %s19, 1
    %p157 = por %p155, %p156
    %p158 = scmp.ne.s32.totalorder %s149, %s150
    %p159 = scmp.eq.s32.totalorder %s19, 0
    %p160 = por %p158, %p159
    %p161 = scmp.ne.s32.totalorder %s149, %s150
    %p162 = scmp.eq.s32.totalorder %s20, 1
    %p163 = por %p161, %p162
    %p165 = scmp.ne.s32.totalorder %s150, %s164
    %p166 = scmp.eq.s32.totalorder %s20, 0
    %p167 = por %p165, %p166
    %s169 = sadd.s32 %s168, 1
    %p172 = scmp.eq.s32.totalorder %s14, 1
    %p173 = scmp.ne.s32.totalorder %s168, %s170
    %p174 = scmp.eq.s32.totalorder %s14, 0
    %p175 = por %p173, %p174
    %p176 = scmp.ne.s32.totalorder %s168, %s170
    %p177 = scmp.eq.s32.totalorder %s19, 1
    %p178 = por %p176, %p177
    %p179 = scmp.ne.s32.totalorder %s170, %s171
    %p180 = scmp.eq.s32.totalorder %s19, 0
    %p181 = por %p179, %p180
    %p182 = scmp.ne.s32.totalorder %s170, %s171
    %p183 = scmp.eq.s32.totalorder %s20, 1
    %p184 = por %p182, %p183
    %p186 = scmp.ne.s32.totalorder %s171, %s185
    %p187 = scmp.eq.s32.totalorder %s20, 0
    %p188 = por %p186, %p187
    %s190 = sadd.s32 %s189, 1
    %p193 = scmp.eq.s32.totalorder %s14, 1
    %p194 = scmp.ne.s32.totalorder %s189, %s191
    %p195 = scmp.eq.s32.totalorder %s14, 0
    %p196 = por %p194, %p195
    %p197 = scmp.ne.s32.totalorder %s189, %s191
    %p198 = scmp.eq.s32.totalorder %s19, 1
    %p199 = por %p197, %p198
    %p200 = scmp.ne.s32.totalorder %s191, %s192
    %p201 = scmp.eq.s32.totalorder %s19, 0
    %p202 = por %p200, %p201
    %p203 = scmp.ne.s32.totalorder %s191, %s192
    %p204 = scmp.eq.s32.totalorder %s20, 1
    %p205 = por %p203, %p204
    %p207 = scmp.ne.s32.totalorder %s192, %s206
    %p208 = scmp.eq.s32.totalorder %s20, 0
    %p209 = por %p207, %p208
    %s210 = ssub.s32 %s14, %s21
    %p211 = scmp.eq.s32.totalorder %s210, 0
    %s213 = sadd.s32 %s212, 1
    %s214 = scalar_select %p211, %s212, %s213
    %p217 = pneg %p211
    %p218 = scmp.eq.s32.totalorder %s14, 1
    %p219 = por %p217, %p218
    %p220 = scmp.ne.s32.totalorder %s212, %s215
    %p221 = scmp.eq.s32.totalorder %s14, 0
    %p222 = por %p220, %p221
    %p223 = scmp.ne.s32.totalorder %s212, %s215
    %p224 = scmp.eq.s32.totalorder %s19, 1
    %p225 = por %p223, %p224
    %p226 = scmp.ne.s32.totalorder %s215, %s216
    %p227 = scmp.eq.s32.totalorder %s19, 0
    %p228 = por %p226, %p227
    %p229 = scmp.ne.s32.totalorder %s215, %s216
    %p230 = scmp.eq.s32.totalorder %s20, 1
    %p231 = por %p229, %p230
    %p233 = scmp.ne.s32.totalorder %s216, %s232
    %p234 = scmp.eq.s32.totalorder %s20, 0
    %p235 = por %p233, %p234
    %p236 = scmp.le.s32.totalorder 1, %s14
    %p237 = scmp.lt.s32.totalorder %s14, 3
    %p238 = pnand %p236, %p237
    %p239 = pneg %p238
    // Predicated region
    $region9: #{disentg_group.17} parent=5 // pred_check
      _
    $region10: #{disentg_group.17} parent=5 // pred_check_branch
      %241 = sbr.rel (%p238) target = $region12
    $region11: #{disentg_group.17} parent=5 // pred_region
      %s242 = ssub.s32 %s14, 1
      // Predicated region
      $region13: #{disentg_group.17} parent=11 // pred_check
        %p243 = pneg %p139
      $region14: #{disentg_group.17} parent=11 // pred_check_branch
        %245 = sbr.rel (%p243) target = $region16
      $region15: #{disentg_group.17} parent=11 // pred_region
        _
      $region16: #{disentg_group.17} parent=11 // pred_fallthru
        _
      // Predicated region
      $region17: #{disentg_group.17} parent=11 // pred_check
        %p246 = pneg %p160
      $region18: #{disentg_group.17} parent=11 // pred_check_branch
        %248 = sbr.rel (%p246) target = $region20
      $region19: #{disentg_group.17} parent=11 // pred_region
        _
      $region20: #{disentg_group.17} parent=11 // pred_fallthru
        _
      // Predicated region
      $region21: #{disentg_group.17} parent=11 // pred_check
        %p249 = pneg %p181
      $region22: #{disentg_group.17} parent=11 // pred_check_branch
        %251 = sbr.rel (%p249) target = $region24
      $region23: #{disentg_group.17} parent=11 // pred_region
        _
      $region24: #{disentg_group.17} parent=11 // pred_fallthru
        _
      // Predicated region
      $region25: #{disentg_group.17} parent=11 // pred_check
        %p252 = pneg %p202
      $region26: #{disentg_group.17} parent=11 // pred_check_branch
        %254 = sbr.rel (%p252) target = $region28
      $region27: #{disentg_group.17} parent=11 // pred_region
        _
      $region28: #{disentg_group.17} parent=11 // pred_fallthru
        _
    $region12: #{disentg_group.17} parent=5 // pred_fallthru
      _
    %p255 = scmp.lt.s32.totalorder %s14, 2
    // Predicated region
    $region29: #{disentg_group.17} parent=5 // pred_check
      %p256 = pneg %p255
    $region30: #{disentg_group.17} parent=5 // pred_check_branch
      %258 = sbr.rel (%p256) target = $region32
    $region31: #{disentg_group.17} parent=5 // pred_region
      // Predicated region
      $region33: #{disentg_group.17} parent=31 // pred_check
        %p259 = pneg %p34
      $region34: #{disentg_group.17} parent=31 // pred_check_branch
        %261 = sbr.rel (%p259) target = $region36
      $region35: #{disentg_group.17} parent=31 // pred_region
        %s262 = smul.u32 8, %s14
        %p263 = scmp.lt.s32.totalorder %s262, 15
        %s264 = scalar_select %p263, %s262, 15
        %s265 = smul.addr %s264, 4
        %s266 = scalar_lea.vmem %s0, %s265
        %s267 = smul.u32 8, %s14
      $region36: #{disentg_group.17} parent=31 // pred_fallthru
        _
      // Predicated region
      $region37: #{disentg_group.17} parent=31 // pred_check
        %p268 = pneg %p60
      $region38: #{disentg_group.17} parent=31 // pred_check_branch
        %270 = sbr.rel (%p268) target = $region40
      $region39: #{disentg_group.17} parent=31 // pred_region
        %s271 = smul.u32 8, %s14
        %p272 = scmp.lt.s32.totalorder %s271, 15
        %s273 = scalar_select %p272, %s271, 15
        %s274 = smul.addr %s273, 4
        %s275 = scalar_lea.vmem %s1, %s274
        %s276 = smul.u32 8, %s14
      $region40: #{disentg_group.17} parent=31 // pred_fallthru
        _
      // Predicated region
      $region41: #{disentg_group.17} parent=31 // pred_check
        %p277 = pneg %p86
      $region42: #{disentg_group.17} parent=31 // pred_check_branch
        %279 = sbr.rel (%p277) target = $region44
      $region43: #{disentg_group.17} parent=31 // pred_region
        %s280 = smul.u32 8, %s14
        %p281 = scmp.lt.s32.totalorder %s280, 15
        %s282 = scalar_select %p281, %s280, 15
        %s283 = smul.addr %s282, 4
        %s284 = scalar_lea.vmem %s2, %s283
        %s285 = smul.u32 8, %s14
      $region44: #{disentg_group.17} parent=31 // pred_fallthru
        _
      // Predicated region
      $region45: #{disentg_group.17} parent=31 // pred_check
        %p286 = pneg %p112
      $region46: #{disentg_group.17} parent=31 // pred_check_branch
        %288 = sbr.rel (%p286) target = $region48
      $region47: #{disentg_group.17} parent=31 // pred_region
        %s289 = smul.u32 8, %s14
        %p290 = scmp.lt.s32.totalorder %s289, 15
        %s291 = scalar_select %p290, %s289, 15
        %s292 = smul.addr %s291, 4
        %s293 = scalar_lea.vmem %s3, %s292
        %s294 = smul.u32 8, %s14
      $region48: #{disentg_group.17} parent=31 // pred_fallthru
        _
    $region32: #{disentg_group.17} parent=5 // pred_fallthru
      _
    %p295 = scmp.le.s32.totalorder 1, %s14
    %p296 = scmp.lt.s32.totalorder %s14, 3
    %p297 = pnand %p295, %p296
    %p298 = pneg %p297
    // Predicated region
    $region49: #{disentg_group.17} parent=5 // pred_check
      _
    $region50: #{disentg_group.17} parent=5 // pred_check_branch
      %300 = sbr.rel (%p297) target = $region52
    $region51: #{disentg_group.17} parent=5 // pred_region
      %s301 = ssub.s32 %s14, 1
      %s302 = smul.u32 8, %s19
      %p303 = scmp.lt.s32.totalorder %s302, 15
      %s304 = scalar_select %p303, %s302, 15
      %s305 = smul.addr %s304, 4
      %s306 = scalar_lea.vmem %s0, %s305
      %p307 = pneg %p40
      %p308 = pneg %p37
      %s309 = smul.u32 8, %s19
      %p310 = scmp.lt.s32.totalorder %s309, 15
      %s311 = scalar_select %p310, %s309, 15
      %s312 = smul.addr %s311, 4
      %s313 = scalar_lea.vmem %s1, %s312
      %p314 = pneg %p66
      %p315 = pneg %p63
      %s316 = smul.u32 8, %s19
      %p317 = scmp.lt.s32.totalorder %s316, 15
      %s318 = scalar_select %p317, %s316, 15
      %s319 = smul.addr %s318, 4
      %s320 = scalar_lea.vmem %s2, %s319
      %p321 = pneg %p92
      %p322 = pneg %p89
      %s323 = smul.u32 8, %s19
      %p324 = scmp.lt.s32.totalorder %s323, 15
      %s325 = scalar_select %p324, %s323, 15
      %s326 = smul.addr %s325, 4
      %s327 = scalar_lea.vmem %s3, %s326
      %p328 = pneg %p118
      %p329 = pneg %p115
      %p330 = pneg %p139
      %p331 = pneg %p136
      %p332 = pneg %p160
      %p333 = pneg %p157
      %p334 = pneg %p181
      %p335 = pneg %p178
      %p336 = pneg %p202
      %p337 = pneg %p199
      %p338 = pneg %p228
      %p339 = pneg %p225
      %s340 = smul.u32 8, %s19
      %p341 = scmp.lt.s32.totalorder %s340, 15
      %s342 = scalar_select %p341, %s340, 15
      %s343 = smul.addr %s342, 4
      %s344 = scalar_lea.vmem %s8, %s343
      %s345 = smul.u32 8, %s19
      %p346 = scmp.lt.s32.totalorder %s345, 15
      %s347 = scalar_select %p346, %s345, 15
      %s348 = smul.addr %s347, 4
      %s349 = scalar_lea.vmem %s0, %s348
      %s350 = smul.u32 8, %s19
      %s351 = smul.u32 8, %s19
      %p352 = scmp.lt.s32.totalorder %s351, 15
      %s353 = scalar_select %p352, %s351, 15
      %s354 = smul.addr %s353, 4
      %s355 = scalar_lea.vmem %s1, %s354
      %s356 = smul.u32 8, %s19
      %s357 = smul.u32 8, %s19
      %p358 = scmp.lt.s32.totalorder %s357, 15
      %s359 = scalar_select %p358, %s357, 15
      %s360 = smul.addr %s359, 4
      %s361 = scalar_lea.vmem %s2, %s360
      %s362 = smul.u32 8, %s19
      %s363 = smul.u32 8, %s19
      %p364 = scmp.lt.s32.totalorder %s363, 15
      %s365 = scalar_select %p364, %s363, 15
      %s366 = smul.addr %s365, 4
      %s367 = scalar_lea.vmem %s3, %s366
      %s368 = smul.u32 8, %s19
      %s369 = smul.u32 8, %s19
      %p370 = scmp.lt.s32.totalorder %s369, 15
      %s371 = scalar_select %p370, %s369, 15
      %s372 = smul.addr %s371, 4
      %s373 = scalar_lea.vmem %s8, %s372
      %s374 = smul.u32 8, %s19
      %v376 = vld [vmem:[%s349] sm:$0xf]
      %v377 = vld [vmem:[%s349 + $0x4] sm:$0xf]
      %v378 = vld [vmem:[%s349 + $0x8] sm:$0xf]
      %v379 = vld [vmem:[%s349 + $0xc] sm:$0xf]
      %v380 = vld [vmem:[%s349 + $0x10] sm:$0xf]
      %v381 = vld [vmem:[%s349 + $0x14] sm:$0xf]
      %v382 = vld [vmem:[%s349 + $0x18] sm:$0xf]
      %v383 = vld [vmem:[%s349 + $0x1c] sm:$0xf]
      %v384 = vld [vmem:[%s4] sm:$0xf]
      %v385 = vld [vmem:[%s4 + $0x4] sm:$0xf]
      %v386 = vld [vmem:[%s4 + $0x8] sm:$0xf]
      %v387 = vld [vmem:[%s4 + $0xc] sm:$0xf]
      %v388 = vld [vmem:[%s4 + $0x10] sm:$0xf]
      %v389 = vld [vmem:[%s4 + $0x14] sm:$0xf]
      %v390 = vld [vmem:[%s4 + $0x18] sm:$0xf]
      %v391 = vld [vmem:[%s4 + $0x1c] sm:$0xf]
      %v392 = vld [vmem:[%s4 + $0x20] sm:$0xf]
      %v393 = vld [vmem:[%s4 + $0x24] sm:$0xf]
      %v394 = vld [vmem:[%s4 + $0x28] sm:$0xf]
      %v395 = vld [vmem:[%s4 + $0x2c] sm:$0xf]
      %v396 = vld [vmem:[%s4 + $0x30] sm:$0xf]
      %v397 = vld [vmem:[%s4 + $0x34] sm:$0xf]
      %v398 = vld [vmem:[%s4 + $0x38] sm:$0xf]
      %v399 = vld [vmem:[%s4 + $0x3c] sm:$0xf]
      %v400 = vld [vmem:[%s355] sm:$0xf]
      %v401 = vld [vmem:[%s355 + $0x4] sm:$0xf]
      %v402 = vld [vmem:[%s355 + $0x8] sm:$0xf]
      %v403 = vld [vmem:[%s355 + $0xc] sm:$0xf]
      %v404 = vld [vmem:[%s355 + $0x10] sm:$0xf]
      %v405 = vld [vmem:[%s355 + $0x14] sm:$0xf]
      %v406 = vld [vmem:[%s355 + $0x18] sm:$0xf]
      %v407 = vld [vmem:[%s355 + $0x1c] sm:$0xf]
      %v408 = vld [vmem:[%s5] sm:$0xf]
      %v409 = vld [vmem:[%s5 + $0x4] sm:$0xf]
      %v410 = vld [vmem:[%s5 + $0x8] sm:$0xf]
      %v411 = vld [vmem:[%s5 + $0xc] sm:$0xf]
      %v412 = vld [vmem:[%s5 + $0x10] sm:$0xf]
      %v413 = vld [vmem:[%s5 + $0x14] sm:$0xf]
      %v414 = vld [vmem:[%s5 + $0x18] sm:$0xf]
      %v415 = vld [vmem:[%s5 + $0x1c] sm:$0xf]
      %v416 = vld [vmem:[%s5 + $0x20] sm:$0xf]
      %v417 = vld [vmem:[%s5 + $0x24] sm:$0xf]
      %v418 = vld [vmem:[%s5 + $0x28] sm:$0xf]
      %v419 = vld [vmem:[%s5 + $0x2c] sm:$0xf]
      %v420 = vld [vmem:[%s5 + $0x30] sm:$0xf]
      %v421 = vld [vmem:[%s5 + $0x34] sm:$0xf]
      %v422 = vld [vmem:[%s5 + $0x38] sm:$0xf]
      %v423 = vld [vmem:[%s5 + $0x3c] sm:$0xf]
      %v432 = vunpack.c.l.b16 %v400
      %v433 = vunpack.c.l.b16 %v401
      %v434 = vunpack.c.l.b16 %v402
      %v435 = vunpack.c.l.b16 %v403
      %v436 = vunpack.c.l.b16 %v404
      %v437 = vunpack.c.l.b16 %v405
      %v438 = vunpack.c.l.b16 %v406
      %v439 = vunpack.c.l.b16 %v407
      %v440 = vpack.c.b16 %v433, %v432
      %v441 = vpack.c.b16 %v435, %v434
      %v442 = vpack.c.b16 %v437, %v436
      %v443 = vpack.c.b16 %v439, %v438
      %v464 = vunpack.c.l.b16 %v408
      %v465 = vunpack.c.l.b16 %v409
      %v466 = vunpack.c.l.b16 %v410
      %v467 = vunpack.c.l.b16 %v411
      %v468 = vunpack.c.l.b16 %v412
      %v469 = vunpack.c.l.b16 %v413
      %v470 = vunpack.c.l.b16 %v414
      %v471 = vunpack.c.l.b16 %v415
      %v472 = vunpack.c.l.b16 %v416
      %v473 = vunpack.c.l.b16 %v417
      %v474 = vunpack.c.l.b16 %v418
      %v475 = vunpack.c.l.b16 %v419
      %v476 = vunpack.c.l.b16 %v420
      %v477 = vunpack.c.l.b16 %v421
      %v478 = vunpack.c.l.b16 %v422
      %v479 = vunpack.c.l.b16 %v423
      %v480 = vpack.c.b16 %v465, %v464
      %v481 = vpack.c.b16 %v467, %v466
      %v482 = vpack.c.b16 %v469, %v468
      %v483 = vpack.c.b16 %v471, %v470
      %v484 = vpack.c.b16 %v473, %v472
      %v485 = vpack.c.b16 %v475, %v474
      %v486 = vpack.c.b16 %v477, %v476
      %v487 = vpack.c.b16 %v479, %v478
      %496 = vmatprep.subr.bf16.mxu0 0
      %497 = vmatpush1.bf16.msra.mxu0 %v480
      %498 = vmatprep.subr.bf16.mxu0 0
      %499 = vmatpush1.bf16.msra.mxu0 %v481
      %500 = vmatprep.subr.bf16.mxu0 0
      %501 = vmatpush1.bf16.msra.mxu0 %v482
      %502 = vmatprep.subr.bf16.mxu0 0
      %503 = vmatpush1.bf16.msra.mxu0 %v483
      %504 = vmatprep.subr.bf16.mxu0 0
      %505 = vmatpush1.bf16.msra.mxu0 %v484
      %506 = vmatprep.subr.bf16.mxu0 0
      %507 = vmatpush1.bf16.msra.mxu0 %v485
      %508 = vmatprep.subr.bf16.mxu0 0
      %509 = vmatpush1.bf16.msra.mxu0 %v486
      %510 = vmatprep.subr.bf16.mxu0 0
      %511 = vmatpush1.bf16.msra.mxu0 %v487
      %512 = vmatprep.subr.bf16.mxu0 0
      %513 = vmatpush1.bf16.msra.mxu0 0
      %514 = vmatprep.subr.bf16.mxu0 0
      %515 = vmatpush1.bf16.msra.mxu0 0
      %516 = vmatprep.subr.bf16.mxu0 0
      %517 = vmatpush1.bf16.msra.mxu0 0
      %518 = vmatprep.subr.bf16.mxu0 0
      %519 = vmatpush1.bf16.msra.mxu0 0
      %520 = vmatprep.subr.bf16.mxu0 0
      %521 = vmatpush1.bf16.msra.mxu0 0
      %522 = vmatprep.subr.bf16.mxu0 0
      %523 = vmatpush1.bf16.msra.mxu0 0
      %524 = vmatprep.subr.bf16.mxu0 0
      %525 = vmatpush1.bf16.msra.mxu0 0
      %526 = vmatprep.subr.bf16.mxu0 0
      %527 = vmatpush1.bf16.msra.mxu0 0
      %528 = vmatprep.mubr.bf16.mxu0 0
      %529 = vmatmul.mubr.bf16.gmra.mrb[0].mxu0 %v440
      %v530 = vpop.f32.mrb[0].mxu0
      %v531 = vadd.f32 0.0, %v530
      %v532 = vpop.f32.mrb[0].mxu0
      %v533 = vpop.f32.mrb[0].mxu0
      %v534 = vadd.f32 0.0, %v533
      %v535 = vpop.f32.mrb[0].mxu0
      %536 = vmatprep.mubr.bf16.mxu0 0
      %537 = vmatmul.mubr.bf16.gmra.mrb[0].mxu0 %v441
      %v538 = vpop.f32.mrb[0].mxu0
      %v539 = vadd.f32 0.0, %v538
      %v540 = vpop.f32.mrb[0].mxu0
      %v541 = vpop.f32.mrb[0].mxu0
      %v542 = vadd.f32 0.0, %v541
      %v543 = vpop.f32.mrb[0].mxu0
      %544 = vmatprep.mubr.bf16.mxu0 0
      %545 = vmatmul.mubr.bf16.gmra.mrb[0].mxu0 %v442
      %v546 = vpop.f32.mrb[0].mxu0
      %v547 = vadd.f32 0.0, %v546
      %v548 = vpop.f32.mrb[0].mxu0
      %v549 = vpop.f32.mrb[0].mxu0
      %v550 = vadd.f32 0.0, %v549
      %v551 = vpop.f32.mrb[0].mxu0
      %552 = vmatprep.mubr.bf16.mxu0 0
      %553 = vmatmul.mubr.bf16.gmra.mrb[0].mxu0 %v443
      %v554 = vpop.f32.mrb[0].mxu0
      %v555 = vadd.f32 0.0, %v554
      %v556 = vpop.f32.mrb[0].mxu0
      %v557 = vpop.f32.mrb[0].mxu0
      %v558 = vadd.f32 0.0, %v557
      %v559 = vpop.f32.mrb[0].mxu0
      %560 = vdwg.mxu0
      %v569 = vunpack.c.l.b16 %v376
      %v570 = vunpack.c.l.b16 %v377
      %v571 = vunpack.c.l.b16 %v378
      %v572 = vunpack.c.l.b16 %v379
      %v573 = vunpack.c.l.b16 %v380
      %v574 = vunpack.c.l.b16 %v381
      %v575 = vunpack.c.l.b16 %v382
      %v576 = vunpack.c.l.b16 %v383
      %v577 = vpack.c.b16 %v570, %v569
      %v578 = vpack.c.b16 %v572, %v571
      %v579 = vpack.c.b16 %v574, %v573
      %v580 = vpack.c.b16 %v576, %v575
      %v601 = vunpack.c.l.b16 %v384
      %v602 = vunpack.c.l.b16 %v385
      %v603 = vunpack.c.l.b16 %v386
      %v604 = vunpack.c.l.b16 %v387
      %v605 = vunpack.c.l.b16 %v388
      %v606 = vunpack.c.l.b16 %v389
      %v607 = vunpack.c.l.b16 %v390
      %v608 = vunpack.c.l.b16 %v391
      %v609 = vunpack.c.l.b16 %v392
      %v610 = vunpack.c.l.b16 %v393
      %v611 = vunpack.c.l.b16 %v394
      %v612 = vunpack.c.l.b16 %v395
      %v613 = vunpack.c.l.b16 %v396
      %v614 = vunpack.c.l.b16 %v397
      %v615 = vunpack.c.l.b16 %v398
      %v616 = vunpack.c.l.b16 %v399
      %v617 = vpack.c.b16 %v602, %v601
      %v618 = vpack.c.b16 %v604, %v603
      %v619 = vpack.c.b16 %v606, %v605
      %v620 = vpack.c.b16 %v608, %v607
      %v621 = vpack.c.b16 %v610, %v609
      %v622 = vpack.c.b16 %v612, %v611
      %v623 = vpack.c.b16 %v614, %v613
      %v624 = vpack.c.b16 %v616, %v615
      %633 = vmatprep.subr.bf16.mxu0 0
      %634 = vmatpush1.bf16.msra.mxu0 %v617
      %635 = vmatprep.subr.bf16.mxu0 0
      %636 = vmatpush1.bf16.msra.mxu0 %v618
      %637 = vmatprep.subr.bf16.mxu0 0
      %638 = vmatpush1.bf16.msra.mxu0 %v619
      %639 = vmatprep.subr.bf16.mxu0 0
      %640 = vmatpush1.bf16.msra.mxu0 %v620
      %641 = vmatprep.subr.bf16.mxu0 0
      %642 = vmatpush1.bf16.msra.mxu0 %v621
      %643 = vmatprep.subr.bf16.mxu0 0
      %644 = vmatpush1.bf16.msra.mxu0 %v622
      %645 = vmatprep.subr.bf16.mxu0 0
      %646 = vmatpush1.bf16.msra.mxu0 %v623
      %647 = vmatprep.subr.bf16.mxu0 0
      %648 = vmatpush1.bf16.msra.mxu0 %v624
      %649 = vmatprep.subr.bf16.mxu0 0
      %650 = vmatpush1.bf16.msra.mxu0 0
      %651 = vmatprep.subr.bf16.mxu0 0
      %652 = vmatpush1.bf16.msra.mxu0 0
      %653 = vmatprep.subr.bf16.mxu0 0
      %654 = vmatpush1.bf16.msra.mxu0 0
      %655 = vmatprep.subr.bf16.mxu0 0
      %656 = vmatpush1.bf16.msra.mxu0 0
      %657 = vmatprep.subr.bf16.mxu0 0
      %658 = vmatpush1.bf16.msra.mxu0 0
      %659 = vmatprep.subr.bf16.mxu0 0
      %660 = vmatpush1.bf16.msra.mxu0 0
      %661 = vmatprep.subr.bf16.mxu0 0
      %662 = vmatpush1.bf16.msra.mxu0 0
      %663 = vmatprep.subr.bf16.mxu0 0
      %664 = vmatpush1.bf16.msra.mxu0 0
      %665 = vmatprep.mubr.bf16.mxu0 0
      %666 = vmatmul.mubr.bf16.gmra.mrb[0].mxu0 %v577
      %v667 = vpop.f32.mrb[0].mxu0
      %v668 = vadd.f32 %v531, %v667
      %v669 = vpop.f32.mrb[0].mxu0
      %v670 = vpop.f32.mrb[0].mxu0
      %v671 = vadd.f32 %v534, %v670
      %v672 = vpop.f32.mrb[0].mxu0
      %673 = vmatprep.mubr.bf16.mxu0 0
      %674 = vmatmul.mubr.bf16.gmra.mrb[0].mxu0 %v578
      %v675 = vpop.f32.mrb[0].mxu0
      %v676 = vadd.f32 %v539, %v675
      %v677 = vpop.f32.mrb[0].mxu0
      %v678 = vpop.f32.mrb[0].mxu0
      %v679 = vadd.f32 %v542, %v678
      %v680 = vpop.f32.mrb[0].mxu0
      %681 = vmatprep.mubr.bf16.mxu0 0
      %682 = vmatmul.mubr.bf16.gmra.mrb[0].mxu0 %v579
      %v683 = vpop.f32.mrb[0].mxu0
      %v684 = vadd.f32 %v547, %v683
      %v685 = vpop.f32.mrb[0].mxu0
      %v686 = vpop.f32.mrb[0].mxu0
      %v687 = vadd.f32 %v550, %v686
      %v688 = vpop.f32.mrb[0].mxu0
      %689 = vmatprep.mubr.bf16.mxu0 0
      %690 = vmatmul.mubr.bf16.gmra.mrb[0].mxu0 %v580
      %v691 = vpop.f32.mrb[0].mxu0
      %v692 = vadd.f32 %v555, %v691
      %v693 = vpop.f32.mrb[0].mxu0
      %v694 = vpop.f32.mrb[0].mxu0
      %v695 = vadd.f32 %v558, %v694
      %v696 = vpop.f32.mrb[0].mxu0
      %697 = vdwg.mxu0
      %v698 = vld [vmem:[%s361] sm:$0xf]
      %v699 = vld [vmem:[%s361 + $0x4] sm:$0xf]
      %v700 = vld [vmem:[%s361 + $0x8] sm:$0xf]
      %v701 = vld [vmem:[%s361 + $0xc] sm:$0xf]
      %v702 = vld [vmem:[%s361 + $0x10] sm:$0xf]
      %v703 = vld [vmem:[%s361 + $0x14] sm:$0xf]
      %v704 = vld [vmem:[%s361 + $0x18] sm:$0xf]
      %v705 = vld [vmem:[%s361 + $0x1c] sm:$0xf]
      %v706 = vld [vmem:[%s6] sm:$0xf]
      %v707 = vld [vmem:[%s6 + $0x4] sm:$0xf]
      %v708 = vld [vmem:[%s6 + $0x8] sm:$0xf]
      %v709 = vld [vmem:[%s6 + $0xc] sm:$0xf]
      %v710 = vld [vmem:[%s6 + $0x10] sm:$0xf]
      %v711 = vld [vmem:[%s6 + $0x14] sm:$0xf]
      %v712 = vld [vmem:[%s6 + $0x18] sm:$0xf]
      %v713 = vld [vmem:[%s6 + $0x1c] sm:$0xf]
      %v714 = vld [vmem:[%s6 + $0x20] sm:$0xf]
      %v715 = vld [vmem:[%s6 + $0x24] sm:$0xf]
      %v716 = vld [vmem:[%s6 + $0x28] sm:$0xf]
      %v717 = vld [vmem:[%s6 + $0x2c] sm:$0xf]
      %v718 = vld [vmem:[%s6 + $0x30] sm:$0xf]
      %v719 = vld [vmem:[%s6 + $0x34] sm:$0xf]
      %v720 = vld [vmem:[%s6 + $0x38] sm:$0xf]
      %v721 = vld [vmem:[%s6 + $0x3c] sm:$0xf]
      %v730 = vunpack.c.l.b16 %v698
      %v731 = vunpack.c.l.b16 %v699
      %v732 = vunpack.c.l.b16 %v700
      %v733 = vunpack.c.l.b16 %v701
      %v734 = vunpack.c.l.b16 %v702
      %v735 = vunpack.c.l.b16 %v703
      %v736 = vunpack.c.l.b16 %v704
      %v737 = vunpack.c.l.b16 %v705
      %v738 = vpack.c.b16 %v731, %v730
      %v739 = vpack.c.b16 %v733, %v732
      %v740 = vpack.c.b16 %v735, %v734
      %v741 = vpack.c.b16 %v737, %v736
      %v762 = vunpack.c.l.b16 %v706
      %v763 = vunpack.c.l.b16 %v707
      %v764 = vunpack.c.l.b16 %v708
      %v765 = vunpack.c.l.b16 %v709
      %v766 = vunpack.c.l.b16 %v710
      %v767 = vunpack.c.l.b16 %v711
      %v768 = vunpack.c.l.b16 %v712
      %v769 = vunpack.c.l.b16 %v713
      %v770 = vunpack.c.l.b16 %v714
      %v771 = vunpack.c.l.b16 %v715
      %v772 = vunpack.c.l.b16 %v716
      %v773 = vunpack.c.l.b16 %v717
      %v774 = vunpack.c.l.b16 %v718
      %v775 = vunpack.c.l.b16 %v719
      %v776 = vunpack.c.l.b16 %v720
      %v777 = vunpack.c.l.b16 %v721
      %v778 = vpack.c.b16 %v763, %v762
      %v779 = vpack.c.b16 %v765, %v764
      %v780 = vpack.c.b16 %v767, %v766
      %v781 = vpack.c.b16 %v769, %v768
      %v782 = vpack.c.b16 %v771, %v770
      %v783 = vpack.c.b16 %v773, %v772
      %v784 = vpack.c.b16 %v775, %v774
      %v785 = vpack.c.b16 %v777, %v776
      %794 = vmatprep.subr.bf16.mxu0 0
      %795 = vmatpush1.bf16.msra.mxu0 %v778
      %796 = vmatprep.subr.bf16.mxu0 0
      %797 = vmatpush1.bf16.msra.mxu0 %v779
      %798 = vmatprep.subr.bf16.mxu0 0
      %799 = vmatpush1.bf16.msra.mxu0 %v780
      %800 = vmatprep.subr.bf16.mxu0 0
      %801 = vmatpush1.bf16.msra.mxu0 %v781
      %802 = vmatprep.subr.bf16.mxu0 0
      %803 = vmatpush1.bf16.msra.mxu0 %v782
      %804 = vmatprep.subr.bf16.mxu0 0
      %805 = vmatpush1.bf16.msra.mxu0 %v783
      %806 = vmatprep.subr.bf16.mxu0 0
      %807 = vmatpush1.bf16.msra.mxu0 %v784
      %808 = vmatprep.subr.bf16.mxu0 0
      %809 = vmatpush1.bf16.msra.mxu0 %v785
      %810 = vmatprep.subr.bf16.mxu0 0
      %811 = vmatpush1.bf16.msra.mxu0 0
      %812 = vmatprep.subr.bf16.mxu0 0
      %813 = vmatpush1.bf16.msra.mxu0 0
      %814 = vmatprep.subr.bf16.mxu0 0
      %815 = vmatpush1.bf16.msra.mxu0 0
      %816 = vmatprep.subr.bf16.mxu0 0
      %817 = vmatpush1.bf16.msra.mxu0 0
      %818 = vmatprep.subr.bf16.mxu0 0
      %819 = vmatpush1.bf16.msra.mxu0 0
      %820 = vmatprep.subr.bf16.mxu0 0
      %821 = vmatpush1.bf16.msra.mxu0 0
      %822 = vmatprep.subr.bf16.mxu0 0
      %823 = vmatpush1.bf16.msra.mxu0 0
      %824 = vmatprep.subr.bf16.mxu0 0
      %825 = vmatpush1.bf16.msra.mxu0 0
      %826 = vmatprep.mubr.bf16.mxu0 0
      %827 = vmatmul.mubr.bf16.gmra.mrb[0].mxu0 %v738
      %v828 = vpop.f32.mrb[0].mxu0
      %v829 = vadd.f32 0.0, %v828
      %v830 = vpop.f32.mrb[0].mxu0
      %v831 = vpop.f32.mrb[0].mxu0
      %v832 = vadd.f32 0.0, %v831
      %v833 = vpop.f32.mrb[0].mxu0
      %834 = vmatprep.mubr.bf16.mxu0 0
      %835 = vmatmul.mubr.bf16.gmra.mrb[0].mxu0 %v739
      %v836 = vpop.f32.mrb[0].mxu0
      %v837 = vadd.f32 0.0, %v836
      %v838 = vpop.f32.mrb[0].mxu0
      %v839 = vpop.f32.mrb[0].mxu0
      %v840 = vadd.f32 0.0, %v839
      %v841 = vpop.f32.mrb[0].mxu0
      %842 = vmatprep.mubr.bf16.mxu0 0
      %843 = vmatmul.mubr.bf16.gmra.mrb[0].mxu0 %v740
      %v844 = vpop.f32.mrb[0].mxu0
      %v845 = vadd.f32 0.0, %v844
      %v846 = vpop.f32.mrb[0].mxu0
      %v847 = vpop.f32.mrb[0].mxu0
      %v848 = vadd.f32 0.0, %v847
      %v849 = vpop.f32.mrb[0].mxu0
      %850 = vmatprep.mubr.bf16.mxu0 0
      %851 = vmatmul.mubr.bf16.gmra.mrb[0].mxu0 %v741
      %v852 = vpop.f32.mrb[0].mxu0
      %v853 = vadd.f32 0.0, %v852
      %v854 = vpop.f32.mrb[0].mxu0
      %v855 = vpop.f32.mrb[0].mxu0
      %v856 = vadd.f32 0.0, %v855
      %v857 = vpop.f32.mrb[0].mxu0
      %858 = vdwg.mxu0
      %v859 = vadd.f32 %v668, %v829
      %v860 = vadd.f32 %v671, %v832
      %v861 = vadd.f32 %v676, %v837
      %v862 = vadd.f32 %v679, %v840
      %v863 = vadd.f32 %v684, %v845
      %v864 = vadd.f32 %v687, %v848
      %v865 = vadd.f32 %v692, %v853
      %v866 = vadd.f32 %v695, %v856
      %v867 = vld [vmem:[%s367] sm:$0xf]
      %v868 = vld [vmem:[%s367 + $0x4] sm:$0xf]
      %v869 = vld [vmem:[%s367 + $0x8] sm:$0xf]
      %v870 = vld [vmem:[%s367 + $0xc] sm:$0xf]
      %v871 = vld [vmem:[%s367 + $0x10] sm:$0xf]
      %v872 = vld [vmem:[%s367 + $0x14] sm:$0xf]
      %v873 = vld [vmem:[%s367 + $0x18] sm:$0xf]
      %v874 = vld [vmem:[%s367 + $0x1c] sm:$0xf]
      %v875 = vld [vmem:[%s7] sm:$0xf]
      %v876 = vld [vmem:[%s7 + $0x4] sm:$0xf]
      %v877 = vld [vmem:[%s7 + $0x8] sm:$0xf]
      %v878 = vld [vmem:[%s7 + $0xc] sm:$0xf]
      %v879 = vld [vmem:[%s7 + $0x10] sm:$0xf]
      %v880 = vld [vmem:[%s7 + $0x14] sm:$0xf]
      %v881 = vld [vmem:[%s7 + $0x18] sm:$0xf]
      %v882 = vld [vmem:[%s7 + $0x1c] sm:$0xf]
      %v883 = vld [vmem:[%s7 + $0x20] sm:$0xf]
      %v884 = vld [vmem:[%s7 + $0x24] sm:$0xf]
      %v885 = vld [vmem:[%s7 + $0x28] sm:$0xf]
      %v886 = vld [vmem:[%s7 + $0x2c] sm:$0xf]
      %v887 = vld [vmem:[%s7 + $0x30] sm:$0xf]
      %v888 = vld [vmem:[%s7 + $0x34] sm:$0xf]
      %v889 = vld [vmem:[%s7 + $0x38] sm:$0xf]
      %v890 = vld [vmem:[%s7 + $0x3c] sm:$0xf]
      %v899 = vunpack.c.l.b16 %v867
      %v900 = vunpack.c.l.b16 %v868
      %v901 = vunpack.c.l.b16 %v869
      %v902 = vunpack.c.l.b16 %v870
      %v903 = vunpack.c.l.b16 %v871
      %v904 = vunpack.c.l.b16 %v872
      %v905 = vunpack.c.l.b16 %v873
      %v906 = vunpack.c.l.b16 %v874
      %v907 = vpack.c.b16 %v900, %v899
      %v908 = vpack.c.b16 %v902, %v901
      %v909 = vpack.c.b16 %v904, %v903
      %v910 = vpack.c.b16 %v906, %v905
      %v931 = vunpack.c.l.b16 %v875
      %v932 = vunpack.c.l.b16 %v876
      %v933 = vunpack.c.l.b16 %v877
      %v934 = vunpack.c.l.b16 %v878
      %v935 = vunpack.c.l.b16 %v879
      %v936 = vunpack.c.l.b16 %v880
      %v937 = vunpack.c.l.b16 %v881
      %v938 = vunpack.c.l.b16 %v882
      %v939 = vunpack.c.l.b16 %v883
      %v940 = vunpack.c.l.b16 %v884
      %v941 = vunpack.c.l.b16 %v885
      %v942 = vunpack.c.l.b16 %v886
      %v943 = vunpack.c.l.b16 %v887
      %v944 = vunpack.c.l.b16 %v888
      %v945 = vunpack.c.l.b16 %v889
      %v946 = vunpack.c.l.b16 %v890
      %v947 = vpack.c.b16 %v932, %v931
      %v948 = vpack.c.b16 %v934, %v933
      %v949 = vpack.c.b16 %v936, %v935
      %v950 = vpack.c.b16 %v938, %v937
      %v951 = vpack.c.b16 %v940, %v939
      %v952 = vpack.c.b16 %v942, %v941
      %v953 = vpack.c.b16 %v944, %v943
      %v954 = vpack.c.b16 %v946, %v945
      %963 = vmatprep.subr.bf16.mxu0 0
      %964 = vmatpush1.bf16.msra.mxu0 %v947
      %965 = vmatprep.subr.bf16.mxu0 0
      %966 = vmatpush1.bf16.msra.mxu0 %v948
      %967 = vmatprep.subr.bf16.mxu0 0
      %968 = vmatpush1.bf16.msra.mxu0 %v949
      %969 = vmatprep.subr.bf16.mxu0 0
      %970 = vmatpush1.bf16.msra.mxu0 %v950
      %971 = vmatprep.subr.bf16.mxu0 0
      %972 = vmatpush1.bf16.msra.mxu0 %v951
      %973 = vmatprep.subr.bf16.mxu0 0
      %974 = vmatpush1.bf16.msra.mxu0 %v952
      %975 = vmatprep.subr.bf16.mxu0 0
      %976 = vmatpush1.bf16.msra.mxu0 %v953
      %977 = vmatprep.subr.bf16.mxu0 0
      %978 = vmatpush1.bf16.msra.mxu0 %v954
      %979 = vmatprep.subr.bf16.mxu0 0
      %980 = vmatpush1.bf16.msra.mxu0 0
      %981 = vmatprep.subr.bf16.mxu0 0
      %982 = vmatpush1.bf16.msra.mxu0 0
      %983 = vmatprep.subr.bf16.mxu0 0
      %984 = vmatpush1.bf16.msra.mxu0 0
      %985 = vmatprep.subr.bf16.mxu0 0
      %986 = vmatpush1.bf16.msra.mxu0 0
      %987 = vmatprep.subr.bf16.mxu0 0
      %988 = vmatpush1.bf16.msra.mxu0 0
      %989 = vmatprep.subr.bf16.mxu0 0
      %990 = vmatpush1.bf16.msra.mxu0 0
      %991 = vmatprep.subr.bf16.mxu0 0
      %992 = vmatpush1.bf16.msra.mxu0 0
      %993 = vmatprep.subr.bf16.mxu0 0
      %994 = vmatpush1.bf16.msra.mxu0 0
      %995 = vmatprep.mubr.bf16.mxu0 0
      %996 = vmatmul.mubr.bf16.gmra.mrb[0].mxu0 %v907
      %v997 = vpop.f32.mrb[0].mxu0
      %v998 = vadd.f32 0.0, %v997
      %v999 = vpop.f32.mrb[0].mxu0
      %v1000 = vpop.f32.mrb[0].mxu0
      %v1001 = vadd.f32 0.0, %v1000
      %v1002 = vpop.f32.mrb[0].mxu0
      %1003 = vmatprep.mubr.bf16.mxu0 0
      %1004 = vmatmul.mubr.bf16.gmra.mrb[0].mxu0 %v908
      %v1005 = vpop.f32.mrb[0].mxu0
      %v1006 = vadd.f32 0.0, %v1005
      %v1007 = vpop.f32.mrb[0].mxu0
      %v1008 = vpop.f32.mrb[0].mxu0
      %v1009 = vadd.f32 0.0, %v1008
      %v1010 = vpop.f32.mrb[0].mxu0
      %1011 = vmatprep.mubr.bf16.mxu0 0
      %1012 = vmatmul.mubr.bf16.gmra.mrb[0].mxu0 %v909
      %v1013 = vpop.f32.mrb[0].mxu0
      %v1014 = vadd.f32 0.0, %v1013
      %v1015 = vpop.f32.mrb[0].mxu0
      %v1016 = vpop.f32.mrb[0].mxu0
      %v1017 = vadd.f32 0.0, %v1016
      %v1018 = vpop.f32.mrb[0].mxu0
      %1019 = vmatprep.mubr.bf16.mxu0 0
      %1020 = vmatmul.mubr.bf16.gmra.mrb[0].mxu0 %v910
      %v1021 = vpop.f32.mrb[0].mxu0
      %v1022 = vadd.f32 0.0, %v1021
      %v1023 = vpop.f32.mrb[0].mxu0
      %v1024 = vpop.f32.mrb[0].mxu0
      %v1025 = vadd.f32 0.0, %v1024
      %v1026 = vpop.f32.mrb[0].mxu0
      %1027 = vdwg.mxu0
      %v1028 = vadd.f32 %v859, %v998
      %v1029 = vadd.f32 %v860, %v1001
      %v1030 = vadd.f32 %v861, %v1006
      %v1031 = vadd.f32 %v862, %v1009
      %v1032 = vadd.f32 %v863, %v1014
      %v1033 = vadd.f32 %v864, %v1017
      %v1034 = vadd.f32 %v865, %v1022
      %v1035 = vadd.f32 %v866, %v1025
      %vm1036 = vcmp.ge.f32.partialorder %v1028, 0.0
      %vm1037 = vcmp.ge.f32.partialorder %v1029, 0.0
      %vm1038 = vcmp.ge.f32.partialorder %v1030, 0.0
      %vm1039 = vcmp.ge.f32.partialorder %v1031, 0.0
      %vm1040 = vcmp.ge.f32.partialorder %v1032, 0.0
      %vm1041 = vcmp.ge.f32.partialorder %v1033, 0.0
      %vm1042 = vcmp.ge.f32.partialorder %v1034, 0.0
      %vm1043 = vcmp.ge.f32.partialorder %v1035, 0.0
      %v1044 = vmul.f32 %v1028, 0.1
      %v1045 = vmul.f32 %v1029, 0.1
      %v1046 = vmul.f32 %v1030, 0.1
      %v1047 = vmul.f32 %v1031, 0.1
      %v1048 = vmul.f32 %v1032, 0.1
      %v1049 = vmul.f32 %v1033, 0.1
      %v1050 = vmul.f32 %v1034, 0.1
      %v1051 = vmul.f32 %v1035, 0.1
      %v1052 = vsel %vm1036, %v1028, %v1044
      %v1053 = vsel %vm1037, %v1029, %v1045
      %v1054 = vsel %vm1038, %v1030, %v1046
      %v1055 = vsel %vm1039, %v1031, %v1047
      %v1056 = vsel %vm1040, %v1032, %v1048
      %v1057 = vsel %vm1041, %v1033, %v1049
      %v1058 = vsel %vm1042, %v1034, %v1050
      %v1059 = vsel %vm1043, %v1035, %v1051
      %v1060 = vpack.c.bf16 %v1053, %v1052
      %v1061 = vpack.c.bf16 %v1055, %v1054
      %v1062 = vpack.c.bf16 %v1057, %v1056
      %v1063 = vpack.c.bf16 %v1059, %v1058
      %v1068 = vunpack.c.l.b16 %v1060
      %v1069 = vunpack.c.h.b16 %v1060
      %v1070 = vunpack.c.l.b16 %v1061
      %v1071 = vunpack.c.h.b16 %v1061
      %v1072 = vunpack.c.l.b16 %v1062
      %v1073 = vunpack.c.h.b16 %v1062
      %v1074 = vunpack.c.l.b16 %v1063
      %v1075 = vunpack.c.h.b16 %v1063
      %v1076 = vpack.c.b16 %v1068, %v1068
      %v1077 = vpack.c.b16 %v1069, %v1069
      %v1078 = vpack.c.b16 %v1070, %v1070
      %v1079 = vpack.c.b16 %v1071, %v1071
      %v1080 = vpack.c.b16 %v1072, %v1072
      %v1081 = vpack.c.b16 %v1073, %v1073
      %v1082 = vpack.c.b16 %v1074, %v1074
      %v1083 = vpack.c.b16 %v1075, %v1075
      %1092 = vst [vmem:[%s373] sm:$0xf] %v1076
      %1093 = vst [vmem:[%s373 + $0x4] sm:$0xf] %v1077
      %1094 = vst [vmem:[%s373 + $0x8] sm:$0xf] %v1078
      %1095 = vst [vmem:[%s373 + $0xc] sm:$0xf] %v1079
      %1096 = vst [vmem:[%s373 + $0x10] sm:$0xf] %v1080
      %1097 = vst [vmem:[%s373 + $0x14] sm:$0xf] %v1081
      %1098 = vst [vmem:[%s373 + $0x18] sm:$0xf] %v1082
      %1099 = vst [vmem:[%s373 + $0x1c] sm:$0xf] %v1083
      %s1100 = smul.u32 8, %s19
      %p1101 = scmp.lt.s32.totalorder %s1100, 15
      %s1102 = scalar_select %p1101, %s1100, 15
      %s1103 = smul.addr %s1102, 4
      %s1104 = scalar_lea.vmem %s8, %s1103
      // Predicated region
      $region53: #{disentg_group.17} parent=51 // pred_check
        %p1105 = pneg %p225
      $region54: #{disentg_group.17} parent=51 // pred_check_branch
        %1107 = sbr.rel (%p1105) target = $region56
      $region55: #{disentg_group.17} parent=51 // pred_region
        %s1108 = smul.u32 8, %s19
      $region56: #{disentg_group.17} parent=51 // pred_fallthru
        _
    $region52: #{disentg_group.17} parent=5 // pred_fallthru
      _
    %p1109 = scmp.le.s32.totalorder 2, %s14
    // Predicated region
    $region57: #{disentg_group.17} parent=5 // pred_check
      %p1110 = pneg %p1109
    $region58: #{disentg_group.17} parent=5 // pred_check_branch
      %1112 = sbr.rel (%p1110) target = $region60
    $region59: #{disentg_group.17} parent=5 // pred_region
      %s1113 = ssub.s32 %s14, 2
      // Predicated region
      $region61: #{disentg_group.17} parent=59 // pred_check
        %p1114 = pneg %p231
      $region62: #{disentg_group.17} parent=59 // pred_check_branch
        %1116 = sbr.rel (%p1114) target = $region64
      $region63: #{disentg_group.17} parent=59 // pred_region
        %s1117 = smul.u32 8, %s20
        %p1118 = scmp.lt.s32.totalorder %s1117, 15
        %s1119 = scalar_select %p1118, %s1117, 15
        %s1120 = smul.addr %s1119, 4
        %s1121 = scalar_lea.vmem %s8, %s1120
      $region64: #{disentg_group.17} parent=59 // pred_fallthru
        _
    $region60: #{disentg_group.17} parent=5 // pred_fallthru
      _
  $region6: #{disentg_group.17} parent=0 // loop_footer
    %s18 = sadd.s32 1, %s14
  $region7: #{disentg_group.17} parent=0 // loop_footer_branch
    %13 = sbr.rel target = $region3
  $region8: #{disentg_group.17} parent=0 // loop_exit
    _

</llo_original>
